<compile_context>
chip_gen: v7x
topology: tpu7x:2x2x1
jax: 0.10.0
libtpu: 0.0.40
codegen_flags: <defaults>
</compile_context>

<pallas_src>
import functools

import jax
import jax.numpy as jnp
from jax.experimental import pallas as pl
from jax.experimental.pallas import tpu as pltpu


def _round_up(a, b):
    return ((a + b - 1) // b) * b


# --------------------------------------------------------------------------
# Schedule builder (pure JAX glue): which (node tile, edge tile) each grid
# step visits, after the edges have been sorted by src.
# --------------------------------------------------------------------------
def _build_schedule(src_sorted_pad, *, TN, n_nt, TE, n_et, P):
    """Returns flat [P*S] int32 arrays (node tile, edge tile, first, last,
    active) plus the static per-part schedule length S.  Padding steps are
    inert (all flags 0) and revisit the part's last (node tile, edge tile)."""
    bounds = (jnp.arange(n_nt + 1, dtype=jnp.int32) * TN).astype(jnp.int32)
    cuts = jnp.searchsorted(src_sorted_pad, bounds, side="left").astype(jnp.int32)
    e_start, e_end = cuts[:-1], cuts[1:]                       # per-node-tile edge range
    has_edges = e_end > e_start
    t_lo = jnp.clip(e_start // TE, 0, n_et - 1)
    t_hi = jnp.clip(jnp.where(has_edges, (e_end - 1) // TE, e_start // TE),
                    0, n_et - 1)
    t_hi = jnp.maximum(t_hi, t_lo)
    steps = t_hi - t_lo + 1                                    # >= 1 per node tile

    tpp = -(-n_nt // P)                                        # node tiles per part
    S = n_et + tpp                                             # static per-part bound

    nts, ets, firsts, lasts, actives = [], [], [], [], []
    s = jnp.arange(S, dtype=jnp.int32)
    for p in range(P):
        lo, hi = p * tpp, min((p + 1) * tpp, n_nt)
        n_p = hi - lo
        off = jnp.concatenate([jnp.zeros((1,), jnp.int32),
                               jnp.cumsum(steps[lo:hi]).astype(jnp.int32)])
        total = off[n_p]
        j = jnp.clip(jnp.searchsorted(off, s, side="right").astype(jnp.int32) - 1,
                     0, n_p - 1)
        local = s - off[j]
        real = s < total
        nt = (lo + j).astype(jnp.int32)
        et = jnp.minimum(t_lo[nt] + local, t_hi[nt]).astype(jnp.int32)
        nts.append(nt)
        ets.append(et)
        firsts.append((real & (local == 0)).astype(jnp.int32))
        lasts.append((real & (local == steps[nt] - 1)).astype(jnp.int32))
        actives.append((real & has_edges[nt]).astype(jnp.int32))

    cat = lambda xs: jnp.concatenate(xs, axis=0)
    return cat(nts), cat(ets), cat(firsts), cat(lasts), cat(actives), S


# --------------------------------------------------------------------------
# Fused kernel: per-edge message MLP + sorted-segment scatter-mean + node MLP.
# Grid = (P node-tile groups ["parallel"], schedule steps ["arbitrary"]).
# --------------------------------------------------------------------------
def _fused_node_kernel(
        nt_ref, et_ref, first_ref, last_ref, active_ref,       # scalar prefetch (SMEM)
        xs_ref, ea_ref, src_ref, x_ref,                         # streamed inputs
        w1mx_ref, w1me_ref, b1m_ref, w2m_ref, b2m_ref,          # msg MLP weights
        w1nx_ref, w1na_ref, b1n_ref, w2n_ref, b2n_ref,          # node MLP weights
        out_ref,                                                # [TN, OUT_PAD]
        sums_ref, counts_ref,                                   # VMEM scratch
        *, s_per_part, mxu_dtype):
    idx = pl.program_id(0) * s_per_part + pl.program_id(1)
    TN = sums_ref.shape[0]

    @pl.when(first_ref[idx] == 1)
    def _init():
        sums_ref[...] = jnp.zeros_like(sums_ref)
        counts_ref[...] = jnp.zeros_like(counts_ref)

    @pl.when(active_ref[idx] == 1)
    def _accumulate():
        # ---- fused per-edge message MLP (K=3 first layer as VPU FMAs) ----
        xs = xs_ref[...]                                        # [TE, node_in]
        ea = ea_ref[...]                                        # [TE, edge_size]
        h = b1m_ref[...]
        for k in range(xs.shape[1]):                            # node_in = 2 (static)
            h = h + xs[:, k:k + 1] * w1mx_ref[k:k + 1, :]
        for k in range(ea.shape[1]):                            # edge_size = 1 (static)
            h = h + ea[:, k:k + 1] * w1me_ref[k:k + 1, :]
        h = jnp.maximum(h, 0.0)                                 # [TE, H1]
        msg = (jnp.dot(h.astype(mxu_dtype), w2m_ref[...].astype(mxu_dtype),
                       preferred_element_type=jnp.float32)
               + b2m_ref[...])                                  # [TE, H]

        # ---- segment (one-hot) scatter into this node tile ----
        nt = nt_ref[idx]
        ids = jax.lax.broadcasted_iota(jnp.int32, (TN, xs.shape[0]), 0)
        # i-independent iota; sentinel / out-of-tile srcs never match.
        match = ids == (src_ref[...] - nt * TN)                 # [TN, TE] bool
        sums_ref[...] += jnp.dot(match.astype(mxu_dtype), msg.astype(mxu_dtype),
                                 preferred_element_type=jnp.float32)
        counts_ref[...] += jnp.sum(match.astype(jnp.float32), axis=1, keepdims=True)

    @pl.when(last_ref[idx] == 1)
    def _finalize():
        agg = sums_ref[...] / jnp.maximum(counts_ref[...], 1.0)  # exact mean
        nh = (jnp.dot(agg.astype(mxu_dtype), w1na_ref[...].astype(mxu_dtype),
                      preferred_element_type=jnp.float32)
              + b1n_ref[...])
        x_tile = x_ref[...]
        for k in range(x_tile.shape[1]):                         # node_in = 2
            nh = nh + x_tile[:, k:k + 1] * w1nx_ref[k:k + 1, :]
        nh = jnp.maximum(nh, 0.0)
        # final layer padded to 128 output lanes -> lane-dense store.
        out_ref[...] = (jnp.dot(nh.astype(mxu_dtype), w2n_ref[...].astype(mxu_dtype),
                                preferred_element_type=jnp.float32)
                        + b2n_ref[...])


# --------------------------------------------------------------------------
# Wrapper
# --------------------------------------------------------------------------
def node_model_forward(x, edge_index, edge_attr, params, u=None, batch=None,
                       *, use_bf16=True, max_te=2048, max_tn=512):
    """x: [N, 2] f32, edge_index: [2, E] int32, edge_attr: [E, 1] f32."""
    (w1m, b1m, w2m, b2m, w1n, b1n, w2n, b2n) = params
    _dst, src = edge_index[0], edge_index[1]      # dst / u / batch unused, as in the module
    N, node_in = x.shape
    E = src.shape[0]
    edge_size = edge_attr.shape[1]
    H1 = w1m.shape[1]            # msg hidden (128)
    H = w2m.shape[1]             # msg size   (128)
    H1n = w1n.shape[1]           # node hidden (128)
    node_out = w2n.shape[1]      # 2
    OUT_PAD = 128                # lane-dense output width

    # ---- tile sizes (lane/sublane aligned) ----
    TE = min(max_te, _round_up(E, 128))
    E_pad = _round_up(E, TE)
    n_et = E_pad // TE
    TN = min(max_tn, _round_up(N, 8))
    if _round_up(N, TN) // TN < 2 and N > 8:      # keep >=2 node tiles (v7x megacore)
        TN = max(8, _round_up((N + 1) // 2, 8))
    N_pad = _round_up(N, TN)
    n_nt = N_pad // TN
    P = min(2, n_nt)                              # parallel node-tile groups

    # ---- sort edges by src; pad with an out-of-range sentinel (= N_pad) ----
    src = src.astype(jnp.int32)
    order = jnp.argsort(src)
    src_sorted = src[order]
    src_sp = jnp.full((E_pad,), N_pad, jnp.int32).at[:E].set(src_sorted)   # stays sorted
    xs_p = jnp.zeros((E_pad, node_in), jnp.float32).at[:E].set(x[src_sorted])
    ea_p = jnp.zeros((E_pad, edge_size), jnp.float32).at[:E].set(edge_attr[order])
    x_p = jnp.zeros((N_pad, node_in), jnp.float32).at[:N].set(x)

    nt_s, et_s, first_s, last_s, active_s, S = _build_schedule(
        src_sp, TN=TN, n_nt=n_nt, TE=TE, n_et=n_et, P=P)

    # split first-layer weights (so the concats disappear); pad the 2-wide
    # output layer to 128 lanes for an unmasked lane-dense store.
    w1m_x, w1m_e = w1m[:node_in], w1m[node_in:]
    w1n_x, w1n_a = w1n[:node_in], w1n[node_in:]
    w2n_p = jnp.zeros((H1n, OUT_PAD), jnp.float32).at[:, :node_out].set(w2n)
    b2n_p = jnp.zeros((1, OUT_PAD), jnp.float32).at[0, :node_out].set(b2n)

    def const(shape):
        return pl.BlockSpec(shape, lambda p, s, *_: (0, 0))

    edge_map = lambda p, s, nt, et, *_: (et[p * S + s], 0)      # sorted-edge tiles
    srcv_map = lambda p, s, nt, et, *_: (0, et[p * S + s])
    node_map = lambda p, s, nt, *_: (nt[p * S + s], 0)          # node tiles

    kernel = functools.partial(
        _fused_node_kernel, s_per_part=S,
        mxu_dtype=jnp.bfloat16 if use_bf16 else jnp.float32)

    out_p = pl.pallas_call(
        kernel,
        out_shape=jax.ShapeDtypeStruct((N_pad, OUT_PAD), jnp.float32),
        grid_spec=pltpu.PrefetchScalarGridSpec(
            num_scalar_prefetch=5,
            grid=(P, S),
            in_specs=[
                pl.BlockSpec((TE, node_in), edge_map),      # x[src], sorted by src
                pl.BlockSpec((TE, edge_size), edge_map),    # edge_attr, sorted by src
                pl.BlockSpec((1, TE), srcv_map),            # sorted src ids
                pl.BlockSpec((TN, node_in), node_map),      # x node tile
                const((node_in, H1)), const((edge_size, H1)), const((1, H1)),
                const((H1, H)), const((1, H)),
                const((node_in, H1n)), const((H, H1n)), const((1, H1n)),
                const((H1n, OUT_PAD)), const((1, OUT_PAD)),
            ],
            out_specs=pl.BlockSpec((TN, OUT_PAD), node_map),
            scratch_shapes=[
                pltpu.VMEM((TN, H), jnp.float32),    # message-sum accumulator
                pltpu.VMEM((TN, 1), jnp.float32),    # edge-count accumulator
            ],
        ),
        compiler_params=pltpu.CompilerParams(
            dimension_semantics=("parallel", "arbitrary"),
            vmem_limit_bytes=32 * 1024 * 1024),
    )(nt_s, et_s, first_s, last_s, active_s,
      xs_p, ea_p, src_sp[None, :], x_p,
      w1m_x, w1m_e, b1m[None, :], w2m, b2m[None, :],
      w1n_x, w1n_a, b1n[None, :], w2n_p, b2n_p)

    return out_p[:N, :node_out]


# --------------------------------------------------------------------------
# Params + pure-JAX reference
# --------------------------------------------------------------------------
def init_params(key, node_in=2, node_out=2, msg_size=128,
                msg_h1=128, node_h1=128, edge_size=1):
    """Deterministic PyTorch-Linear-style uniform init (no checkpoint load)."""
    def linear(key, fan_in, fan_out):
        kw, kb = jax.random.split(key)
        bound = 1.0 / jnp.sqrt(fan_in)
        w = jax.random.uniform(kw, (fan_in, fan_out), jnp.float32, -bound, bound)
        b = jax.random.uniform(kb, (fan_out,), jnp.float32, -bound, bound)
        return w, b

    k = jax.random.split(key, 4)
    w1m, b1m = linear(k[0], node_in + edge_size, msg_h1)     # msg_mlp layer 1
    w2m, b2m = linear(k[1], msg_h1, msg_size)                # msg_mlp layer 2
    w1n, b1n = linear(k[2], node_in + msg_size, node_h1)     # node_mlp layer 1
    w2n, b2n = linear(k[3], node_h1, node_out)               # node_mlp layer 2
    return (w1m, b1m, w2m, b2m, w1n, b1n, w2n, b2n)


def reference_forward(x, edge_index, edge_attr, params):
    """Pure-JAX reference of the PyTorch forward."""
    (w1m, b1m, w2m, b2m, w1n, b1n, w2n, b2n) = params
    _dst, src = edge_index[0], edge_index[1]
    N = x.shape[0]
    msg_in = jnp.concatenate([x[src], edge_attr], axis=1)
    h = jnp.maximum(msg_in @ w1m + b1m, 0.0)
    msg = h @ w2m + b2m
    sums = jax.ops.segment_sum(msg, src, num_segments=N)
    counts = jax.ops.segment_sum(jnp.ones((src.shape[0],), jnp.float32), src,
                                 num_segments=N)
    agg = sums / jnp.maximum(counts, 1.0)[:, None]
    nh = jnp.maximum(jnp.concatenate([x, agg], axis=1) @ w1n + b1n, 0.0)
    return nh @ w2n + b2n


if __name__ == "__main__":
    # Make the XLA reference matmuls f32-accurate so the exact-path comparison
    # is not limited by the reference's default (low) matmul precision.
    jax.config.update("jax_default_matmul_precision", "highest")

    def make_graph(key, N, E):
        k_x, k_ea, k_src, k_dst = jax.random.split(key, 4)
        x = jax.random.normal(k_x, (N, 2), jnp.float32)
        edge_attr = jax.random.normal(k_ea, (E, 1), jnp.float32)
        src = jax.random.randint(k_src, (E,), 0, N, jnp.int32)
        dst = jax.random.randint(k_dst, (E,), 0, N, jnp.int32)
        return x, jnp.stack([dst, src], axis=0), edge_attr

    root = jax.random.PRNGKey(0)
    k_params, k_g1, k_g2 = jax.random.split(root, 3)
    params = init_params(k_params)

    # 1) tiny graph (8 nodes, 16 edges), exact f32 MXU path, tight tolerance.
    x, ei, ea = make_graph(k_g1, 8, 16)
    out = jax.block_until_ready(
        node_model_forward(x, ei, ea, params, use_bf16=False))
    ref = reference_forward(x, ei, ea, params)
    assert out.shape == (8, 2)
    assert jnp.allclose(out, ref, atol=1e-3, rtol=1e-3), \
        f"max abs diff {jnp.max(jnp.abs(out - ref))}"

    # 2) multi-tile graph with forced-small tiles: exercises the sorted-segment
    #    schedule (several node tiles per part, shared boundary edge tiles,
    #    data-dependent index maps). Exact f32 path, tight tolerance.
    x, ei, ea = make_graph(k_g2, 600, 4000)
    ref = reference_forward(x, ei, ea, params)
    out = jax.block_until_ready(
        node_model_forward(x, ei, ea, params, use_bf16=False,
                           max_te=256, max_tn=128))
    assert out.shape == (600, 2)
    assert jnp.allclose(out, ref, atol=1e-3, rtol=1e-3), \
        f"max abs diff {jnp.max(jnp.abs(out - ref))}"

    # 3) same graph, default large tiles + bf16 MXU operands (perf path);
    #    bf16 rounding of msg/weights gives ~1e-2-level drift at most.
    out_bf16 = jax.block_until_ready(
        node_model_forward(x, ei, ea, params, use_bf16=True))
    assert jnp.allclose(out_bf16, ref, atol=5e-2, rtol=5e-2), \
        f"max abs diff {jnp.max(jnp.abs(out_bf16 - ref))}"

    print("KERNEL_OK")
</pallas_src>

<mosaic_0001>
module attributes {stable_mosaic.version = 11 : i64} {
  func.func @_fused_node_kernel(%arg0: i32, %arg1: i32, %arg2: memref<2xi32, #tpu.memory_space<smem>>, %arg3: memref<2xi32, #tpu.memory_space<smem>>, %arg4: memref<2xi32, #tpu.memory_space<smem>>, %arg5: memref<2xi32, #tpu.memory_space<smem>>, %arg6: memref<2xi32, #tpu.memory_space<smem>>, %arg7: memref<128x2xf32, #tpu.memory_space<vmem>>, %arg8: memref<128x1xf32, #tpu.memory_space<vmem>>, %arg9: memref<1x128xi32, #tpu.memory_space<vmem>>, %arg10: memref<8x2xf32, #tpu.memory_space<vmem>>, %arg11: memref<2x128xf32, #tpu.memory_space<vmem>>, %arg12: memref<1x128xf32, #tpu.memory_space<vmem>>, %arg13: memref<1x128xf32, #tpu.memory_space<vmem>>, %arg14: memref<128x128xf32, #tpu.memory_space<vmem>>, %arg15: memref<1x128xf32, #tpu.memory_space<vmem>>, %arg16: memref<2x128xf32, #tpu.memory_space<vmem>>, %arg17: memref<128x128xf32, #tpu.memory_space<vmem>>, %arg18: memref<1x128xf32, #tpu.memory_space<vmem>>, %arg19: memref<128x128xf32, #tpu.memory_space<vmem>>, %arg20: memref<1x128xf32, #tpu.memory_space<vmem>>, %arg21: memref<8x128xf32, #tpu.memory_space<vmem>>, %arg22: memref<8x128xf32, #tpu.memory_space<vmem>>, %arg23: memref<8x1xf32, #tpu.memory_space<vmem>>) attributes {dimension_semantics = [#tpu.dimension_semantics<parallel>, #tpu.dimension_semantics<arbitrary>], iteration_bounds = array<i64: 1, 2>, scalar_prefetch = 5 : i64, scratch_operands = 2 : i64, tpu.core_type = #tpu.core_type<tc>, window_params = [{transform_indices = @transform_0, window_bounds = array<i64: 128, 2>}, {transform_indices = @transform_1, window_bounds = array<i64: 128, 1>}, {transform_indices = @transform_2, window_bounds = array<i64: 1, 128>}, {transform_indices = @transform_3, window_bounds = array<i64: 8, 2>}, {pipeline_mode = #tpu.pipeline_mode<synchronous>, transform_indices = @transform_4, window_bounds = array<i64: 2, 128>}, {pipeline_mode = #tpu.pipeline_mode<synchronous>, transform_indices = @transform_5, window_bounds = array<i64: 1, 128>}, {pipeline_mode = #tpu.pipeline_mode<synchronous>, transform_indices = @transform_6, window_bounds = array<i64: 1, 128>}, {pipeline_mode = #tpu.pipeline_mode<synchronous>, transform_indices = @transform_7, window_bounds = array<i64: 128, 128>}, {pipeline_mode = #tpu.pipeline_mode<synchronous>, transform_indices = @transform_8, window_bounds = array<i64: 1, 128>}, {pipeline_mode = #tpu.pipeline_mode<synchronous>, transform_indices = @transform_9, window_bounds = array<i64: 2, 128>}, {pipeline_mode = #tpu.pipeline_mode<synchronous>, transform_indices = @transform_10, window_bounds = array<i64: 128, 128>}, {pipeline_mode = #tpu.pipeline_mode<synchronous>, transform_indices = @transform_11, window_bounds = array<i64: 1, 128>}, {pipeline_mode = #tpu.pipeline_mode<synchronous>, transform_indices = @transform_12, window_bounds = array<i64: 128, 128>}, {pipeline_mode = #tpu.pipeline_mode<synchronous>, transform_indices = @transform_13, window_bounds = array<i64: 1, 128>}, {transform_indices = @transform_14, window_bounds = array<i64: 8, 128>}]} {
    %c2_i32 = arith.constant 2 : i32
    %0 = arith.muli %arg0, %c2_i32 : i32
    %1 = arith.addi %0, %arg1 : i32
    %2 = arith.index_cast %1 : i32 to index
    %3 = memref.load %arg4[%2] : memref<2xi32, #tpu.memory_space<smem>>
    %c1_i32 = arith.constant 1 : i32
    %4 = arith.cmpi eq, %3, %c1_i32 : i32
    %5 = arith.extui %4 : i1 to i32
    %c0_i32 = arith.constant 0 : i32
    %6 = arith.cmpi ne, %5, %c0_i32 : i32
    scf.if %6 {
      %cst = arith.constant 0.000000e+00 : f32
      %17 = vector.broadcast %cst : f32 to vector<8x128xf32>
      %c0 = arith.constant 0 : index
      %c0_4 = arith.constant 0 : index
      %18 = vector.load %arg22[%c0, %c0_4] : memref<8x128xf32, #tpu.memory_space<vmem>>, vector<8x128xf32>
      tpu.vector_store %arg22[%c0, %c0_4], %17 {strides = array<i32>} : memref<8x128xf32, #tpu.memory_space<vmem>>, vector<8x128xf32>,
      %cst_5 = arith.constant 0.000000e+00 : f32
      %19 = vector.broadcast %cst_5 : f32 to vector<8x1xf32>
      %c0_6 = arith.constant 0 : index
      %c0_7 = arith.constant 0 : index
      %20 = vector.load %arg23[%c0_6, %c0_7] : memref<8x1xf32, #tpu.memory_space<vmem>>, vector<8x1xf32>
      tpu.vector_store %arg23[%c0_6, %c0_7], %19 {strides = array<i32>} : memref<8x1xf32, #tpu.memory_space<vmem>>, vector<8x1xf32>,
    } else {
    }
    %7 = arith.index_cast %1 : i32 to index
    %8 = memref.load %arg6[%7] : memref<2xi32, #tpu.memory_space<smem>>
    %c1_i32_0 = arith.constant 1 : i32
    %9 = arith.cmpi eq, %8, %c1_i32_0 : i32
    %10 = arith.extui %9 : i1 to i32
    %c0_i32_1 = arith.constant 0 : i32
    %11 = arith.cmpi ne, %10, %c0_i32_1 : i32
    scf.if %11 {
      %c0 = arith.constant 0 : index
      %c0_4 = arith.constant 0 : index
      %17 = vector.load %arg7[%c0, %c0_4] : memref<128x2xf32, #tpu.memory_space<vmem>>, vector<128x2xf32>
      %c0_5 = arith.constant 0 : index
      %c0_6 = arith.constant 0 : index
      %18 = vector.load %arg8[%c0_5, %c0_6] : memref<128x1xf32, #tpu.memory_space<vmem>>, vector<128x1xf32>
      %c0_7 = arith.constant 0 : index
      %c0_8 = arith.constant 0 : index
      %19 = vector.load %arg13[%c0_7, %c0_8] : memref<1x128xf32, #tpu.memory_space<vmem>>, vector<1x128xf32>
      %20 = vector.extract_strided_slice %17 {offsets = [0, 0], sizes = [128, 1], strides = [1, 1]} : vector<128x2xf32> to vector<128x1xf32>
      %c0_9 = arith.constant 0 : index
      %c0_10 = arith.constant 0 : index
      %21 = vector.load %arg11[%c0_9, %c0_10] : memref<2x128xf32, #tpu.memory_space<vmem>>, vector<1x128xf32>
      %22 = vector.broadcast %20 : vector<128x1xf32> to vector<128x128xf32>
      %23 = vector.broadcast %21 : vector<1x128xf32> to vector<128x128xf32>
      %24 = arith.mulf %22, %23 : vector<128x128xf32>
      %25 = vector.broadcast %19 : vector<1x128xf32> to vector<128x128xf32>
      %26 = arith.addf %25, %24 : vector<128x128xf32>
      %27 = vector.extract_strided_slice %17 {offsets = [0, 1], sizes = [128, 1], strides = [1, 1]} : vector<128x2xf32> to vector<128x1xf32>
      %c1 = arith.constant 1 : index
      %c0_11 = arith.constant 0 : index
      %28 = vector.load %arg11[%c1, %c0_11] : memref<2x128xf32, #tpu.memory_space<vmem>>, vector<1x128xf32>
      %29 = vector.broadcast %27 : vector<128x1xf32> to vector<128x128xf32>
      %30 = vector.broadcast %28 : vector<1x128xf32> to vector<128x128xf32>
      %31 = arith.mulf %29, %30 : vector<128x128xf32>
      %32 = arith.addf %26, %31 : vector<128x128xf32>
      %c0_12 = arith.constant 0 : index
      %c0_13 = arith.constant 0 : index
      %33 = vector.load %arg12[%c0_12, %c0_13] : memref<1x128xf32, #tpu.memory_space<vmem>>, vector<1x128xf32>
      %34 = vector.broadcast %18 : vector<128x1xf32> to vector<128x128xf32>
      %35 = vector.broadcast %33 : vector<1x128xf32> to vector<128x128xf32>
      %36 = arith.mulf %34, %35 : vector<128x128xf32>
      %37 = arith.addf %32, %36 : vector<128x128xf32>
      %cst = arith.constant 0.000000e+00 : f32
      %38 = vector.broadcast %cst : f32 to vector<128x128xf32>
      %39 = arith.maximumf %37, %38 : vector<128x128xf32>
      %c0_14 = arith.constant 0 : index
      %c0_15 = arith.constant 0 : index
      %40 = vector.load %arg14[%c0_14, %c0_15] : memref<128x128xf32, #tpu.memory_space<vmem>>, vector<128x128xf32>
      %cst_16 = arith.constant dense<0.000000e+00> : vector<128x128xf32>
      %41 = tpu.matmul %39, %40, %cst_16 {dimension_numbers = #tpu.dot_dimension_numbers<[1], [0], [0], [1], [0, 0, 1, 1], [], []>, precision = #tpu.contract_precision<fp32>} : vector<128x128xf32>, vector<128x128xf32>, vector<128x128xf32> -> vector<128x128xf32>
      %c0_17 = arith.constant 0 : index
      %c0_18 = arith.constant 0 : index
      %42 = vector.load %arg15[%c0_17, %c0_18] : memref<1x128xf32, #tpu.memory_space<vmem>>, vector<1x128xf32>
      %43 = vector.broadcast %42 : vector<1x128xf32> to vector<128x128xf32>
      %44 = arith.addf %41, %43 : vector<128x128xf32>
      %45 = arith.index_cast %1 : i32 to index
      %46 = memref.load %arg2[%45] : memref<2xi32, #tpu.memory_space<smem>>
      %47 = tpu.iota {dimensions = array<i32: 0>} : vector<8x128xi32>
      %c0_19 = arith.constant 0 : index
      %c0_20 = arith.constant 0 : index
      %48 = vector.load %arg9[%c0_19, %c0_20] : memref<1x128xi32, #tpu.memory_space<vmem>>, vector<1x128xi32>
      %c8_i32 = arith.constant 8 : i32
      %49 = arith.muli %46, %c8_i32 : i32
      %50 = vector.broadcast %49 : i32 to vector<1x128xi32>
      %51 = arith.subi %48, %50 : vector<1x128xi32>
      %52 = vector.broadcast %51 : vector<1x128xi32> to vector<8x128xi32>
      %53 = arith.cmpi eq, %47, %52 : vector<8x128xi32>
      %c0_21 = arith.constant 0 : index
      %c0_22 = arith.constant 0 : index
      %54 = vector.load %arg22[%c0_21, %c0_22] : memref<8x128xf32, #tpu.memory_space<vmem>>, vector<8x128xf32>
      %55 = arith.extui %53 : vector<8x128xi1> to vector<8x128xi32>
      %56 = arith.sitofp %55 : vector<8x128xi32> to vector<8x128xf32>
      %cst_23 = arith.constant dense<0.000000e+00> : vector<8x128xf32>
      %57 = tpu.matmul %56, %44, %cst_23 {dimension_numbers = #tpu.dot_dimension_numbers<[1], [0], [0], [1], [0, 0, 1, 1], [], []>, precision = #tpu.contract_precision<fp32>} : vector<8x128xf32>, vector<128x128xf32>, vector<8x128xf32> -> vector<8x128xf32>
      %58 = arith.addf %54, %57 : vector<8x128xf32>
      %c0_24 = arith.constant 0 : index
      %c0_25 = arith.constant 0 : index
      %59 = vector.load %arg22[%c0_24, %c0_25] : memref<8x128xf32, #tpu.memory_space<vmem>>, vector<8x128xf32>
      tpu.vector_store %arg22[%c0_24, %c0_25], %58 {strides = array<i32>} : memref<8x128xf32, #tpu.memory_space<vmem>>, vector<8x128xf32>,
      %c0_26 = arith.constant 0 : index
      %c0_27 = arith.constant 0 : index
      %60 = vector.load %arg23[%c0_26, %c0_27] : memref<8x1xf32, #tpu.memory_space<vmem>>, vector<8x1xf32>
      %61 = arith.extui %53 : vector<8x128xi1> to vector<8x128xi32>
      %62 = arith.sitofp %61 : vector<8x128xi32> to vector<8x128xf32>
      %cst_28 = arith.constant dense<0.000000e+00> : vector<8xf32>
      %63 = vector.multi_reduction <add>, %62, %cst_28 [1] : vector<8x128xf32> to vector<8xf32>
      %64 = vector.shape_cast %63 : vector<8xf32> to vector<8x1xf32>
      %65 = arith.addf %60, %64 : vector<8x1xf32>
      %c0_29 = arith.constant 0 : index
      %c0_30 = arith.constant 0 : index
      %66 = vector.load %arg23[%c0_29, %c0_30] : memref<8x1xf32, #tpu.memory_space<vmem>>, vector<8x1xf32>
      tpu.vector_store %arg23[%c0_29, %c0_30], %65 {strides = array<i32>} : memref<8x1xf32, #tpu.memory_space<vmem>>, vector<8x1xf32>,
    } else {
    }
    %12 = arith.index_cast %1 : i32 to index
    %13 = memref.load %arg5[%12] : memref<2xi32, #tpu.memory_space<smem>>
    %c1_i32_2 = arith.constant 1 : i32
    %14 = arith.cmpi eq, %13, %c1_i32_2 : i32
    %15 = arith.extui %14 : i1 to i32
    %c0_i32_3 = arith.constant 0 : i32
    %16 = arith.cmpi ne, %15, %c0_i32_3 : i32
    scf.if %16 {
      %c0 = arith.constant 0 : index
      %c0_4 = arith.constant 0 : index
      %17 = vector.load %arg22[%c0, %c0_4] : memref<8x128xf32, #tpu.memory_space<vmem>>, vector<8x128xf32>
      %c0_5 = arith.constant 0 : index
      %c0_6 = arith.constant 0 : index
      %18 = vector.load %arg23[%c0_5, %c0_6] : memref<8x1xf32, #tpu.memory_space<vmem>>, vector<8x1xf32>
      %cst = arith.constant 1.000000e+00 : f32
      %19 = vector.broadcast %cst : f32 to vector<8x1xf32>
      %20 = arith.maximumf %18, %19 : vector<8x1xf32>
      %21 = vector.broadcast %20 : vector<8x1xf32> to vector<8x128xf32>
      %22 = arith.divf %17, %21 : vector<8x128xf32>
      %c0_7 = arith.constant 0 : index
      %c0_8 = arith.constant 0 : index
      %23 = vector.load %arg17[%c0_7, %c0_8] : memref<128x128xf32, #tpu.memory_space<vmem>>, vector<128x128xf32>
      %cst_9 = arith.constant dense<0.000000e+00> : vector<8x128xf32>
      %24 = tpu.matmul %22, %23, %cst_9 {dimension_numbers = #tpu.dot_dimension_numbers<[1], [0], [0], [1], [0, 0, 1, 1], [], []>, precision = #tpu.contract_precision<fp32>} : vector<8x128xf32>, vector<128x128xf32>, vector<8x128xf32> -> vector<8x128xf32>
      %c0_10 = arith.constant 0 : index
      %c0_11 = arith.constant 0 : index
      %25 = vector.load %arg18[%c0_10, %c0_11] : memref<1x128xf32, #tpu.memory_space<vmem>>, vector<1x128xf32>
      %26 = vector.broadcast %25 : vector<1x128xf32> to vector<8x128xf32>
      %27 = arith.addf %24, %26 : vector<8x128xf32>
      %c0_12 = arith.constant 0 : index
      %c0_13 = arith.constant 0 : index
      %28 = vector.load %arg10[%c0_12, %c0_13] : memref<8x2xf32, #tpu.memory_space<vmem>>, vector<8x2xf32>
      %29 = vector.extract_strided_slice %28 {offsets = [0, 0], sizes = [8, 1], strides = [1, 1]} : vector<8x2xf32> to vector<8x1xf32>
      %c0_14 = arith.constant 0 : index
      %c0_15 = arith.constant 0 : index
      %30 = vector.load %arg16[%c0_14, %c0_15] : memref<2x128xf32, #tpu.memory_space<vmem>>, vector<1x128xf32>
      %31 = vector.broadcast %29 : vector<8x1xf32> to vector<8x128xf32>
      %32 = vector.broadcast %30 : vector<1x128xf32> to vector<8x128xf32>
      %33 = arith.mulf %31, %32 : vector<8x128xf32>
      %34 = arith.addf %27, %33 : vector<8x128xf32>
      %35 = vector.extract_strided_slice %28 {offsets = [0, 1], sizes = [8, 1], strides = [1, 1]} : vector<8x2xf32> to vector<8x1xf32>
      %c1 = arith.constant 1 : index
      %c0_16 = arith.constant 0 : index
      %36 = vector.load %arg16[%c1, %c0_16] : memref<2x128xf32, #tpu.memory_space<vmem>>, vector<1x128xf32>
      %37 = vector.broadcast %35 : vector<8x1xf32> to vector<8x128xf32>
      %38 = vector.broadcast %36 : vector<1x128xf32> to vector<8x128xf32>
      %39 = arith.mulf %37, %38 : vector<8x128xf32>
      %40 = arith.addf %34, %39 : vector<8x128xf32>
      %cst_17 = arith.constant 0.000000e+00 : f32
      %41 = vector.broadcast %cst_17 : f32 to vector<8x128xf32>
      %42 = arith.maximumf %40, %41 : vector<8x128xf32>
      %c0_18 = arith.constant 0 : index
      %c0_19 = arith.constant 0 : index
      %43 = vector.load %arg19[%c0_18, %c0_19] : memref<128x128xf32, #tpu.memory_space<vmem>>, vector<128x128xf32>
      %cst_20 = arith.constant dense<0.000000e+00> : vector<8x128xf32>
      %44 = tpu.matmul %42, %43, %cst_20 {dimension_numbers = #tpu.dot_dimension_numbers<[1], [0], [0], [1], [0, 0, 1, 1], [], []>, precision = #tpu.contract_precision<fp32>} : vector<8x128xf32>, vector<128x128xf32>, vector<8x128xf32> -> vector<8x128xf32>
      %c0_21 = arith.constant 0 : index
      %c0_22 = arith.constant 0 : index
      %45 = vector.load %arg20[%c0_21, %c0_22] : memref<1x128xf32, #tpu.memory_space<vmem>>, vector<1x128xf32>
      %46 = vector.broadcast %45 : vector<1x128xf32> to vector<8x128xf32>
      %47 = arith.addf %44, %46 : vector<8x128xf32>
      %c0_23 = arith.constant 0 : index
      %c0_24 = arith.constant 0 : index
      %48 = vector.load %arg21[%c0_23, %c0_24] : memref<8x128xf32, #tpu.memory_space<vmem>>, vector<8x128xf32>
      tpu.vector_store %arg21[%c0_23, %c0_24], %47 {strides = array<i32>} : memref<8x128xf32, #tpu.memory_space<vmem>>, vector<8x128xf32>,
    } else {
    }
    return
  }
  func.func @transform_0(%arg0: i32, %arg1: i32, %arg2: memref<2xi32, #tpu.memory_space<smem>>, %arg3: memref<2xi32, #tpu.memory_space<smem>>, %arg4: memref<2xi32, #tpu.memory_space<smem>>, %arg5: memref<2xi32, #tpu.memory_space<smem>>, %arg6: memref<2xi32, #tpu.memory_space<smem>>) -> (i32, i32) {
    %c2_i32 = arith.constant 2 : i32
    %0 = arith.muli %arg0, %c2_i32 : i32
    %1 = arith.addi %0, %arg1 : i32
    %2 = arith.index_cast %1 : i32 to index
    %3 = memref.load %arg3[%2] : memref<2xi32, #tpu.memory_space<smem>>
    %c0_i32 = arith.constant 0 : i32
    %c0_i32_0 = arith.constant 0 : i32
    return %3, %c0_i32 : i32, i32
  }
  func.func @transform_1(%arg0: i32, %arg1: i32, %arg2: memref<2xi32, #tpu.memory_space<smem>>, %arg3: memref<2xi32, #tpu.memory_space<smem>>, %arg4: memref<2xi32, #tpu.memory_space<smem>>, %arg5: memref<2xi32, #tpu.memory_space<smem>>, %arg6: memref<2xi32, #tpu.memory_space<smem>>) -> (i32, i32) {
    %c2_i32 = arith.constant 2 : i32
    %0 = arith.muli %arg0, %c2_i32 : i32
    %1 = arith.addi %0, %arg1 : i32
    %2 = arith.index_cast %1 : i32 to index
    %3 = memref.load %arg3[%2] : memref<2xi32, #tpu.memory_space<smem>>
    %c0_i32 = arith.constant 0 : i32
    %c0_i32_0 = arith.constant 0 : i32
    return %3, %c0_i32 : i32, i32
  }
  func.func @transform_2(%arg0: i32, %arg1: i32, %arg2: memref<2xi32, #tpu.memory_space<smem>>, %arg3: memref<2xi32, #tpu.memory_space<smem>>, %arg4: memref<2xi32, #tpu.memory_space<smem>>, %arg5: memref<2xi32, #tpu.memory_space<smem>>, %arg6: memref<2xi32, #tpu.memory_space<smem>>) -> (i32, i32) {
    %c2_i32 = arith.constant 2 : i32
    %0 = arith.muli %arg0, %c2_i32 : i32
    %1 = arith.addi %0, %arg1 : i32
    %2 = arith.index_cast %1 : i32 to index
    %3 = memref.load %arg3[%2] : memref<2xi32, #tpu.memory_space<smem>>
    %c0_i32 = arith.constant 0 : i32
    %c0_i32_0 = arith.constant 0 : i32
    return %c0_i32, %3 : i32, i32
  }
  func.func @transform_3(%arg0: i32, %arg1: i32, %arg2: memref<2xi32, #tpu.memory_space<smem>>, %arg3: memref<2xi32, #tpu.memory_space<smem>>, %arg4: memref<2xi32, #tpu.memory_space<smem>>, %arg5: memref<2xi32, #tpu.memory_space<smem>>, %arg6: memref<2xi32, #tpu.memory_space<smem>>) -> (i32, i32) {
    %c2_i32 = arith.constant 2 : i32
    %0 = arith.muli %arg0, %c2_i32 : i32
    %1 = arith.addi %0, %arg1 : i32
    %2 = arith.index_cast %1 : i32 to index
    %3 = memref.load %arg2[%2] : memref<2xi32, #tpu.memory_space<smem>>
    %c0_i32 = arith.constant 0 : i32
    %c0_i32_0 = arith.constant 0 : i32
    return %3, %c0_i32 : i32, i32
  }
  func.func @transform_4(%arg0: i32, %arg1: i32, %arg2: memref<2xi32, #tpu.memory_space<smem>>, %arg3: memref<2xi32, #tpu.memory_space<smem>>, %arg4: memref<2xi32, #tpu.memory_space<smem>>, %arg5: memref<2xi32, #tpu.memory_space<smem>>, %arg6: memref<2xi32, #tpu.memory_space<smem>>) -> (i32, i32) {
    %c0_i32 = arith.constant 0 : i32
    %c0_i32_0 = arith.constant 0 : i32
    %c0_i32_1 = arith.constant 0 : i32
    return %c0_i32, %c0_i32_0 : i32, i32
  }
  func.func @transform_5(%arg0: i32, %arg1: i32, %arg2: memref<2xi32, #tpu.memory_space<smem>>, %arg3: memref<2xi32, #tpu.memory_space<smem>>, %arg4: memref<2xi32, #tpu.memory_space<smem>>, %arg5: memref<2xi32, #tpu.memory_space<smem>>, %arg6: memref<2xi32, #tpu.memory_space<smem>>) -> (i32, i32) {
    %c0_i32 = arith.constant 0 : i32
    %c0_i32_0 = arith.constant 0 : i32
    %c0_i32_1 = arith.constant 0 : i32
    return %c0_i32, %c0_i32_0 : i32, i32
  }
  func.func @transform_6(%arg0: i32, %arg1: i32, %arg2: memref<2xi32, #tpu.memory_space<smem>>, %arg3: memref<2xi32, #tpu.memory_space<smem>>, %arg4: memref<2xi32, #tpu.memory_space<smem>>, %arg5: memref<2xi32, #tpu.memory_space<smem>>, %arg6: memref<2xi32, #tpu.memory_space<smem>>) -> (i32, i32) {
    %c0_i32 = arith.constant 0 : i32
    %c0_i32_0 = arith.constant 0 : i32
    %c0_i32_1 = arith.constant 0 : i32
    return %c0_i32, %c0_i32_0 : i32, i32
  }
  func.func @transform_7(%arg0: i32, %arg1: i32, %arg2: memref<2xi32, #tpu.memory_space<smem>>, %arg3: memref<2xi32, #tpu.memory_space<smem>>, %arg4: memref<2xi32, #tpu.memory_space<smem>>, %arg5: memref<2xi32, #tpu.memory_space<smem>>, %arg6: memref<2xi32, #tpu.memory_space<smem>>) -> (i32, i32) {
    %c0_i32 = arith.constant 0 : i32
    %c0_i32_0 = arith.constant 0 : i32
    %c0_i32_1 = arith.constant 0 : i32
    return %c0_i32, %c0_i32_0 : i32, i32
  }
  func.func @transform_8(%arg0: i32, %arg1: i32, %arg2: memref<2xi32, #tpu.memory_space<smem>>, %arg3: memref<2xi32, #tpu.memory_space<smem>>, %arg4: memref<2xi32, #tpu.memory_space<smem>>, %arg5: memref<2xi32, #tpu.memory_space<smem>>, %arg6: memref<2xi32, #tpu.memory_space<smem>>) -> (i32, i32) {
    %c0_i32 = arith.constant 0 : i32
    %c0_i32_0 = arith.constant 0 : i32
    %c0_i32_1 = arith.constant 0 : i32
    return %c0_i32, %c0_i32_0 : i32, i32
  }
  func.func @transform_9(%arg0: i32, %arg1: i32, %arg2: memref<2xi32, #tpu.memory_space<smem>>, %arg3: memref<2xi32, #tpu.memory_space<smem>>, %arg4: memref<2xi32, #tpu.memory_space<smem>>, %arg5: memref<2xi32, #tpu.memory_space<smem>>, %arg6: memref<2xi32, #tpu.memory_space<smem>>) -> (i32, i32) {
    %c0_i32 = arith.constant 0 : i32
    %c0_i32_0 = arith.constant 0 : i32
    %c0_i32_1 = arith.constant 0 : i32
    return %c0_i32, %c0_i32_0 : i32, i32
  }
  func.func @transform_10(%arg0: i32, %arg1: i32, %arg2: memref<2xi32, #tpu.memory_space<smem>>, %arg3: memref<2xi32, #tpu.memory_space<smem>>, %arg4: memref<2xi32, #tpu.memory_space<smem>>, %arg5: memref<2xi32, #tpu.memory_space<smem>>, %arg6: memref<2xi32, #tpu.memory_space<smem>>) -> (i32, i32) {
    %c0_i32 = arith.constant 0 : i32
    %c0_i32_0 = arith.constant 0 : i32
    %c0_i32_1 = arith.constant 0 : i32
    return %c0_i32, %c0_i32_0 : i32, i32
  }
  func.func @transform_11(%arg0: i32, %arg1: i32, %arg2: memref<2xi32, #tpu.memory_space<smem>>, %arg3: memref<2xi32, #tpu.memory_space<smem>>, %arg4: memref<2xi32, #tpu.memory_space<smem>>, %arg5: memref<2xi32, #tpu.memory_space<smem>>, %arg6: memref<2xi32, #tpu.memory_space<smem>>) -> (i32, i32) {
    %c0_i32 = arith.constant 0 : i32
    %c0_i32_0 = arith.constant 0 : i32
    %c0_i32_1 = arith.constant 0 : i32
    return %c0_i32, %c0_i32_0 : i32, i32
  }
  func.func @transform_12(%arg0: i32, %arg1: i32, %arg2: memref<2xi32, #tpu.memory_space<smem>>, %arg3: memref<2xi32, #tpu.memory_space<smem>>, %arg4: memref<2xi32, #tpu.memory_space<smem>>, %arg5: memref<2xi32, #tpu.memory_space<smem>>, %arg6: memref<2xi32, #tpu.memory_space<smem>>) -> (i32, i32) {
    %c0_i32 = arith.constant 0 : i32
    %c0_i32_0 = arith.constant 0 : i32
    %c0_i32_1 = arith.constant 0 : i32
    return %c0_i32, %c0_i32_0 : i32, i32
  }
  func.func @transform_13(%arg0: i32, %arg1: i32, %arg2: memref<2xi32, #tpu.memory_space<smem>>, %arg3: memref<2xi32, #tpu.memory_space<smem>>, %arg4: memref<2xi32, #tpu.memory_space<smem>>, %arg5: memref<2xi32, #tpu.memory_space<smem>>, %arg6: memref<2xi32, #tpu.memory_space<smem>>) -> (i32, i32) {
    %c0_i32 = arith.constant 0 : i32
    %c0_i32_0 = arith.constant 0 : i32
    %c0_i32_1 = arith.constant 0 : i32
    return %c0_i32, %c0_i32_0 : i32, i32
  }
  func.func @transform_14(%arg0: i32, %arg1: i32, %arg2: memref<2xi32, #tpu.memory_space<smem>>, %arg3: memref<2xi32, #tpu.memory_space<smem>>, %arg4: memref<2xi32, #tpu.memory_space<smem>>, %arg5: memref<2xi32, #tpu.memory_space<smem>>, %arg6: memref<2xi32, #tpu.memory_space<smem>>) -> (i32, i32) {
    %c2_i32 = arith.constant 2 : i32
    %0 = arith.muli %arg0, %c2_i32 : i32
    %1 = arith.addi %0, %arg1 : i32
    %2 = arith.index_cast %1 : i32 to index
    %3 = memref.load %arg2[%2] : memref<2xi32, #tpu.memory_space<smem>>
    %c0_i32 = arith.constant 0 : i32
    %c0_i32_0 = arith.constant 0 : i32
    return %3, %c0_i32 : i32, i32
  }
}

</mosaic_0001>

<llo_original>
// kernel: tpu_custom_call.1
$region0: #{tpu_custom_call.1}
  #allocation0 [shape = 'u32[]', space=smem, size = 0x4, offset = 0x4, fixed_abs, tag = 'smem constant byte address 0x4 - core index']
  #allocation1 [shape = 'u32[144,128]{1,0:T(1,128)}', space=vmem, size = 0x12000, scoped, tag = 'internal scratch']
  #allocation2 [shape = 'f32[8,128]{1,0:T(8,128)}', space=vmem, size = 0x1000, scoped, tag = 'scratch operand']
  #allocation3 [shape = 'f32[8,1]{1,0:T(8,128)}', space=vmem, size = 0x1000, scoped, tag = 'scratch operand']
  #allocation4 [shape = 's32[1]{0}', space=sflag, size = 0x4, scoped, tag = 'scoped memory for tpu_custom_call.1']
  #allocation5 [shape = 'u8[512]{0}', space=smem, size = 0x200, scoped, tag = 'prefetched SMEM operand 0']
  #allocation6 [shape = 'u8[512]{0}', space=smem, size = 0x200, scoped, tag = 'prefetched SMEM operand 1']
  #allocation7 [shape = 'u8[512]{0}', space=smem, size = 0x200, scoped, tag = 'prefetched SMEM operand 2']
  #allocation8 [shape = 'u8[512]{0}', space=smem, size = 0x200, scoped, tag = 'prefetched SMEM operand 3']
  #allocation9 [shape = 'u8[512]{0}', space=smem, size = 0x200, scoped, tag = 'prefetched SMEM operand 4']
  %s0 = inlined_call_operand.vmem [shape: s32[2], index: 0, kind: input, shape index: {}]
  %s1 = inlined_call_operand.vmem [shape: s32[2], index: 1, kind: input, shape index: {}]
  %s2 = inlined_call_operand.vmem [shape: s32[2], index: 2, kind: input, shape index: {}]
  %s3 = inlined_call_operand.vmem [shape: s32[2], index: 3, kind: input, shape index: {}]
  %s4 = inlined_call_operand.vmem [shape: s32[2], index: 4, kind: input, shape index: {}]
  %s5 = inlined_call_operand.vmem [shape: f32[128,2], index: 5, kind: input, shape index: {}]
  %s6 = inlined_call_operand.vmem [shape: f32[128,1], index: 6, kind: input, shape index: {}]
  %s7 = inlined_call_operand.vmem [shape: s32[1,128], index: 7, kind: input, shape index: {}]
  %s8 = inlined_call_operand.vmem [shape: f32[8,2], index: 8, kind: input, shape index: {}]
  %s9 = inlined_call_operand.vmem [shape: f32[2,128], index: 9, kind: input, shape index: {}]
  %s10 = inlined_call_operand.vmem [shape: f32[1,128], index: 10, kind: input, shape index: {}]
  %s11 = inlined_call_operand.vmem [shape: f32[1,128], index: 11, kind: input, shape index: {}]
  %s12 = inlined_call_operand.vmem [shape: f32[128,128], index: 12, kind: input, shape index: {}]
  %s13 = inlined_call_operand.vmem [shape: f32[1,128], index: 13, kind: input, shape index: {}]
  %s14 = inlined_call_operand.vmem [shape: f32[2,128], index: 14, kind: input, shape index: {}]
  %s15 = inlined_call_operand.vmem [shape: f32[128,128], index: 15, kind: input, shape index: {}]
  %s16 = inlined_call_operand.vmem [shape: f32[1,128], index: 16, kind: input, shape index: {}]
  %s17 = inlined_call_operand.hbm [shape: f32[128,128], index: 17, kind: input, shape index: {}]
  %s18 = inlined_call_operand.vmem [shape: f32[1,128], index: 18, kind: input, shape index: {}]
  %s19 = inlined_call_operand.hbm [shape: f32[8,128], index: 19, kind: output, shape index: {}]
  %s20 = sld [smem:[#allocation0]]
  $region105: #{tpu_custom_call.1} parent=0
    _
  %s22 = ssub.s32 1, %s20
  %s23 = scalar_select 0, %s22, %s20
  %s24 = sshll.u32 %s0, 4
  %s25 = int_to_ptr.vmem [resolvable:$true] %s24
  %27 = dma.vmem_to_smem %s25, 16, [#allocation5], [#allocation4]
  %s28 = sshll.u32 %s1, 4
  %s29 = int_to_ptr.vmem [resolvable:$true] %s28
  %31 = dma.vmem_to_smem %s29, 16, [#allocation6], [#allocation4]
  %s32 = sshll.u32 %s2, 4
  %s33 = int_to_ptr.vmem [resolvable:$true] %s32
  %35 = dma.vmem_to_smem %s33, 16, [#allocation7], [#allocation4]
  %s36 = sshll.u32 %s3, 4
  %s37 = int_to_ptr.vmem [resolvable:$true] %s36
  %39 = dma.vmem_to_smem %s37, 16, [#allocation8], [#allocation4]
  %s40 = sshll.u32 %s4, 4
  %s41 = int_to_ptr.vmem [resolvable:$true] %s40
  %43 = dma.vmem_to_smem %s41, 16, [#allocation9], [#allocation4]
  %44 = dma.done [#allocation4], 80
  %45 = sfence
  $region1: #{tpu_custom_call.1} parent=0
    #allocation10 [shape = 'u8[65536]{0}', space=vmem, size = 0x10000, scoped, tag = 'input window, operand 17, single buffered']
    #allocation11 [shape = 's32[2]{0}', space=sflag, size = 0x8, scoped, tag = 'scoped memory for tpu_custom_call.1']
    #allocation12 [shape = 's32[2]{0}', space=sflag, size = 0x8, scoped, tag = 'scoped memory for tpu_custom_call.1']
    #allocation13 [shape = 'u8[8192]{0}', space=vmem, size = 0x2000, scoped, tag = 'output window, operand 0']
    %46 = vsyncpa [#allocation11], 0
    %47 = vsyncpa [#allocation12], 0
    %s48 = scalar_lea.sflag [#allocation12], 1
    %49 = vsyncpa %s48, 0
    loop: start=0, step=1, limit=4
    $region2: #{tpu_custom_call.1} parent=1 // loop_pre_header
      _
    $region3: #{tpu_custom_call.1} parent=1 // loop_header
      %s51 = sphi 0, %s55
      %p52 = scmp.ge.s32.totalorder %s51, 4
      %s58 = sphi 0, %s70
      %s59 = sphi 0, %s66
      %s60 = sphi 0, %s58
      %s61 = sphi 0, %s59
      %s62 = sphi 0, %s60
      %s63 = sphi 0, %s61
      %s79 = sphi 0, %s81
      %s82 = sphi 0, %s79
      %s83 = sphi 0, %s82
      %s99 = sphi 0, %s83
      %s111 = sphi 0, %s113
      %s114 = sphi 0, %s111
      %s115 = sphi 0, %s114
      %s131 = sphi 0, %s115
      %s143 = sphi 0, %s145
      %s146 = sphi 0, %s143
      %s147 = sphi 0, %s146
      %s163 = sphi 0, %s147
      %s175 = sphi 0, %s177
      %s178 = sphi 0, %s175
      %s179 = sphi 0, %s178
      %s195 = sphi 0, %s179
      %s199 = sphi 0, %s199
      %s201 = sphi 0, %s199
      %s202 = sphi 0, %s201
      %s216 = sphi 0, %s202
      %s220 = sphi 0, %s220
      %s222 = sphi 0, %s220
      %s223 = sphi 0, %s222
      %s237 = sphi 0, %s223
      %s241 = sphi 0, %s241
      %s243 = sphi 0, %s241
      %s244 = sphi 0, %s243
      %s258 = sphi 0, %s244
      %s262 = sphi 0, %s262
      %s264 = sphi 0, %s262
      %s265 = sphi 0, %s264
      %s279 = sphi 0, %s265
      %s283 = sphi 0, %s283
      %s285 = sphi 0, %s283
      %s286 = sphi 0, %s285
      %s300 = sphi 0, %s286
      %s304 = sphi 0, %s304
      %s306 = sphi 0, %s304
      %s307 = sphi 0, %s306
      %s321 = sphi 0, %s307
      %s325 = sphi 0, %s325
      %s327 = sphi 0, %s325
      %s328 = sphi 0, %s327
      %s342 = sphi 0, %s328
      %s346 = sphi 0, %s346
      %s348 = sphi 0, %s346
      %s349 = sphi 0, %s348
      %s363 = sphi 0, %s349
      %s367 = sphi 0, %s367
      %s369 = sphi 0, %s367
      %s370 = sphi 0, %s369
      %s384 = sphi 0, %s370
      %s388 = sphi 0, %s388
      %s390 = sphi 0, %s388
      %s391 = sphi 0, %s390
      %s405 = sphi 0, %s391
      %s417 = sphi 0, %s419
      %s420 = sphi 0, %s417
      %s421 = sphi 0, %s420
      %s437 = sphi 0, %s421
    $region4: #{tpu_custom_call.1} parent=1 // loop_header_branch
      %54 = sbr.rel (%p52) target = $region8
    $region5: #{tpu_custom_call.1} parent=1 // loop_body
      %s56 = ssub.s32 %s51, 1
      %s57 = ssub.s32 %s51, 2
      %s64 = sadd.s32 1, %s59
      %p65 = scmp.ge.s32.totalorder %s64, 2
      %s66 = scalar_select %p65, 0, %s64
      %s67 = sadd.s32 1, %s58
      %s68 = scalar_select %p65, %s67, %s58
      %p69 = scmp.ge.s32.totalorder %s68, 1
      %s70 = scalar_select %p69, 0, %s68
      %s71 = smul.u32 %s58, 2
      %s72 = sadd.s32 %s71, %s59
      %s73 = sld [smem:[#allocation6 + %s72]]
      %s74 = smul.u32 %s70, 2
      %s75 = sadd.s32 %s74, %s66
      %s76 = sld [smem:[#allocation6 + %s75]]
      %s77 = ssub.s32 %s73, %s76
      %p78 = scmp.eq.s32.totalorder %s77, 0
      %s80 = sadd.s32 %s79, 1
      %s81 = scalar_select %p78, %s79, %s80
      %p84 = pneg %p78
      %p85 = scmp.eq.s32.totalorder %s51, 1
      %p86 = por %p84, %p85
      %p87 = scmp.ne.s32.totalorder %s79, %s82
      %p88 = scmp.eq.s32.totalorder %s51, 0
      %p89 = por %p87, %p88
      %p90 = scmp.ne.s32.totalorder %s79, %s82
      %p91 = scmp.eq.s32.totalorder %s56, 1
      %p92 = por %p90, %p91
      %p93 = scmp.ne.s32.totalorder %s82, %s83
      %p94 = scmp.eq.s32.totalorder %s56, 0
      %p95 = por %p93, %p94
      %p96 = scmp.ne.s32.totalorder %s82, %s83
      %p97 = scmp.eq.s32.totalorder %s57, 1
      %p98 = por %p96, %p97
      %p100 = scmp.ne.s32.totalorder %s83, %s99
      %p101 = scmp.eq.s32.totalorder %s57, 0
      %p102 = por %p100, %p101
      %s103 = smul.u32 %s58, 2
      %s104 = sadd.s32 %s103, %s59
      %s105 = sld [smem:[#allocation6 + %s104]]
      %s106 = smul.u32 %s70, 2
      %s107 = sadd.s32 %s106, %s66
      %s108 = sld [smem:[#allocation6 + %s107]]
      %s109 = ssub.s32 %s105, %s108
      %p110 = scmp.eq.s32.totalorder %s109, 0
      %s112 = sadd.s32 %s111, 1
      %s113 = scalar_select %p110, %s111, %s112
      %p116 = pneg %p110
      %p117 = scmp.eq.s32.totalorder %s51, 1
      %p118 = por %p116, %p117
      %p119 = scmp.ne.s32.totalorder %s111, %s114
      %p120 = scmp.eq.s32.totalorder %s51, 0
      %p121 = por %p119, %p120
      %p122 = scmp.ne.s32.totalorder %s111, %s114
      %p123 = scmp.eq.s32.totalorder %s56, 1
      %p124 = por %p122, %p123
      %p125 = scmp.ne.s32.totalorder %s114, %s115
      %p126 = scmp.eq.s32.totalorder %s56, 0
      %p127 = por %p125, %p126
      %p128 = scmp.ne.s32.totalorder %s114, %s115
      %p129 = scmp.eq.s32.totalorder %s57, 1
      %p130 = por %p128, %p129
      %p132 = scmp.ne.s32.totalorder %s115, %s131
      %p133 = scmp.eq.s32.totalorder %s57, 0
      %p134 = por %p132, %p133
      %s135 = smul.u32 %s58, 2
      %s136 = sadd.s32 %s135, %s59
      %s137 = sld [smem:[#allocation6 + %s136]]
      %s138 = smul.u32 %s70, 2
      %s139 = sadd.s32 %s138, %s66
      %s140 = sld [smem:[#allocation6 + %s139]]
      %s141 = ssub.s32 %s137, %s140
      %p142 = scmp.eq.s32.totalorder %s141, 0
      %s144 = sadd.s32 %s143, 1
      %s145 = scalar_select %p142, %s143, %s144
      %p148 = pneg %p142
      %p149 = scmp.eq.s32.totalorder %s51, 1
      %p150 = por %p148, %p149
      %p151 = scmp.ne.s32.totalorder %s143, %s146
      %p152 = scmp.eq.s32.totalorder %s51, 0
      %p153 = por %p151, %p152
      %p154 = scmp.ne.s32.totalorder %s143, %s146
      %p155 = scmp.eq.s32.totalorder %s56, 1
      %p156 = por %p154, %p155
      %p157 = scmp.ne.s32.totalorder %s146, %s147
      %p158 = scmp.eq.s32.totalorder %s56, 0
      %p159 = por %p157, %p158
      %p160 = scmp.ne.s32.totalorder %s146, %s147
      %p161 = scmp.eq.s32.totalorder %s57, 1
      %p162 = por %p160, %p161
      %p164 = scmp.ne.s32.totalorder %s147, %s163
      %p165 = scmp.eq.s32.totalorder %s57, 0
      %p166 = por %p164, %p165
      %s167 = smul.u32 %s58, 2
      %s168 = sadd.s32 %s167, %s59
      %s169 = sld [smem:[#allocation5 + %s168]]
      %s170 = smul.u32 %s70, 2
      %s171 = sadd.s32 %s170, %s66
      %s172 = sld [smem:[#allocation5 + %s171]]
      %s173 = ssub.s32 %s169, %s172
      %p174 = scmp.eq.s32.totalorder %s173, 0
      %s176 = sadd.s32 %s175, 1
      %s177 = scalar_select %p174, %s175, %s176
      %p180 = pneg %p174
      %p181 = scmp.eq.s32.totalorder %s51, 1
      %p182 = por %p180, %p181
      %p183 = scmp.ne.s32.totalorder %s175, %s178
      %p184 = scmp.eq.s32.totalorder %s51, 0
      %p185 = por %p183, %p184
      %p186 = scmp.ne.s32.totalorder %s175, %s178
      %p187 = scmp.eq.s32.totalorder %s56, 1
      %p188 = por %p186, %p187
      %p189 = scmp.ne.s32.totalorder %s178, %s179
      %p190 = scmp.eq.s32.totalorder %s56, 0
      %p191 = por %p189, %p190
      %p192 = scmp.ne.s32.totalorder %s178, %s179
      %p193 = scmp.eq.s32.totalorder %s57, 1
      %p194 = por %p192, %p193
      %p196 = scmp.ne.s32.totalorder %s179, %s195
      %p197 = scmp.eq.s32.totalorder %s57, 0
      %p198 = por %p196, %p197
      %s200 = sadd.s32 %s199, 1
      %p203 = scmp.eq.s32.totalorder %s51, 1
      %p204 = scmp.ne.s32.totalorder %s199, %s201
      %p205 = scmp.eq.s32.totalorder %s51, 0
      %p206 = por %p204, %p205
      %p207 = scmp.ne.s32.totalorder %s199, %s201
      %p208 = scmp.eq.s32.totalorder %s56, 1
      %p209 = por %p207, %p208
      %p210 = scmp.ne.s32.totalorder %s201, %s202
      %p211 = scmp.eq.s32.totalorder %s56, 0
      %p212 = por %p210, %p211
      %p213 = scmp.ne.s32.totalorder %s201, %s202
      %p214 = scmp.eq.s32.totalorder %s57, 1
      %p215 = por %p213, %p214
      %p217 = scmp.ne.s32.totalorder %s202, %s216
      %p218 = scmp.eq.s32.totalorder %s57, 0
      %p219 = por %p217, %p218
      %s221 = sadd.s32 %s220, 1
      %p224 = scmp.eq.s32.totalorder %s51, 1
      %p225 = scmp.ne.s32.totalorder %s220, %s222
      %p226 = scmp.eq.s32.totalorder %s51, 0
      %p227 = por %p225, %p226
      %p228 = scmp.ne.s32.totalorder %s220, %s222
      %p229 = scmp.eq.s32.totalorder %s56, 1
      %p230 = por %p228, %p229
      %p231 = scmp.ne.s32.totalorder %s222, %s223
      %p232 = scmp.eq.s32.totalorder %s56, 0
      %p233 = por %p231, %p232
      %p234 = scmp.ne.s32.totalorder %s222, %s223
      %p235 = scmp.eq.s32.totalorder %s57, 1
      %p236 = por %p234, %p235
      %p238 = scmp.ne.s32.totalorder %s223, %s237
      %p239 = scmp.eq.s32.totalorder %s57, 0
      %p240 = por %p238, %p239
      %s242 = sadd.s32 %s241, 1
      %p245 = scmp.eq.s32.totalorder %s51, 1
      %p246 = scmp.ne.s32.totalorder %s241, %s243
      %p247 = scmp.eq.s32.totalorder %s51, 0
      %p248 = por %p246, %p247
      %p249 = scmp.ne.s32.totalorder %s241, %s243
      %p250 = scmp.eq.s32.totalorder %s56, 1
      %p251 = por %p249, %p250
      %p252 = scmp.ne.s32.totalorder %s243, %s244
      %p253 = scmp.eq.s32.totalorder %s56, 0
      %p254 = por %p252, %p253
      %p255 = scmp.ne.s32.totalorder %s243, %s244
      %p256 = scmp.eq.s32.totalorder %s57, 1
      %p257 = por %p255, %p256
      %p259 = scmp.ne.s32.totalorder %s244, %s258
      %p260 = scmp.eq.s32.totalorder %s57, 0
      %p261 = por %p259, %p260
      %s263 = sadd.s32 %s262, 1
      %p266 = scmp.eq.s32.totalorder %s51, 1
      %p267 = scmp.ne.s32.totalorder %s262, %s264
      %p268 = scmp.eq.s32.totalorder %s51, 0
      %p269 = por %p267, %p268
      %p270 = scmp.ne.s32.totalorder %s262, %s264
      %p271 = scmp.eq.s32.totalorder %s56, 1
      %p272 = por %p270, %p271
      %p273 = scmp.ne.s32.totalorder %s264, %s265
      %p274 = scmp.eq.s32.totalorder %s56, 0
      %p275 = por %p273, %p274
      %p276 = scmp.ne.s32.totalorder %s264, %s265
      %p277 = scmp.eq.s32.totalorder %s57, 1
      %p278 = por %p276, %p277
      %p280 = scmp.ne.s32.totalorder %s265, %s279
      %p281 = scmp.eq.s32.totalorder %s57, 0
      %p282 = por %p280, %p281
      %s284 = sadd.s32 %s283, 1
      %p287 = scmp.eq.s32.totalorder %s51, 1
      %p288 = scmp.ne.s32.totalorder %s283, %s285
      %p289 = scmp.eq.s32.totalorder %s51, 0
      %p290 = por %p288, %p289
      %p291 = scmp.ne.s32.totalorder %s283, %s285
      %p292 = scmp.eq.s32.totalorder %s56, 1
      %p293 = por %p291, %p292
      %p294 = scmp.ne.s32.totalorder %s285, %s286
      %p295 = scmp.eq.s32.totalorder %s56, 0
      %p296 = por %p294, %p295
      %p297 = scmp.ne.s32.totalorder %s285, %s286
      %p298 = scmp.eq.s32.totalorder %s57, 1
      %p299 = por %p297, %p298
      %p301 = scmp.ne.s32.totalorder %s286, %s300
      %p302 = scmp.eq.s32.totalorder %s57, 0
      %p303 = por %p301, %p302
      %s305 = sadd.s32 %s304, 1
      %p308 = scmp.eq.s32.totalorder %s51, 1
      %p309 = scmp.ne.s32.totalorder %s304, %s306
      %p310 = scmp.eq.s32.totalorder %s51, 0
      %p311 = por %p309, %p310
      %p312 = scmp.ne.s32.totalorder %s304, %s306
      %p313 = scmp.eq.s32.totalorder %s56, 1
      %p314 = por %p312, %p313
      %p315 = scmp.ne.s32.totalorder %s306, %s307
      %p316 = scmp.eq.s32.totalorder %s56, 0
      %p317 = por %p315, %p316
      %p318 = scmp.ne.s32.totalorder %s306, %s307
      %p319 = scmp.eq.s32.totalorder %s57, 1
      %p320 = por %p318, %p319
      %p322 = scmp.ne.s32.totalorder %s307, %s321
      %p323 = scmp.eq.s32.totalorder %s57, 0
      %p324 = por %p322, %p323
      %s326 = sadd.s32 %s325, 1
      %p329 = scmp.eq.s32.totalorder %s51, 1
      %p330 = scmp.ne.s32.totalorder %s325, %s327
      %p331 = scmp.eq.s32.totalorder %s51, 0
      %p332 = por %p330, %p331
      %p333 = scmp.ne.s32.totalorder %s325, %s327
      %p334 = scmp.eq.s32.totalorder %s56, 1
      %p335 = por %p333, %p334
      %p336 = scmp.ne.s32.totalorder %s327, %s328
      %p337 = scmp.eq.s32.totalorder %s56, 0
      %p338 = por %p336, %p337
      %p339 = scmp.ne.s32.totalorder %s327, %s328
      %p340 = scmp.eq.s32.totalorder %s57, 1
      %p341 = por %p339, %p340
      %p343 = scmp.ne.s32.totalorder %s328, %s342
      %p344 = scmp.eq.s32.totalorder %s57, 0
      %p345 = por %p343, %p344
      %s347 = sadd.s32 %s346, 1
      %p350 = scmp.eq.s32.totalorder %s51, 1
      %p351 = scmp.ne.s32.totalorder %s346, %s348
      %p352 = scmp.eq.s32.totalorder %s51, 0
      %p353 = por %p351, %p352
      %p354 = scmp.ne.s32.totalorder %s346, %s348
      %p355 = scmp.eq.s32.totalorder %s56, 1
      %p356 = por %p354, %p355
      %p357 = scmp.ne.s32.totalorder %s348, %s349
      %p358 = scmp.eq.s32.totalorder %s56, 0
      %p359 = por %p357, %p358
      %p360 = scmp.ne.s32.totalorder %s348, %s349
      %p361 = scmp.eq.s32.totalorder %s57, 1
      %p362 = por %p360, %p361
      %p364 = scmp.ne.s32.totalorder %s349, %s363
      %p365 = scmp.eq.s32.totalorder %s57, 0
      %p366 = por %p364, %p365
      %s368 = sadd.s32 %s367, 1
      %p371 = scmp.eq.s32.totalorder %s51, 1
      %p372 = scmp.ne.s32.totalorder %s367, %s369
      %p373 = scmp.eq.s32.totalorder %s51, 0
      %p374 = por %p372, %p373
      %p375 = scmp.ne.s32.totalorder %s367, %s369
      %p376 = scmp.eq.s32.totalorder %s56, 1
      %p377 = por %p375, %p376
      %p378 = scmp.ne.s32.totalorder %s369, %s370
      %p379 = scmp.eq.s32.totalorder %s56, 0
      %p380 = por %p378, %p379
      %p381 = scmp.ne.s32.totalorder %s369, %s370
      %p382 = scmp.eq.s32.totalorder %s57, 1
      %p383 = por %p381, %p382
      %p385 = scmp.ne.s32.totalorder %s370, %s384
      %p386 = scmp.eq.s32.totalorder %s57, 0
      %p387 = por %p385, %p386
      %s389 = sadd.s32 %s388, 1
      %p392 = scmp.eq.s32.totalorder %s51, 1
      %p393 = scmp.ne.s32.totalorder %s388, %s390
      %p394 = scmp.eq.s32.totalorder %s51, 0
      %p395 = por %p393, %p394
      %p396 = scmp.ne.s32.totalorder %s388, %s390
      %p397 = scmp.eq.s32.totalorder %s56, 1
      %p398 = por %p396, %p397
      %p399 = scmp.ne.s32.totalorder %s390, %s391
      %p400 = scmp.eq.s32.totalorder %s56, 0
      %p401 = por %p399, %p400
      %p402 = scmp.ne.s32.totalorder %s390, %s391
      %p403 = scmp.eq.s32.totalorder %s57, 1
      %p404 = por %p402, %p403
      %p406 = scmp.ne.s32.totalorder %s391, %s405
      %p407 = scmp.eq.s32.totalorder %s57, 0
      %p408 = por %p406, %p407
      %s409 = smul.u32 %s58, 2
      %s410 = sadd.s32 %s409, %s59
      %s411 = sld [smem:[#allocation5 + %s410]]
      %s412 = smul.u32 %s70, 2
      %s413 = sadd.s32 %s412, %s66
      %s414 = sld [smem:[#allocation5 + %s413]]
      %s415 = ssub.s32 %s411, %s414
      %p416 = scmp.eq.s32.totalorder %s415, 0
      %s418 = sadd.s32 %s417, 1
      %s419 = scalar_select %p416, %s417, %s418
      %p422 = pneg %p416
      %p423 = scmp.eq.s32.totalorder %s51, 1
      %p424 = por %p422, %p423
      %p425 = scmp.ne.s32.totalorder %s417, %s420
      %p426 = scmp.eq.s32.totalorder %s51, 0
      %p427 = por %p425, %p426
      %p428 = scmp.ne.s32.totalorder %s417, %s420
      %p429 = scmp.eq.s32.totalorder %s56, 1
      %p430 = por %p428, %p429
      %p431 = scmp.ne.s32.totalorder %s420, %s421
      %p432 = scmp.eq.s32.totalorder %s56, 0
      %p433 = por %p431, %p432
      %p434 = scmp.ne.s32.totalorder %s420, %s421
      %p435 = scmp.eq.s32.totalorder %s57, 1
      %p436 = por %p434, %p435
      %p438 = scmp.ne.s32.totalorder %s421, %s437
      %p439 = scmp.eq.s32.totalorder %s57, 0
      %p440 = por %p438, %p439
      %p441 = scmp.le.s32.totalorder 1, %s51
      %p442 = scmp.lt.s32.totalorder %s51, 3
      %p443 = pnand %p441, %p442
      %p444 = pneg %p443
      // Predicated region
      $region9: #{tpu_custom_call.1} parent=5 // pred_check
        _
      $region10: #{tpu_custom_call.1} parent=5 // pred_check_branch
        %446 = sbr.rel (%p443) target = $region12
      $region11: #{tpu_custom_call.1} parent=5 // pred_region
        %s447 = ssub.s32 %s51, 1
        // Predicated region
        $region13: #{tpu_custom_call.1} parent=11 // pred_check
          %p448 = pneg %p212
        $region14: #{tpu_custom_call.1} parent=11 // pred_check_branch
          %450 = sbr.rel (%p448) target = $region16
        $region15: #{tpu_custom_call.1} parent=11 // pred_region
          _
        $region16: #{tpu_custom_call.1} parent=11 // pred_fallthru
          _
        // Predicated region
        $region17: #{tpu_custom_call.1} parent=11 // pred_check
          %p451 = pneg %p233
        $region18: #{tpu_custom_call.1} parent=11 // pred_check_branch
          %453 = sbr.rel (%p451) target = $region20
        $region19: #{tpu_custom_call.1} parent=11 // pred_region
          _
        $region20: #{tpu_custom_call.1} parent=11 // pred_fallthru
          _
        // Predicated region
        $region21: #{tpu_custom_call.1} parent=11 // pred_check
          %p454 = pneg %p254
        $region22: #{tpu_custom_call.1} parent=11 // pred_check_branch
          %456 = sbr.rel (%p454) target = $region24
        $region23: #{tpu_custom_call.1} parent=11 // pred_region
          _
        $region24: #{tpu_custom_call.1} parent=11 // pred_fallthru
          _
        // Predicated region
        $region25: #{tpu_custom_call.1} parent=11 // pred_check
          %p457 = pneg %p275
        $region26: #{tpu_custom_call.1} parent=11 // pred_check_branch
          %459 = sbr.rel (%p457) target = $region28
        $region27: #{tpu_custom_call.1} parent=11 // pred_region
          _
        $region28: #{tpu_custom_call.1} parent=11 // pred_fallthru
          _
        // Predicated region
        $region29: #{tpu_custom_call.1} parent=11 // pred_check
          %p460 = pneg %p296
        $region30: #{tpu_custom_call.1} parent=11 // pred_check_branch
          %462 = sbr.rel (%p460) target = $region32
        $region31: #{tpu_custom_call.1} parent=11 // pred_region
          _
        $region32: #{tpu_custom_call.1} parent=11 // pred_fallthru
          _
        // Predicated region
        $region33: #{tpu_custom_call.1} parent=11 // pred_check
          %p463 = pneg %p317
        $region34: #{tpu_custom_call.1} parent=11 // pred_check_branch
          %465 = sbr.rel (%p463) target = $region36
        $region35: #{tpu_custom_call.1} parent=11 // pred_region
          _
        $region36: #{tpu_custom_call.1} parent=11 // pred_fallthru
          _
        // Predicated region
        $region37: #{tpu_custom_call.1} parent=11 // pred_check
          %p466 = pneg %p338
        $region38: #{tpu_custom_call.1} parent=11 // pred_check_branch
          %468 = sbr.rel (%p466) target = $region40
        $region39: #{tpu_custom_call.1} parent=11 // pred_region
          _
        $region40: #{tpu_custom_call.1} parent=11 // pred_fallthru
          _
        // Predicated region
        $region41: #{tpu_custom_call.1} parent=11 // pred_check
          %p469 = pneg %p359
        $region42: #{tpu_custom_call.1} parent=11 // pred_check_branch
          %471 = sbr.rel (%p469) target = $region44
        $region43: #{tpu_custom_call.1} parent=11 // pred_region
          _
        $region44: #{tpu_custom_call.1} parent=11 // pred_fallthru
          _
        // Predicated region
        $region45: #{tpu_custom_call.1} parent=11 // pred_check
          %p472 = pneg %p380
        $region46: #{tpu_custom_call.1} parent=11 // pred_check_branch
          %474 = sbr.rel (%p472) target = $region48
        $region47: #{tpu_custom_call.1} parent=11 // pred_region
          %s476 = ssub.s32 2048, 2048
          %477 = vsyncadd [#allocation11], %s476
          %s478 = sshll.u32 [#allocation10], 4
          %s479 = int_to_ptr.vmem [resolvable:$true] %s478
          %484 = dma.hbm_to_vmem [thread:$0]  %s17, 2048, %s479, [#allocation11], 128, 128, 8
        $region48: #{tpu_custom_call.1} parent=11 // pred_fallthru
          _
        // Predicated region
        $region49: #{tpu_custom_call.1} parent=11 // pred_check
          %p485 = pneg %p401
        $region50: #{tpu_custom_call.1} parent=11 // pred_check_branch
          %487 = sbr.rel (%p485) target = $region52
        $region51: #{tpu_custom_call.1} parent=11 // pred_region
          _
        $region52: #{tpu_custom_call.1} parent=11 // pred_fallthru
          _
      $region12: #{tpu_custom_call.1} parent=5 // pred_fallthru
        _
      %p488 = scmp.lt.s32.totalorder %s51, 2
      // Predicated region
      $region53: #{tpu_custom_call.1} parent=5 // pred_check
        %p489 = pneg %p488
      $region54: #{tpu_custom_call.1} parent=5 // pred_check_branch
        %491 = sbr.rel (%p489) target = $region56
      $region55: #{tpu_custom_call.1} parent=5 // pred_region
        // Predicated region
        $region57: #{tpu_custom_call.1} parent=55 // pred_check
          %p492 = pneg %p89
        $region58: #{tpu_custom_call.1} parent=55 // pred_check_branch
          %494 = sbr.rel (%p492) target = $region60
        $region59: #{tpu_custom_call.1} parent=55 // pred_region
          %s495 = smul.u32 %s58, 2
          %s496 = sadd.s32 %s495, %s59
          %s497 = sld [smem:[#allocation6 + %s496]]
          %s498 = smul.u32 16, %s497
          %p499 = scmp.lt.s32.totalorder %s498, 15
          %s500 = scalar_select %p499, %s498, 15
          %s501 = smul.addr %s500, 8
          %s502 = scalar_lea.vmem %s5, %s501
          %s503 = smul.u32 %s58, 2
          %s504 = sadd.s32 %s503, %s59
          %s505 = sld [smem:[#allocation6 + %s504]]
          %s506 = smul.u32 16, %s505
        $region60: #{tpu_custom_call.1} parent=55 // pred_fallthru
          _
        // Predicated region
        $region61: #{tpu_custom_call.1} parent=55 // pred_check
          %p507 = pneg %p121
        $region62: #{tpu_custom_call.1} parent=55 // pred_check_branch
          %509 = sbr.rel (%p507) target = $region64
        $region63: #{tpu_custom_call.1} parent=55 // pred_region
          %s510 = smul.u32 %s58, 2
          %s511 = sadd.s32 %s510, %s59
          %s512 = sld [smem:[#allocation6 + %s511]]
          %s513 = smul.u32 16, %s512
          %p514 = scmp.lt.s32.totalorder %s513, 15
          %s515 = scalar_select %p514, %s513, 15
          %s516 = smul.addr %s515, 8
          %s517 = scalar_lea.vmem %s6, %s516
          %s518 = smul.u32 %s58, 2
          %s519 = sadd.s32 %s518, %s59
          %s520 = sld [smem:[#allocation6 + %s519]]
          %s521 = smul.u32 16, %s520
        $region64: #{tpu_custom_call.1} parent=55 // pred_fallthru
          _
        // Predicated region
        $region65: #{tpu_custom_call.1} parent=55 // pred_check
          %p522 = pneg %p153
        $region66: #{tpu_custom_call.1} parent=55 // pred_check_branch
          %524 = sbr.rel (%p522) target = $region68
        $region67: #{tpu_custom_call.1} parent=55 // pred_region
          %s525 = smul.u32 %s58, 2
          %s526 = sadd.s32 %s525, %s59
          %s527 = sld [smem:[#allocation6 + %s526]]
          %p528 = scmp.lt.s32.totalorder %s527, 0
          %s529 = scalar_select %p528, %s527, 0
          %s530 = scalar_lea.vmem %s7, %s529
          %s531 = smul.u32 %s58, 2
          %s532 = sadd.s32 %s531, %s59
          %s533 = sld [smem:[#allocation6 + %s532]]
        $region68: #{tpu_custom_call.1} parent=55 // pred_fallthru
          _
        // Predicated region
        $region69: #{tpu_custom_call.1} parent=55 // pred_check
          %p534 = pneg %p185
        $region70: #{tpu_custom_call.1} parent=55 // pred_check_branch
          %536 = sbr.rel (%p534) target = $region72
        $region71: #{tpu_custom_call.1} parent=55 // pred_region
          %s537 = smul.u32 %s58, 2
          %s538 = sadd.s32 %s537, %s59
          %s539 = sld [smem:[#allocation5 + %s538]]
          %p540 = scmp.lt.s32.totalorder %s539, 0
          %s541 = scalar_select %p540, %s539, 0
          %s542 = smul.addr %s541, 8
          %s543 = scalar_lea.vmem %s8, %s542
          %s544 = smul.u32 %s58, 2
          %s545 = sadd.s32 %s544, %s59
          %s546 = sld [smem:[#allocation5 + %s545]]
        $region72: #{tpu_custom_call.1} parent=55 // pred_fallthru
          _
      $region56: #{tpu_custom_call.1} parent=5 // pred_fallthru
        _
      %p547 = scmp.le.s32.totalorder 1, %s51
      %p548 = scmp.lt.s32.totalorder %s51, 3
      %p549 = pnand %p547, %p548
      %p550 = pneg %p549
      // Predicated region
      $region73: #{tpu_custom_call.1} parent=5 // pred_check
        _
      $region74: #{tpu_custom_call.1} parent=5 // pred_check_branch
        %552 = sbr.rel (%p549) target = $region76
      $region75: #{tpu_custom_call.1} parent=5 // pred_region
        %s553 = ssub.s32 %s51, 1
        // Predicated region
        $region77: #{tpu_custom_call.1} parent=75 // pred_check
          %p554 = pneg %p380
        $region78: #{tpu_custom_call.1} parent=75 // pred_check_branch
          %556 = sbr.rel (%p554) target = $region80
        $region79: #{tpu_custom_call.1} parent=75 // pred_region
          %557 = dma.done [#allocation11], 2048
        $region80: #{tpu_custom_call.1} parent=75 // pred_fallthru
          _
        %s558 = smul.u32 %s60, 2
        %s559 = sadd.s32 %s558, %s61
        %s560 = sld [smem:[#allocation6 + %s559]]
        %s561 = smul.u32 16, %s560
        %p562 = scmp.lt.s32.totalorder %s561, 15
        %s563 = scalar_select %p562, %s561, 15
        %s564 = smul.addr %s563, 8
        %s565 = scalar_lea.vmem %s5, %s564
        %p566 = pneg %p95
        %p567 = pneg %p92
        %s568 = smul.u32 %s60, 2
        %s569 = sadd.s32 %s568, %s61
        %s570 = sld [smem:[#allocation6 + %s569]]
        %s571 = smul.u32 16, %s570
        %p572 = scmp.lt.s32.totalorder %s571, 15
        %s573 = scalar_select %p572, %s571, 15
        %s574 = smul.addr %s573, 8
        %s575 = scalar_lea.vmem %s6, %s574
        %p576 = pneg %p127
        %p577 = pneg %p124
        %s578 = smul.u32 %s60, 2
        %s579 = sadd.s32 %s578, %s61
        %s580 = sld [smem:[#allocation6 + %s579]]
        %p581 = scmp.lt.s32.totalorder %s580, 0
        %s582 = scalar_select %p581, %s580, 0
        %s583 = scalar_lea.vmem %s7, %s582
        %p584 = pneg %p159
        %p585 = pneg %p156
        %s586 = smul.u32 %s60, 2
        %s587 = sadd.s32 %s586, %s61
        %s588 = sld [smem:[#allocation5 + %s587]]
        %p589 = scmp.lt.s32.totalorder %s588, 0
        %s590 = scalar_select %p589, %s588, 0
        %s591 = smul.addr %s590, 8
        %s592 = scalar_lea.vmem %s8, %s591
        %p593 = pneg %p191
        %p594 = pneg %p188
        %p595 = pneg %p212
        %p596 = pneg %p209
        %p597 = pneg %p233
        %p598 = pneg %p230
        %p599 = pneg %p254
        %p600 = pneg %p251
        %p601 = pneg %p275
        %p602 = pneg %p272
        %p603 = pneg %p296
        %p604 = pneg %p293
        %p605 = pneg %p317
        %p606 = pneg %p314
        %p607 = pneg %p338
        %p608 = pneg %p335
        %p609 = pneg %p359
        %p610 = pneg %p356
        %p611 = pneg %p380
        %p612 = pneg %p377
        %p613 = pneg %p401
        %p614 = pneg %p398
        %p615 = pneg %p433
        %p616 = pneg %p430
        %s617 = sand.u32 %s420, 1
        %s618 = scalar_lea.sflag [#allocation12], %s617
        %s619 = sand.u32 %s420, 1
        %s620 = smul.addr %s619, 8
        %s621 = scalar_lea.vmem [#allocation13], %s620
        %s622 = smul.u32 %s60, 2
        %s623 = sadd.s32 %s622, %s61
        %s624 = sld [smem:[#allocation6 + %s623]]
        %s625 = smul.u32 16, %s624
        %p626 = scmp.lt.s32.totalorder %s625, 15
        %s627 = scalar_select %p626, %s625, 15
        %s628 = smul.addr %s627, 8
        %s629 = scalar_lea.vmem %s5, %s628
        %s630 = smul.u32 %s60, 2
        %s631 = sadd.s32 %s630, %s61
        %s632 = sld [smem:[#allocation6 + %s631]]
        %s633 = smul.u32 16, %s632
        %s634 = smul.u32 %s60, 2
        %s635 = sadd.s32 %s634, %s61
        %s636 = sld [smem:[#allocation6 + %s635]]
        %s637 = smul.u32 16, %s636
        %p638 = scmp.lt.s32.totalorder %s637, 15
        %s639 = scalar_select %p638, %s637, 15
        %s640 = smul.addr %s639, 8
        %s641 = scalar_lea.vmem %s6, %s640
        %s642 = smul.u32 %s60, 2
        %s643 = sadd.s32 %s642, %s61
        %s644 = sld [smem:[#allocation6 + %s643]]
        %s645 = smul.u32 16, %s644
        %s646 = smul.u32 %s60, 2
        %s647 = sadd.s32 %s646, %s61
        %s648 = sld [smem:[#allocation6 + %s647]]
        %p649 = scmp.lt.s32.totalorder %s648, 0
        %s650 = scalar_select %p649, %s648, 0
        %s651 = scalar_lea.vmem %s7, %s650
        %s652 = smul.u32 %s60, 2
        %s653 = sadd.s32 %s652, %s61
        %s654 = sld [smem:[#allocation6 + %s653]]
        %s655 = smul.u32 %s60, 2
        %s656 = sadd.s32 %s655, %s61
        %s657 = sld [smem:[#allocation5 + %s656]]
        %p658 = scmp.lt.s32.totalorder %s657, 0
        %s659 = scalar_select %p658, %s657, 0
        %s660 = smul.addr %s659, 8
        %s661 = scalar_lea.vmem %s8, %s660
        %s662 = smul.u32 %s60, 2
        %s663 = sadd.s32 %s662, %s61
        %s664 = sld [smem:[#allocation5 + %s663]]
        %s665 = smul.u32 %s60, 2
        %s666 = sadd.s32 %s665, %s61
        %s667 = sld [smem:[#allocation5 + %s666]]
        %s668 = smul.u32 %s60, 2
        %s669 = sadd.s32 %s668, %s61
        %s670 = sld [smem:[#allocation7 + %s669]]
        %p671 = scmp.eq.s32.totalorder %s670, 1
        // Predicated region
        $region81: #{tpu_custom_call.1} parent=75 // pred_check
          %p672 = pneg %p671
        $region82: #{tpu_custom_call.1} parent=75 // pred_check_branch
          %674 = sbr.rel (%p672) target = $region84
        $region83: #{tpu_custom_call.1} parent=75 // pred_region
          %675 = vst [vmem:[#allocation2] sm:$0xff] 0.0
          %vm676 = vcmask 7168
          %677 = vst.msk [vmem:[#allocation3] sm:$0xff] %vm676, 0.0
        $region84: #{tpu_custom_call.1} parent=75 // pred_fallthru
          _
        %s678 = sld [smem:[#allocation9 + %s669]]
        %p679 = scmp.eq.s32.totalorder %s678, 1
        // Predicated region
        $region85: #{tpu_custom_call.1} parent=75 // pred_check
          %p680 = pneg %p679
        $region86: #{tpu_custom_call.1} parent=75 // pred_check_branch
          %682 = sbr.rel (%p680) target = $region88
        $region87: #{tpu_custom_call.1} parent=75 // pred_region
          %v683 = vld [vmem:[%s629] sm:$0xff]
          %v684 = vld [vmem:[%s629 + $0x8] sm:$0xff]
          %v685 = vld [vmem:[%s629 + $0x10] sm:$0xff]
          %v686 = vld [vmem:[%s629 + $0x18] sm:$0xff]
          %v687 = vld [vmem:[%s629 + $0x20] sm:$0xff]
          %v688 = vld [vmem:[%s629 + $0x28] sm:$0xff]
          %v689 = vld [vmem:[%s629 + $0x30] sm:$0xff]
          %v690 = vld [vmem:[%s629 + $0x38] sm:$0xff]
          %v691 = vld [vmem:[%s629 + $0x40] sm:$0xff]
          %v692 = vld [vmem:[%s629 + $0x48] sm:$0xff]
          %v693 = vld [vmem:[%s629 + $0x50] sm:$0xff]
          %v694 = vld [vmem:[%s629 + $0x58] sm:$0xff]
          %v695 = vld [vmem:[%s629 + $0x60] sm:$0xff]
          %v696 = vld [vmem:[%s629 + $0x68] sm:$0xff]
          %v697 = vld [vmem:[%s629 + $0x70] sm:$0xff]
          %v698 = vld [vmem:[%s629 + $0x78] sm:$0xff]
          %v699 = vld [vmem:[%s641] sm:$0xff]
          %v700 = vld [vmem:[%s641 + $0x8] sm:$0xff]
          %v701 = vld [vmem:[%s641 + $0x10] sm:$0xff]
          %v702 = vld [vmem:[%s641 + $0x18] sm:$0xff]
          %v703 = vld [vmem:[%s641 + $0x20] sm:$0xff]
          %v704 = vld [vmem:[%s641 + $0x28] sm:$0xff]
          %v705 = vld [vmem:[%s641 + $0x30] sm:$0xff]
          %v706 = vld [vmem:[%s641 + $0x38] sm:$0xff]
          %v707 = vld [vmem:[%s641 + $0x40] sm:$0xff]
          %v708 = vld [vmem:[%s641 + $0x48] sm:$0xff]
          %v709 = vld [vmem:[%s641 + $0x50] sm:$0xff]
          %v710 = vld [vmem:[%s641 + $0x58] sm:$0xff]
          %v711 = vld [vmem:[%s641 + $0x60] sm:$0xff]
          %v712 = vld [vmem:[%s641 + $0x68] sm:$0xff]
          %v713 = vld [vmem:[%s641 + $0x70] sm:$0xff]
          %v714 = vld [vmem:[%s641 + $0x78] sm:$0xff]
          %v715 = vld [vmem:[%s11] sm:$0x1]
          %v716 = vld [vmem:[%s9] sm:$0x1]
          %718 = vset.pattern.permute.xlu0 0
          %719 = vperm.xlu0 %718, %v683
          %v720 = vpop.permute.xlu0 %719
          %723 = vset.pattern.permute.xlu0 0
          %724 = vperm.xlu0 %723, %v684
          %v725 = vpop.permute.xlu0 %724
          %728 = vset.pattern.permute.xlu0 0
          %729 = vperm.xlu0 %728, %v685
          %v730 = vpop.permute.xlu0 %729
          %733 = vset.pattern.permute.xlu0 0
          %734 = vperm.xlu0 %733, %v686
          %v735 = vpop.permute.xlu0 %734
          %738 = vset.pattern.permute.xlu0 0
          %739 = vperm.xlu0 %738, %v687
          %v740 = vpop.permute.xlu0 %739
          %743 = vset.pattern.permute.xlu0 0
          %744 = vperm.xlu0 %743, %v688
          %v745 = vpop.permute.xlu0 %744
          %748 = vset.pattern.permute.xlu0 0
          %749 = vperm.xlu0 %748, %v689
          %v750 = vpop.permute.xlu0 %749
          %753 = vset.pattern.permute.xlu0 0
          %754 = vperm.xlu0 %753, %v690
          %v755 = vpop.permute.xlu0 %754
          %758 = vset.pattern.permute.xlu0 0
          %759 = vperm.xlu0 %758, %v691
          %v760 = vpop.permute.xlu0 %759
          %763 = vset.pattern.permute.xlu0 0
          %764 = vperm.xlu0 %763, %v692
          %v765 = vpop.permute.xlu0 %764
          %768 = vset.pattern.permute.xlu0 0
          %769 = vperm.xlu0 %768, %v693
          %v770 = vpop.permute.xlu0 %769
          %773 = vset.pattern.permute.xlu0 0
          %774 = vperm.xlu0 %773, %v694
          %v775 = vpop.permute.xlu0 %774
          %778 = vset.pattern.permute.xlu0 0
          %779 = vperm.xlu0 %778, %v695
          %v780 = vpop.permute.xlu0 %779
          %783 = vset.pattern.permute.xlu0 0
          %784 = vperm.xlu0 %783, %v696
          %v785 = vpop.permute.xlu0 %784
          %788 = vset.pattern.permute.xlu0 0
          %789 = vperm.xlu0 %788, %v697
          %v790 = vpop.permute.xlu0 %789
          %793 = vset.pattern.permute.xlu0 0
          %794 = vperm.xlu0 %793, %v698
          %v795 = vpop.permute.xlu0 %794
          %v797 = vlaneseq
          %v798 = vshrl.u32 %v797, 7
          %v799 = vsub.s32 0, %v798
          %v800 = vrot.slane %v716, %v799
          %v801 = vmul.f32 %v720, %v800
          %v802 = vmul.f32 %v725, %v800
          %v803 = vmul.f32 %v730, %v800
          %v804 = vmul.f32 %v735, %v800
          %v805 = vmul.f32 %v740, %v800
          %v806 = vmul.f32 %v745, %v800
          %v807 = vmul.f32 %v750, %v800
          %v808 = vmul.f32 %v755, %v800
          %v809 = vmul.f32 %v760, %v800
          %v810 = vmul.f32 %v765, %v800
          %v811 = vmul.f32 %v770, %v800
          %v812 = vmul.f32 %v775, %v800
          %v813 = vmul.f32 %v780, %v800
          %v814 = vmul.f32 %v785, %v800
          %v815 = vmul.f32 %v790, %v800
          %v816 = vmul.f32 %v795, %v800
          %v818 = vlaneseq
          %v819 = vshrl.u32 %v818, 7
          %v820 = vsub.s32 0, %v819
          %v821 = vrot.slane %v715, %v820
          %v823 = vadd.f32 %v821, %v801
          %v824 = vadd.f32 %v821, %v802
          %v825 = vadd.f32 %v821, %v803
          %v826 = vadd.f32 %v821, %v804
          %v827 = vadd.f32 %v821, %v805
          %v828 = vadd.f32 %v821, %v806
          %v829 = vadd.f32 %v821, %v807
          %v830 = vadd.f32 %v821, %v808
          %v831 = vadd.f32 %v821, %v809
          %v832 = vadd.f32 %v821, %v810
          %v833 = vadd.f32 %v821, %v811
          %v834 = vadd.f32 %v821, %v812
          %v835 = vadd.f32 %v821, %v813
          %v836 = vadd.f32 %v821, %v814
          %v837 = vadd.f32 %v821, %v815
          %v838 = vadd.f32 %v821, %v816
          %v839 = vld [vmem:[%s9 + $0x1] sm:$0x1]
          %840 = vset.pattern.permute.xlu0 1
          %841 = vperm.xlu0 %840, %v683
          %v842 = vpop.permute.xlu0 %841
          %844 = vset.pattern.permute.xlu0 1
          %845 = vperm.xlu0 %844, %v684
          %v846 = vpop.permute.xlu0 %845
          %848 = vset.pattern.permute.xlu0 1
          %849 = vperm.xlu0 %848, %v685
          %v850 = vpop.permute.xlu0 %849
          %852 = vset.pattern.permute.xlu0 1
          %853 = vperm.xlu0 %852, %v686
          %v854 = vpop.permute.xlu0 %853
          %856 = vset.pattern.permute.xlu0 1
          %857 = vperm.xlu0 %856, %v687
          %v858 = vpop.permute.xlu0 %857
          %860 = vset.pattern.permute.xlu0 1
          %861 = vperm.xlu0 %860, %v688
          %v862 = vpop.permute.xlu0 %861
          %864 = vset.pattern.permute.xlu0 1
          %865 = vperm.xlu0 %864, %v689
          %v866 = vpop.permute.xlu0 %865
          %868 = vset.pattern.permute.xlu0 1
          %869 = vperm.xlu0 %868, %v690
          %v870 = vpop.permute.xlu0 %869
          %872 = vset.pattern.permute.xlu0 1
          %873 = vperm.xlu0 %872, %v691
          %v874 = vpop.permute.xlu0 %873
          %876 = vset.pattern.permute.xlu0 1
          %877 = vperm.xlu0 %876, %v692
          %v878 = vpop.permute.xlu0 %877
          %880 = vset.pattern.permute.xlu0 1
          %881 = vperm.xlu0 %880, %v693
          %v882 = vpop.permute.xlu0 %881
          %884 = vset.pattern.permute.xlu0 1
          %885 = vperm.xlu0 %884, %v694
          %v886 = vpop.permute.xlu0 %885
          %888 = vset.pattern.permute.xlu0 1
          %889 = vperm.xlu0 %888, %v695
          %v890 = vpop.permute.xlu0 %889
          %892 = vset.pattern.permute.xlu0 1
          %893 = vperm.xlu0 %892, %v696
          %v894 = vpop.permute.xlu0 %893
          %896 = vset.pattern.permute.xlu0 1
          %897 = vperm.xlu0 %896, %v697
          %v898 = vpop.permute.xlu0 %897
          %900 = vset.pattern.permute.xlu0 1
          %901 = vperm.xlu0 %900, %v698
          %v902 = vpop.permute.xlu0 %901
          %v904 = vlaneseq
          %v905 = vshrl.u32 %v904, 7
          %v906 = vsub.s32 0, %v905
          %v907 = vrot.slane %v839, %v906
          %v908 = vmul.f32 %v842, %v907
          %v909 = vmul.f32 %v846, %v907
          %v910 = vmul.f32 %v850, %v907
          %v911 = vmul.f32 %v854, %v907
          %v912 = vmul.f32 %v858, %v907
          %v913 = vmul.f32 %v862, %v907
          %v914 = vmul.f32 %v866, %v907
          %v915 = vmul.f32 %v870, %v907
          %v916 = vmul.f32 %v874, %v907
          %v917 = vmul.f32 %v878, %v907
          %v918 = vmul.f32 %v882, %v907
          %v919 = vmul.f32 %v886, %v907
          %v920 = vmul.f32 %v890, %v907
          %v921 = vmul.f32 %v894, %v907
          %v922 = vmul.f32 %v898, %v907
          %v923 = vmul.f32 %v902, %v907
          %v924 = vadd.f32 %v823, %v908
          %v925 = vadd.f32 %v824, %v909
          %v926 = vadd.f32 %v825, %v910
          %v927 = vadd.f32 %v826, %v911
          %v928 = vadd.f32 %v827, %v912
          %v929 = vadd.f32 %v828, %v913
          %v930 = vadd.f32 %v829, %v914
          %v931 = vadd.f32 %v830, %v915
          %v932 = vadd.f32 %v831, %v916
          %v933 = vadd.f32 %v832, %v917
          %v934 = vadd.f32 %v833, %v918
          %v935 = vadd.f32 %v834, %v919
          %v936 = vadd.f32 %v835, %v920
          %v937 = vadd.f32 %v836, %v921
          %v938 = vadd.f32 %v837, %v922
          %v939 = vadd.f32 %v838, %v923
          %v940 = vld [vmem:[%s10] sm:$0x1]
          %942 = vset.pattern.permute.xlu0 0
          %943 = vperm.xlu0 %942, %v699
          %v944 = vpop.permute.xlu0 %943
          %947 = vset.pattern.permute.xlu0 0
          %948 = vperm.xlu0 %947, %v700
          %v949 = vpop.permute.xlu0 %948
          %952 = vset.pattern.permute.xlu0 0
          %953 = vperm.xlu0 %952, %v701
          %v954 = vpop.permute.xlu0 %953
          %957 = vset.pattern.permute.xlu0 0
          %958 = vperm.xlu0 %957, %v702
          %v959 = vpop.permute.xlu0 %958
          %962 = vset.pattern.permute.xlu0 0
          %963 = vperm.xlu0 %962, %v703
          %v964 = vpop.permute.xlu0 %963
          %967 = vset.pattern.permute.xlu0 0
          %968 = vperm.xlu0 %967, %v704
          %v969 = vpop.permute.xlu0 %968
          %972 = vset.pattern.permute.xlu0 0
          %973 = vperm.xlu0 %972, %v705
          %v974 = vpop.permute.xlu0 %973
          %977 = vset.pattern.permute.xlu0 0
          %978 = vperm.xlu0 %977, %v706
          %v979 = vpop.permute.xlu0 %978
          %982 = vset.pattern.permute.xlu0 0
          %983 = vperm.xlu0 %982, %v707
          %v984 = vpop.permute.xlu0 %983
          %987 = vset.pattern.permute.xlu0 0
          %988 = vperm.xlu0 %987, %v708
          %v989 = vpop.permute.xlu0 %988
          %992 = vset.pattern.permute.xlu0 0
          %993 = vperm.xlu0 %992, %v709
          %v994 = vpop.permute.xlu0 %993
          %997 = vset.pattern.permute.xlu0 0
          %998 = vperm.xlu0 %997, %v710
          %v999 = vpop.permute.xlu0 %998
          %1002 = vset.pattern.permute.xlu0 0
          %1003 = vperm.xlu0 %1002, %v711
          %v1004 = vpop.permute.xlu0 %1003
          %1007 = vset.pattern.permute.xlu0 0
          %1008 = vperm.xlu0 %1007, %v712
          %v1009 = vpop.permute.xlu0 %1008
          %1012 = vset.pattern.permute.xlu0 0
          %1013 = vperm.xlu0 %1012, %v713
          %v1014 = vpop.permute.xlu0 %1013
          %1017 = vset.pattern.permute.xlu0 0
          %1018 = vperm.xlu0 %1017, %v714
          %v1019 = vpop.permute.xlu0 %1018
          %v1022 = vlaneseq
          %v1023 = vshrl.u32 %v1022, 7
          %v1024 = vsub.s32 0, %v1023
          %v1025 = vrot.slane %v940, %v1024
          %v1027 = vmul.f32 %v944, %v1025
          %v1028 = vmul.f32 %v949, %v1025
          %v1029 = vmul.f32 %v954, %v1025
          %v1030 = vmul.f32 %v959, %v1025
          %v1031 = vmul.f32 %v964, %v1025
          %v1032 = vmul.f32 %v969, %v1025
          %v1033 = vmul.f32 %v974, %v1025
          %v1034 = vmul.f32 %v979, %v1025
          %v1035 = vmul.f32 %v984, %v1025
          %v1036 = vmul.f32 %v989, %v1025
          %v1037 = vmul.f32 %v994, %v1025
          %v1038 = vmul.f32 %v999, %v1025
          %v1039 = vmul.f32 %v1004, %v1025
          %v1040 = vmul.f32 %v1009, %v1025
          %v1041 = vmul.f32 %v1014, %v1025
          %v1042 = vmul.f32 %v1019, %v1025
          %v1043 = vadd.f32 %v924, %v1027
          %v1044 = vadd.f32 %v925, %v1028
          %v1045 = vadd.f32 %v926, %v1029
          %v1046 = vadd.f32 %v927, %v1030
          %v1047 = vadd.f32 %v928, %v1031
          %v1048 = vadd.f32 %v929, %v1032
          %v1049 = vadd.f32 %v930, %v1033
          %v1050 = vadd.f32 %v931, %v1034
          %v1051 = vadd.f32 %v932, %v1035
          %v1052 = vadd.f32 %v933, %v1036
          %v1053 = vadd.f32 %v934, %v1037
          %v1054 = vadd.f32 %v935, %v1038
          %v1055 = vadd.f32 %v936, %v1039
          %v1056 = vadd.f32 %v937, %v1040
          %v1057 = vadd.f32 %v938, %v1041
          %v1058 = vadd.f32 %v939, %v1042
          %v1059 = vmax.f32 %v1043, 0.0
          %v1060 = vmax.f32 %v1044, 0.0
          %v1061 = vmax.f32 %v1045, 0.0
          %v1062 = vmax.f32 %v1046, 0.0
          %v1063 = vmax.f32 %v1047, 0.0
          %v1064 = vmax.f32 %v1048, 0.0
          %v1065 = vmax.f32 %v1049, 0.0
          %v1066 = vmax.f32 %v1050, 0.0
          %v1067 = vmax.f32 %v1051, 0.0
          %v1068 = vmax.f32 %v1052, 0.0
          %v1069 = vmax.f32 %v1053, 0.0
          %v1070 = vmax.f32 %v1054, 0.0
          %v1071 = vmax.f32 %v1055, 0.0
          %v1072 = vmax.f32 %v1056, 0.0
          %v1073 = vmax.f32 %v1057, 0.0
          %v1074 = vmax.f32 %v1058, 0.0
          %v1075 = vld [vmem:[%s12] sm:$0xff]
          %v1076 = vld [vmem:[%s12 + $0x8] sm:$0xff]
          %v1077 = vld [vmem:[%s12 + $0x10] sm:$0xff]
          %v1078 = vld [vmem:[%s12 + $0x18] sm:$0xff]
          %v1079 = vld [vmem:[%s12 + $0x20] sm:$0xff]
          %v1080 = vld [vmem:[%s12 + $0x28] sm:$0xff]
          %v1081 = vld [vmem:[%s12 + $0x30] sm:$0xff]
          %v1082 = vld [vmem:[%s12 + $0x38] sm:$0xff]
          %v1083 = vld [vmem:[%s12 + $0x40] sm:$0xff]
          %v1084 = vld [vmem:[%s12 + $0x48] sm:$0xff]
          %v1085 = vld [vmem:[%s12 + $0x50] sm:$0xff]
          %v1086 = vld [vmem:[%s12 + $0x58] sm:$0xff]
          %v1087 = vld [vmem:[%s12 + $0x60] sm:$0xff]
          %v1088 = vld [vmem:[%s12 + $0x68] sm:$0xff]
          %v1089 = vld [vmem:[%s12 + $0x70] sm:$0xff]
          %v1090 = vld [vmem:[%s12 + $0x78] sm:$0xff]
          %v1091 = vld [vmem:[%s13] sm:$0x1]
          %v1093 = vlaneseq
          %v1094 = vshrl.u32 %v1093, 7
          %v1095 = vsub.s32 0, %v1094
          %v1096 = vrot.slane %v1091, %v1095
          %1098 = vmatprep.subr.mxu0 0.0
          %v1099 = vand.u32 %v1075, 4294901760
          %1100 = vmatpush1.msra.mxu0 %v1099
          %1101 = vmatprep.subr.mxu0 0.0
          %v1102 = vand.u32 %v1076, 4294901760
          %1103 = vmatpush1.msra.mxu0 %v1102
          %1104 = vmatprep.subr.mxu0 0.0
          %v1105 = vand.u32 %v1077, 4294901760
          %1106 = vmatpush1.msra.mxu0 %v1105
          %1107 = vmatprep.subr.mxu0 0.0
          %v1108 = vand.u32 %v1078, 4294901760
          %1109 = vmatpush1.msra.mxu0 %v1108
          %1110 = vmatprep.subr.mxu0 0.0
          %v1111 = vand.u32 %v1079, 4294901760
          %1112 = vmatpush1.msra.mxu0 %v1111
          %1113 = vmatprep.subr.mxu0 0.0
          %v1114 = vand.u32 %v1080, 4294901760
          %1115 = vmatpush1.msra.mxu0 %v1114
          %1116 = vmatprep.subr.mxu0 0.0
          %v1117 = vand.u32 %v1081, 4294901760
          %1118 = vmatpush1.msra.mxu0 %v1117
          %1119 = vmatprep.subr.mxu0 0.0
          %v1120 = vand.u32 %v1082, 4294901760
          %1121 = vmatpush1.msra.mxu0 %v1120
          %1122 = vmatprep.subr.mxu0 0.0
          %v1123 = vand.u32 %v1083, 4294901760
          %1124 = vmatpush1.msra.mxu0 %v1123
          %1125 = vmatprep.subr.mxu0 0.0
          %v1126 = vand.u32 %v1084, 4294901760
          %1127 = vmatpush1.msra.mxu0 %v1126
          %1128 = vmatprep.subr.mxu0 0.0
          %v1129 = vand.u32 %v1085, 4294901760
          %1130 = vmatpush1.msra.mxu0 %v1129
          %1131 = vmatprep.subr.mxu0 0.0
          %v1132 = vand.u32 %v1086, 4294901760
          %1133 = vmatpush1.msra.mxu0 %v1132
          %1134 = vmatprep.subr.mxu0 0.0
          %v1135 = vand.u32 %v1087, 4294901760
          %1136 = vmatpush1.msra.mxu0 %v1135
          %1137 = vmatprep.subr.mxu0 0.0
          %v1138 = vand.u32 %v1088, 4294901760
          %1139 = vmatpush1.msra.mxu0 %v1138
          %1140 = vmatprep.subr.mxu0 0.0
          %v1141 = vand.u32 %v1089, 4294901760
          %1142 = vmatpush1.msra.mxu0 %v1141
          %1143 = vmatprep.subr.mxu0 0.0
          %v1144 = vand.u32 %v1090, 4294901760
          %1145 = vmatpush1.msra.mxu0 %v1144
          %1146 = vmatprep.subr.mxu0 0.0
          %1147 = vmatpush1.msra.mxu0 0.0
          %1148 = vmatprep.subr.mxu0 0.0
          %1149 = vmatpush1.msra.mxu0 0.0
          %1150 = vmatprep.subr.mxu0 0.0
          %1151 = vmatpush1.msra.mxu0 0.0
          %1152 = vmatprep.subr.mxu0 0.0
          %1153 = vmatpush1.msra.mxu0 0.0
          %1154 = vmatprep.subr.mxu0 0.0
          %1155 = vmatpush1.msra.mxu0 0.0
          %1156 = vmatprep.subr.mxu0 0.0
          %1157 = vmatpush1.msra.mxu0 0.0
          %1158 = vmatprep.subr.mxu0 0.0
          %1159 = vmatpush1.msra.mxu0 0.0
          %1160 = vmatprep.subr.mxu0 0.0
          %1161 = vmatpush1.msra.mxu0 0.0
          %1162 = vmatprep.subr.mxu0 0.0
          %1163 = vmatpush1.msra.mxu0 0.0
          %1164 = vmatprep.subr.mxu0 0.0
          %1165 = vmatpush1.msra.mxu0 0.0
          %1166 = vmatprep.subr.mxu0 0.0
          %1167 = vmatpush1.msra.mxu0 0.0
          %1168 = vmatprep.subr.mxu0 0.0
          %1169 = vmatpush1.msra.mxu0 0.0
          %1170 = vmatprep.subr.mxu0 0.0
          %1171 = vmatpush1.msra.mxu0 0.0
          %1172 = vmatprep.subr.mxu0 0.0
          %1173 = vmatpush1.msra.mxu0 0.0
          %1174 = vmatprep.subr.mxu0 0.0
          %1175 = vmatpush1.msra.mxu0 0.0
          %1176 = vmatprep.subr.mxu0 0.0
          %1177 = vmatpush1.msra.mxu0 0.0
          %1178 = vmatprep.mubr.f32.mxu0 0.0
          %v1179 = vand.u32 %v1059, 4294901760
          %v1180 = vsub.f32 %v1059, %v1179
          %v1181 = vand.u32 %v1180, 4294901760
          %v1182 = vsub.f32 %v1180, %v1181
          %v1183 = vand.u32 %v1182, 4294901760
          %1184 = vmatmul.mubr.f32.gmra.mrb[0].mxu0 %v1183
          %v1185 = vpop.f32.mrb[0].mxu0
          %v1186 = vadd.f32 %v1096, %v1185
          %v1187 = vpop.f32.mrb[0].mxu0
          %1188 = vmatprep.mubr.f32.mxu0 0.0
          %v1189 = vand.u32 %v1060, 4294901760
          %v1190 = vsub.f32 %v1060, %v1189
          %v1191 = vand.u32 %v1190, 4294901760
          %v1192 = vsub.f32 %v1190, %v1191
          %v1193 = vand.u32 %v1192, 4294901760
          %1194 = vmatmul.mubr.f32.gmra.mrb[0].mxu0 %v1193
          %v1195 = vpop.f32.mrb[0].mxu0
          %v1196 = vadd.f32 %v1096, %v1195
          %v1197 = vpop.f32.mrb[0].mxu0
          %1198 = vmatprep.mubr.f32.mxu0 0.0
          %v1199 = vand.u32 %v1061, 4294901760
          %v1200 = vsub.f32 %v1061, %v1199
          %v1201 = vand.u32 %v1200, 4294901760
          %v1202 = vsub.f32 %v1200, %v1201
          %v1203 = vand.u32 %v1202, 4294901760
          %1204 = vmatmul.mubr.f32.gmra.mrb[0].mxu0 %v1203
          %v1205 = vpop.f32.mrb[0].mxu0
          %v1206 = vadd.f32 %v1096, %v1205
          %v1207 = vpop.f32.mrb[0].mxu0
          %1208 = vmatprep.mubr.f32.mxu0 0.0
          %v1209 = vand.u32 %v1062, 4294901760
          %v1210 = vsub.f32 %v1062, %v1209
          %v1211 = vand.u32 %v1210, 4294901760
          %v1212 = vsub.f32 %v1210, %v1211
          %v1213 = vand.u32 %v1212, 4294901760
          %1214 = vmatmul.mubr.f32.gmra.mrb[0].mxu0 %v1213
          %v1215 = vpop.f32.mrb[0].mxu0
          %v1216 = vadd.f32 %v1096, %v1215
          %v1217 = vpop.f32.mrb[0].mxu0
          %1218 = vmatprep.mubr.f32.mxu0 0.0
          %v1219 = vand.u32 %v1063, 4294901760
          %v1220 = vsub.f32 %v1063, %v1219
          %v1221 = vand.u32 %v1220, 4294901760
          %v1222 = vsub.f32 %v1220, %v1221
          %v1223 = vand.u32 %v1222, 4294901760
          %1224 = vmatmul.mubr.f32.gmra.mrb[0].mxu0 %v1223
          %v1225 = vpop.f32.mrb[0].mxu0
          %v1226 = vadd.f32 %v1096, %v1225
          %v1227 = vpop.f32.mrb[0].mxu0
          %1228 = vmatprep.mubr.f32.mxu0 0.0
          %v1229 = vand.u32 %v1064, 4294901760
          %v1230 = vsub.f32 %v1064, %v1229
          %v1231 = vand.u32 %v1230, 4294901760
          %v1232 = vsub.f32 %v1230, %v1231
          %v1233 = vand.u32 %v1232, 4294901760
          %1234 = vmatmul.mubr.f32.gmra.mrb[0].mxu0 %v1233
          %v1235 = vpop.f32.mrb[0].mxu0
          %v1236 = vadd.f32 %v1096, %v1235
          %v1237 = vpop.f32.mrb[0].mxu0
          %1238 = vmatprep.mubr.f32.mxu0 0.0
          %v1239 = vand.u32 %v1065, 4294901760
          %v1240 = vsub.f32 %v1065, %v1239
          %v1241 = vand.u32 %v1240, 4294901760
          %v1242 = vsub.f32 %v1240, %v1241
          %v1243 = vand.u32 %v1242, 4294901760
          %1244 = vmatmul.mubr.f32.gmra.mrb[0].mxu0 %v1243
          %v1245 = vpop.f32.mrb[0].mxu0
          %v1246 = vadd.f32 %v1096, %v1245
          %v1247 = vpop.f32.mrb[0].mxu0
          %1248 = vmatprep.mubr.f32.mxu0 0.0
          %v1249 = vand.u32 %v1066, 4294901760
          %v1250 = vsub.f32 %v1066, %v1249
          %v1251 = vand.u32 %v1250, 4294901760
          %v1252 = vsub.f32 %v1250, %v1251
          %v1253 = vand.u32 %v1252, 4294901760
          %1254 = vmatmul.mubr.f32.gmra.mrb[0].mxu0 %v1253
          %v1255 = vpop.f32.mrb[0].mxu0
          %v1256 = vadd.f32 %v1096, %v1255
          %v1257 = vpop.f32.mrb[0].mxu0
          %1258 = vmatprep.mubr.f32.mxu0 0.0
          %v1259 = vand.u32 %v1067, 4294901760
          %v1260 = vsub.f32 %v1067, %v1259
          %v1261 = vand.u32 %v1260, 4294901760
          %v1262 = vsub.f32 %v1260, %v1261
          %v1263 = vand.u32 %v1262, 4294901760
          %1264 = vmatmul.mubr.f32.gmra.mrb[0].mxu0 %v1263
          %v1265 = vpop.f32.mrb[0].mxu0
          %v1266 = vadd.f32 %v1096, %v1265
          %v1267 = vpop.f32.mrb[0].mxu0
          %1268 = vmatprep.mubr.f32.mxu0 0.0
          %v1269 = vand.u32 %v1068, 4294901760
          %v1270 = vsub.f32 %v1068, %v1269
          %v1271 = vand.u32 %v1270, 4294901760
          %v1272 = vsub.f32 %v1270, %v1271
          %v1273 = vand.u32 %v1272, 4294901760
          %1274 = vmatmul.mubr.f32.gmra.mrb[0].mxu0 %v1273
          %v1275 = vpop.f32.mrb[0].mxu0
          %v1276 = vadd.f32 %v1096, %v1275
          %v1277 = vpop.f32.mrb[0].mxu0
          %1278 = vmatprep.mubr.f32.mxu0 0.0
          %v1279 = vand.u32 %v1069, 4294901760
          %v1280 = vsub.f32 %v1069, %v1279
          %v1281 = vand.u32 %v1280, 4294901760
          %v1282 = vsub.f32 %v1280, %v1281
          %v1283 = vand.u32 %v1282, 4294901760
          %1284 = vmatmul.mubr.f32.gmra.mrb[0].mxu0 %v1283
          %v1285 = vpop.f32.mrb[0].mxu0
          %v1286 = vadd.f32 %v1096, %v1285
          %v1287 = vpop.f32.mrb[0].mxu0
          %1288 = vmatprep.mubr.f32.mxu0 0.0
          %v1289 = vand.u32 %v1070, 4294901760
          %v1290 = vsub.f32 %v1070, %v1289
          %v1291 = vand.u32 %v1290, 4294901760
          %v1292 = vsub.f32 %v1290, %v1291
          %v1293 = vand.u32 %v1292, 4294901760
          %1294 = vmatmul.mubr.f32.gmra.mrb[0].mxu0 %v1293
          %v1295 = vpop.f32.mrb[0].mxu0
          %v1296 = vadd.f32 %v1096, %v1295
          %v1297 = vpop.f32.mrb[0].mxu0
          %1298 = vmatprep.mubr.f32.mxu0 0.0
          %v1299 = vand.u32 %v1071, 4294901760
          %v1300 = vsub.f32 %v1071, %v1299
          %v1301 = vand.u32 %v1300, 4294901760
          %v1302 = vsub.f32 %v1300, %v1301
          %v1303 = vand.u32 %v1302, 4294901760
          %1304 = vmatmul.mubr.f32.gmra.mrb[0].mxu0 %v1303
          %v1305 = vpop.f32.mrb[0].mxu0
          %v1306 = vadd.f32 %v1096, %v1305
          %v1307 = vpop.f32.mrb[0].mxu0
          %1308 = vmatprep.mubr.f32.mxu0 0.0
          %v1309 = vand.u32 %v1072, 4294901760
          %v1310 = vsub.f32 %v1072, %v1309
          %v1311 = vand.u32 %v1310, 4294901760
          %v1312 = vsub.f32 %v1310, %v1311
          %v1313 = vand.u32 %v1312, 4294901760
          %1314 = vmatmul.mubr.f32.gmra.mrb[0].mxu0 %v1313
          %v1315 = vpop.f32.mrb[0].mxu0
          %v1316 = vadd.f32 %v1096, %v1315
          %v1317 = vpop.f32.mrb[0].mxu0
          %1318 = vmatprep.mubr.f32.mxu0 0.0
          %v1319 = vand.u32 %v1073, 4294901760
          %v1320 = vsub.f32 %v1073, %v1319
          %v1321 = vand.u32 %v1320, 4294901760
          %v1322 = vsub.f32 %v1320, %v1321
          %v1323 = vand.u32 %v1322, 4294901760
          %1324 = vmatmul.mubr.f32.gmra.mrb[0].mxu0 %v1323
          %v1325 = vpop.f32.mrb[0].mxu0
          %v1326 = vadd.f32 %v1096, %v1325
          %v1327 = vpop.f32.mrb[0].mxu0
          %1328 = vmatprep.mubr.f32.mxu0 0.0
          %v1329 = vand.u32 %v1074, 4294901760
          %v1330 = vsub.f32 %v1074, %v1329
          %v1331 = vand.u32 %v1330, 4294901760
          %v1332 = vsub.f32 %v1330, %v1331
          %v1333 = vand.u32 %v1332, 4294901760
          %1334 = vmatmul.mubr.f32.gmra.mrb[0].mxu0 %v1333
          %v1335 = vpop.f32.mrb[0].mxu0
          %v1336 = vadd.f32 %v1096, %v1335
          %v1337 = vpop.f32.mrb[0].mxu0
          %1338 = vdwg.mxu0
          %1339 = vmatprep.subr.mxu0 0.0
          %v1340 = vand.u32 %v1075, 4294901760
          %v1341 = vsub.f32 %v1075, %v1340
          %v1342 = vand.u32 %v1341, 4294901760
          %v1343 = vsub.f32 %v1341, %v1342
          %v1344 = vand.u32 %v1343, 4294901760
          %1345 = vmatpush1.msra.mxu0 %v1344
          %1346 = vmatprep.subr.mxu0 0.0
          %v1347 = vand.u32 %v1076, 4294901760
          %v1348 = vsub.f32 %v1076, %v1347
          %v1349 = vand.u32 %v1348, 4294901760
          %v1350 = vsub.f32 %v1348, %v1349
          %v1351 = vand.u32 %v1350, 4294901760
          %1352 = vmatpush1.msra.mxu0 %v1351
          %1353 = vmatprep.subr.mxu0 0.0
          %v1354 = vand.u32 %v1077, 4294901760
          %v1355 = vsub.f32 %v1077, %v1354
          %v1356 = vand.u32 %v1355, 4294901760
          %v1357 = vsub.f32 %v1355, %v1356
          %v1358 = vand.u32 %v1357, 4294901760
          %1359 = vmatpush1.msra.mxu0 %v1358
          %1360 = vmatprep.subr.mxu0 0.0
          %v1361 = vand.u32 %v1078, 4294901760
          %v1362 = vsub.f32 %v1078, %v1361
          %v1363 = vand.u32 %v1362, 4294901760
          %v1364 = vsub.f32 %v1362, %v1363
          %v1365 = vand.u32 %v1364, 4294901760
          %1366 = vmatpush1.msra.mxu0 %v1365
          %1367 = vmatprep.subr.mxu0 0.0
          %v1368 = vand.u32 %v1079, 4294901760
          %v1369 = vsub.f32 %v1079, %v1368
          %v1370 = vand.u32 %v1369, 4294901760
          %v1371 = vsub.f32 %v1369, %v1370
          %v1372 = vand.u32 %v1371, 4294901760
          %1373 = vmatpush1.msra.mxu0 %v1372
          %1374 = vmatprep.subr.mxu0 0.0
          %v1375 = vand.u32 %v1080, 4294901760
          %v1376 = vsub.f32 %v1080, %v1375
          %v1377 = vand.u32 %v1376, 4294901760
          %v1378 = vsub.f32 %v1376, %v1377
          %v1379 = vand.u32 %v1378, 4294901760
          %1380 = vmatpush1.msra.mxu0 %v1379
          %1381 = vmatprep.subr.mxu0 0.0
          %v1382 = vand.u32 %v1081, 4294901760
          %v1383 = vsub.f32 %v1081, %v1382
          %v1384 = vand.u32 %v1383, 4294901760
          %v1385 = vsub.f32 %v1383, %v1384
          %v1386 = vand.u32 %v1385, 4294901760
          %1387 = vmatpush1.msra.mxu0 %v1386
          %1388 = vmatprep.subr.mxu0 0.0
          %v1389 = vand.u32 %v1082, 4294901760
          %v1390 = vsub.f32 %v1082, %v1389
          %v1391 = vand.u32 %v1390, 4294901760
          %v1392 = vsub.f32 %v1390, %v1391
          %v1393 = vand.u32 %v1392, 4294901760
          %1394 = vmatpush1.msra.mxu0 %v1393
          %1395 = vmatprep.subr.mxu0 0.0
          %v1396 = vand.u32 %v1083, 4294901760
          %v1397 = vsub.f32 %v1083, %v1396
          %v1398 = vand.u32 %v1397, 4294901760
          %v1399 = vsub.f32 %v1397, %v1398
          %v1400 = vand.u32 %v1399, 4294901760
          %1401 = vmatpush1.msra.mxu0 %v1400
          %1402 = vmatprep.subr.mxu0 0.0
          %v1403 = vand.u32 %v1084, 4294901760
          %v1404 = vsub.f32 %v1084, %v1403
          %v1405 = vand.u32 %v1404, 4294901760
          %v1406 = vsub.f32 %v1404, %v1405
          %v1407 = vand.u32 %v1406, 4294901760
          %1408 = vmatpush1.msra.mxu0 %v1407
          %1409 = vmatprep.subr.mxu0 0.0
          %v1410 = vand.u32 %v1085, 4294901760
          %v1411 = vsub.f32 %v1085, %v1410
          %v1412 = vand.u32 %v1411, 4294901760
          %v1413 = vsub.f32 %v1411, %v1412
          %v1414 = vand.u32 %v1413, 4294901760
          %1415 = vmatpush1.msra.mxu0 %v1414
          %1416 = vmatprep.subr.mxu0 0.0
          %v1417 = vand.u32 %v1086, 4294901760
          %v1418 = vsub.f32 %v1086, %v1417
          %v1419 = vand.u32 %v1418, 4294901760
          %v1420 = vsub.f32 %v1418, %v1419
          %v1421 = vand.u32 %v1420, 4294901760
          %1422 = vmatpush1.msra.mxu0 %v1421
          %1423 = vmatprep.subr.mxu0 0.0
          %v1424 = vand.u32 %v1087, 4294901760
          %v1425 = vsub.f32 %v1087, %v1424
          %v1426 = vand.u32 %v1425, 4294901760
          %v1427 = vsub.f32 %v1425, %v1426
          %v1428 = vand.u32 %v1427, 4294901760
          %1429 = vmatpush1.msra.mxu0 %v1428
          %1430 = vmatprep.subr.mxu0 0.0
          %v1431 = vand.u32 %v1088, 4294901760
          %v1432 = vsub.f32 %v1088, %v1431
          %v1433 = vand.u32 %v1432, 4294901760
          %v1434 = vsub.f32 %v1432, %v1433
          %v1435 = vand.u32 %v1434, 4294901760
          %1436 = vmatpush1.msra.mxu0 %v1435
          %1437 = vmatprep.subr.mxu0 0.0
          %v1438 = vand.u32 %v1089, 4294901760
          %v1439 = vsub.f32 %v1089, %v1438
          %v1440 = vand.u32 %v1439, 4294901760
          %v1441 = vsub.f32 %v1439, %v1440
          %v1442 = vand.u32 %v1441, 4294901760
          %1443 = vmatpush1.msra.mxu0 %v1442
          %1444 = vmatprep.subr.mxu0 0.0
          %v1445 = vand.u32 %v1090, 4294901760
          %v1446 = vsub.f32 %v1090, %v1445
          %v1447 = vand.u32 %v1446, 4294901760
          %v1448 = vsub.f32 %v1446, %v1447
          %v1449 = vand.u32 %v1448, 4294901760
          %1450 = vmatpush1.msra.mxu0 %v1449
          %1451 = vmatprep.subr.mxu0 0.0
          %1452 = vmatpush1.msra.mxu0 0.0
          %1453 = vmatprep.subr.mxu0 0.0
          %1454 = vmatpush1.msra.mxu0 0.0
          %1455 = vmatprep.subr.mxu0 0.0
          %1456 = vmatpush1.msra.mxu0 0.0
          %1457 = vmatprep.subr.mxu0 0.0
          %1458 = vmatpush1.msra.mxu0 0.0
          %1459 = vmatprep.subr.mxu0 0.0
          %1460 = vmatpush1.msra.mxu0 0.0
          %1461 = vmatprep.subr.mxu0 0.0
          %1462 = vmatpush1.msra.mxu0 0.0
          %1463 = vmatprep.subr.mxu0 0.0
          %1464 = vmatpush1.msra.mxu0 0.0
          %1465 = vmatprep.subr.mxu0 0.0
          %1466 = vmatpush1.msra.mxu0 0.0
          %1467 = vmatprep.subr.mxu0 0.0
          %1468 = vmatpush1.msra.mxu0 0.0
          %1469 = vmatprep.subr.mxu0 0.0
          %1470 = vmatpush1.msra.mxu0 0.0
          %1471 = vmatprep.subr.mxu0 0.0
          %1472 = vmatpush1.msra.mxu0 0.0
          %1473 = vmatprep.subr.mxu0 0.0
          %1474 = vmatpush1.msra.mxu0 0.0
          %1475 = vmatprep.subr.mxu0 0.0
          %1476 = vmatpush1.msra.mxu0 0.0
          %1477 = vmatprep.subr.mxu0 0.0
          %1478 = vmatpush1.msra.mxu0 0.0
          %1479 = vmatprep.subr.mxu0 0.0
          %1480 = vmatpush1.msra.mxu0 0.0
          %1481 = vmatprep.subr.mxu0 0.0
          %1482 = vmatpush1.msra.mxu0 0.0
          %1483 = vmatprep.mubr.f32.mxu0 0.0
          %v1484 = vand.u32 %v1059, 4294901760
          %1485 = vmatmul.mubr.f32.gmra.mrb[0].mxu0 %v1484
          %v1486 = vpop.f32.mrb[0].mxu0
          %v1487 = vadd.f32 %v1186, %v1486
          %v1488 = vpop.f32.mrb[0].mxu0
          %1489 = vmatprep.mubr.f32.mxu0 0.0
          %v1490 = vand.u32 %v1060, 4294901760
          %1491 = vmatmul.mubr.f32.gmra.mrb[0].mxu0 %v1490
          %v1492 = vpop.f32.mrb[0].mxu0
          %v1493 = vadd.f32 %v1196, %v1492
          %v1494 = vpop.f32.mrb[0].mxu0
          %1495 = vmatprep.mubr.f32.mxu0 0.0
          %v1496 = vand.u32 %v1061, 4294901760
          %1497 = vmatmul.mubr.f32.gmra.mrb[0].mxu0 %v1496
          %v1498 = vpop.f32.mrb[0].mxu0
          %v1499 = vadd.f32 %v1206, %v1498
          %v1500 = vpop.f32.mrb[0].mxu0
          %1501 = vmatprep.mubr.f32.mxu0 0.0
          %v1502 = vand.u32 %v1062, 4294901760
          %1503 = vmatmul.mubr.f32.gmra.mrb[0].mxu0 %v1502
          %v1504 = vpop.f32.mrb[0].mxu0
          %v1505 = vadd.f32 %v1216, %v1504
          %v1506 = vpop.f32.mrb[0].mxu0
          %1507 = vmatprep.mubr.f32.mxu0 0.0
          %v1508 = vand.u32 %v1063, 4294901760
          %1509 = vmatmul.mubr.f32.gmra.mrb[0].mxu0 %v1508
          %v1510 = vpop.f32.mrb[0].mxu0
          %v1511 = vadd.f32 %v1226, %v1510
          %v1512 = vpop.f32.mrb[0].mxu0
          %1513 = vmatprep.mubr.f32.mxu0 0.0
          %v1514 = vand.u32 %v1064, 4294901760
          %1515 = vmatmul.mubr.f32.gmra.mrb[0].mxu0 %v1514
          %v1516 = vpop.f32.mrb[0].mxu0
          %v1517 = vadd.f32 %v1236, %v1516
          %v1518 = vpop.f32.mrb[0].mxu0
          %1519 = vmatprep.mubr.f32.mxu0 0.0
          %v1520 = vand.u32 %v1065, 4294901760
          %1521 = vmatmul.mubr.f32.gmra.mrb[0].mxu0 %v1520
          %v1522 = vpop.f32.mrb[0].mxu0
          %v1523 = vadd.f32 %v1246, %v1522
          %v1524 = vpop.f32.mrb[0].mxu0
          %1525 = vmatprep.mubr.f32.mxu0 0.0
          %v1526 = vand.u32 %v1066, 4294901760
          %1527 = vmatmul.mubr.f32.gmra.mrb[0].mxu0 %v1526
          %v1528 = vpop.f32.mrb[0].mxu0
          %v1529 = vadd.f32 %v1256, %v1528
          %v1530 = vpop.f32.mrb[0].mxu0
          %1531 = vmatprep.mubr.f32.mxu0 0.0
          %v1532 = vand.u32 %v1067, 4294901760
          %1533 = vmatmul.mubr.f32.gmra.mrb[0].mxu0 %v1532
          %v1534 = vpop.f32.mrb[0].mxu0
          %v1535 = vadd.f32 %v1266, %v1534
          %v1536 = vpop.f32.mrb[0].mxu0
          %1537 = vmatprep.mubr.f32.mxu0 0.0
          %v1538 = vand.u32 %v1068, 4294901760
          %1539 = vmatmul.mubr.f32.gmra.mrb[0].mxu0 %v1538
          %v1540 = vpop.f32.mrb[0].mxu0
          %v1541 = vadd.f32 %v1276, %v1540
          %v1542 = vpop.f32.mrb[0].mxu0
          %1543 = vmatprep.mubr.f32.mxu0 0.0
          %v1544 = vand.u32 %v1069, 4294901760
          %1545 = vmatmul.mubr.f32.gmra.mrb[0].mxu0 %v1544
          %v1546 = vpop.f32.mrb[0].mxu0
          %v1547 = vadd.f32 %v1286, %v1546
          %v1548 = vpop.f32.mrb[0].mxu0
          %1549 = vmatprep.mubr.f32.mxu0 0.0
          %v1550 = vand.u32 %v1070, 4294901760
          %1551 = vmatmul.mubr.f32.gmra.mrb[0].mxu0 %v1550
          %v1552 = vpop.f32.mrb[0].mxu0
          %v1553 = vadd.f32 %v1296, %v1552
          %v1554 = vpop.f32.mrb[0].mxu0
          %1555 = vmatprep.mubr.f32.mxu0 0.0
          %v1556 = vand.u32 %v1071, 4294901760
          %1557 = vmatmul.mubr.f32.gmra.mrb[0].mxu0 %v1556
          %v1558 = vpop.f32.mrb[0].mxu0
          %v1559 = vadd.f32 %v1306, %v1558
          %v1560 = vpop.f32.mrb[0].mxu0
          %1561 = vmatprep.mubr.f32.mxu0 0.0
          %v1562 = vand.u32 %v1072, 4294901760
          %1563 = vmatmul.mubr.f32.gmra.mrb[0].mxu0 %v1562
          %v1564 = vpop.f32.mrb[0].mxu0
          %v1565 = vadd.f32 %v1316, %v1564
          %v1566 = vpop.f32.mrb[0].mxu0
          %1567 = vmatprep.mubr.f32.mxu0 0.0
          %v1568 = vand.u32 %v1073, 4294901760
          %1569 = vmatmul.mubr.f32.gmra.mrb[0].mxu0 %v1568
          %v1570 = vpop.f32.mrb[0].mxu0
          %v1571 = vadd.f32 %v1326, %v1570
          %v1572 = vpop.f32.mrb[0].mxu0
          %1573 = vmatprep.mubr.f32.mxu0 0.0
          %v1574 = vand.u32 %v1074, 4294901760
          %1575 = vmatmul.mubr.f32.gmra.mrb[0].mxu0 %v1574
          %v1576 = vpop.f32.mrb[0].mxu0
          %v1577 = vadd.f32 %v1336, %v1576
          %v1578 = vpop.f32.mrb[0].mxu0
          %1579 = vdwg.mxu0
          %1580 = vmatprep.subr.mxu0 0.0
          %v1581 = vand.u32 %v1075, 4294901760
          %v1582 = vsub.f32 %v1075, %v1581
          %1583 = vmatpush1.msra.mxu0 %v1582
          %1584 = vmatprep.subr.mxu0 0.0
          %v1585 = vand.u32 %v1076, 4294901760
          %v1586 = vsub.f32 %v1076, %v1585
          %1587 = vmatpush1.msra.mxu0 %v1586
          %1588 = vmatprep.subr.mxu0 0.0
          %v1589 = vand.u32 %v1077, 4294901760
          %v1590 = vsub.f32 %v1077, %v1589
          %1591 = vmatpush1.msra.mxu0 %v1590
          %1592 = vmatprep.subr.mxu0 0.0
          %v1593 = vand.u32 %v1078, 4294901760
          %v1594 = vsub.f32 %v1078, %v1593
          %1595 = vmatpush1.msra.mxu0 %v1594
          %1596 = vmatprep.subr.mxu0 0.0
          %v1597 = vand.u32 %v1079, 4294901760
          %v1598 = vsub.f32 %v1079, %v1597
          %1599 = vmatpush1.msra.mxu0 %v1598
          %1600 = vmatprep.subr.mxu0 0.0
          %v1601 = vand.u32 %v1080, 4294901760
          %v1602 = vsub.f32 %v1080, %v1601
          %1603 = vmatpush1.msra.mxu0 %v1602
          %1604 = vmatprep.subr.mxu0 0.0
          %v1605 = vand.u32 %v1081, 4294901760
          %v1606 = vsub.f32 %v1081, %v1605
          %1607 = vmatpush1.msra.mxu0 %v1606
          %1608 = vmatprep.subr.mxu0 0.0
          %v1609 = vand.u32 %v1082, 4294901760
          %v1610 = vsub.f32 %v1082, %v1609
          %1611 = vmatpush1.msra.mxu0 %v1610
          %1612 = vmatprep.subr.mxu0 0.0
          %v1613 = vand.u32 %v1083, 4294901760
          %v1614 = vsub.f32 %v1083, %v1613
          %1615 = vmatpush1.msra.mxu0 %v1614
          %1616 = vmatprep.subr.mxu0 0.0
          %v1617 = vand.u32 %v1084, 4294901760
          %v1618 = vsub.f32 %v1084, %v1617
          %1619 = vmatpush1.msra.mxu0 %v1618
          %1620 = vmatprep.subr.mxu0 0.0
          %v1621 = vand.u32 %v1085, 4294901760
          %v1622 = vsub.f32 %v1085, %v1621
          %1623 = vmatpush1.msra.mxu0 %v1622
          %1624 = vmatprep.subr.mxu0 0.0
          %v1625 = vand.u32 %v1086, 4294901760
          %v1626 = vsub.f32 %v1086, %v1625
          %1627 = vmatpush1.msra.mxu0 %v1626
          %1628 = vmatprep.subr.mxu0 0.0
          %v1629 = vand.u32 %v1087, 4294901760
          %v1630 = vsub.f32 %v1087, %v1629
          %1631 = vmatpush1.msra.mxu0 %v1630
          %1632 = vmatprep.subr.mxu0 0.0
          %v1633 = vand.u32 %v1088, 4294901760
          %v1634 = vsub.f32 %v1088, %v1633
          %1635 = vmatpush1.msra.mxu0 %v1634
          %1636 = vmatprep.subr.mxu0 0.0
          %v1637 = vand.u32 %v1089, 4294901760
          %v1638 = vsub.f32 %v1089, %v1637
          %1639 = vmatpush1.msra.mxu0 %v1638
          %1640 = vmatprep.subr.mxu0 0.0
          %v1641 = vand.u32 %v1090, 4294901760
          %v1642 = vsub.f32 %v1090, %v1641
          %1643 = vmatpush1.msra.mxu0 %v1642
          %1644 = vmatprep.subr.mxu0 0.0
          %1645 = vmatpush1.msra.mxu0 0.0
          %1646 = vmatprep.subr.mxu0 0.0
          %1647 = vmatpush1.msra.mxu0 0.0
          %1648 = vmatprep.subr.mxu0 0.0
          %1649 = vmatpush1.msra.mxu0 0.0
          %1650 = vmatprep.subr.mxu0 0.0
          %1651 = vmatpush1.msra.mxu0 0.0
          %1652 = vmatprep.subr.mxu0 0.0
          %1653 = vmatpush1.msra.mxu0 0.0
          %1654 = vmatprep.subr.mxu0 0.0
          %1655 = vmatpush1.msra.mxu0 0.0
          %1656 = vmatprep.subr.mxu0 0.0
          %1657 = vmatpush1.msra.mxu0 0.0
          %1658 = vmatprep.subr.mxu0 0.0
          %1659 = vmatpush1.msra.mxu0 0.0
          %1660 = vmatprep.subr.mxu0 0.0
          %1661 = vmatpush1.msra.mxu0 0.0
          %1662 = vmatprep.subr.mxu0 0.0
          %1663 = vmatpush1.msra.mxu0 0.0
          %1664 = vmatprep.subr.mxu0 0.0
          %1665 = vmatpush1.msra.mxu0 0.0
          %1666 = vmatprep.subr.mxu0 0.0
          %1667 = vmatpush1.msra.mxu0 0.0
          %1668 = vmatprep.subr.mxu0 0.0
          %1669 = vmatpush1.msra.mxu0 0.0
          %1670 = vmatprep.subr.mxu0 0.0
          %1671 = vmatpush1.msra.mxu0 0.0
          %1672 = vmatprep.subr.mxu0 0.0
          %1673 = vmatpush1.msra.mxu0 0.0
          %1674 = vmatprep.subr.mxu0 0.0
          %1675 = vmatpush1.msra.mxu0 0.0
          %1676 = vmatprep.mubr.f32.mxu0 0.0
          %v1677 = vand.u32 %v1059, 4294901760
          %v1678 = vsub.f32 %v1059, %v1677
          %1679 = vmatmul.mubr.f32.gmra.mrb[0].mxu0 %v1678
          %v1680 = vpop.f32.mrb[0].mxu0
          %v1681 = vadd.f32 %v1487, %v1680
          %v1682 = vpop.f32.mrb[0].mxu0
          %1683 = vmatprep.mubr.f32.mxu0 0.0
          %v1684 = vand.u32 %v1060, 4294901760
          %v1685 = vsub.f32 %v1060, %v1684
          %1686 = vmatmul.mubr.f32.gmra.mrb[0].mxu0 %v1685
          %v1687 = vpop.f32.mrb[0].mxu0
          %v1688 = vadd.f32 %v1493, %v1687
          %v1689 = vpop.f32.mrb[0].mxu0
          %1690 = vmatprep.mubr.f32.mxu0 0.0
          %v1691 = vand.u32 %v1061, 4294901760
          %v1692 = vsub.f32 %v1061, %v1691
          %1693 = vmatmul.mubr.f32.gmra.mrb[0].mxu0 %v1692
          %v1694 = vpop.f32.mrb[0].mxu0
          %v1695 = vadd.f32 %v1499, %v1694
          %v1696 = vpop.f32.mrb[0].mxu0
          %1697 = vmatprep.mubr.f32.mxu0 0.0
          %v1698 = vand.u32 %v1062, 4294901760
          %v1699 = vsub.f32 %v1062, %v1698
          %1700 = vmatmul.mubr.f32.gmra.mrb[0].mxu0 %v1699
          %v1701 = vpop.f32.mrb[0].mxu0
          %v1702 = vadd.f32 %v1505, %v1701
          %v1703 = vpop.f32.mrb[0].mxu0
          %1704 = vmatprep.mubr.f32.mxu0 0.0
          %v1705 = vand.u32 %v1063, 4294901760
          %v1706 = vsub.f32 %v1063, %v1705
          %1707 = vmatmul.mubr.f32.gmra.mrb[0].mxu0 %v1706
          %v1708 = vpop.f32.mrb[0].mxu0
          %v1709 = vadd.f32 %v1511, %v1708
          %v1710 = vpop.f32.mrb[0].mxu0
          %1711 = vmatprep.mubr.f32.mxu0 0.0
          %v1712 = vand.u32 %v1064, 4294901760
          %v1713 = vsub.f32 %v1064, %v1712
          %1714 = vmatmul.mubr.f32.gmra.mrb[0].mxu0 %v1713
          %v1715 = vpop.f32.mrb[0].mxu0
          %v1716 = vadd.f32 %v1517, %v1715
          %v1717 = vpop.f32.mrb[0].mxu0
          %1718 = vmatprep.mubr.f32.mxu0 0.0
          %v1719 = vand.u32 %v1065, 4294901760
          %v1720 = vsub.f32 %v1065, %v1719
          %1721 = vmatmul.mubr.f32.gmra.mrb[0].mxu0 %v1720
          %v1722 = vpop.f32.mrb[0].mxu0
          %v1723 = vadd.f32 %v1523, %v1722
          %v1724 = vpop.f32.mrb[0].mxu0
          %1725 = vmatprep.mubr.f32.mxu0 0.0
          %v1726 = vand.u32 %v1066, 4294901760
          %v1727 = vsub.f32 %v1066, %v1726
          %1728 = vmatmul.mubr.f32.gmra.mrb[0].mxu0 %v1727
          %v1729 = vpop.f32.mrb[0].mxu0
          %v1730 = vadd.f32 %v1529, %v1729
          %v1731 = vpop.f32.mrb[0].mxu0
          %1732 = vmatprep.mubr.f32.mxu0 0.0
          %v1733 = vand.u32 %v1067, 4294901760
          %v1734 = vsub.f32 %v1067, %v1733
          %1735 = vmatmul.mubr.f32.gmra.mrb[0].mxu0 %v1734
          %v1736 = vpop.f32.mrb[0].mxu0
          %v1737 = vadd.f32 %v1535, %v1736
          %v1738 = vpop.f32.mrb[0].mxu0
          %1739 = vmatprep.mubr.f32.mxu0 0.0
          %v1740 = vand.u32 %v1068, 4294901760
          %v1741 = vsub.f32 %v1068, %v1740
          %1742 = vmatmul.mubr.f32.gmra.mrb[0].mxu0 %v1741
          %v1743 = vpop.f32.mrb[0].mxu0
          %v1744 = vadd.f32 %v1541, %v1743
          %v1745 = vpop.f32.mrb[0].mxu0
          %1746 = vmatprep.mubr.f32.mxu0 0.0
          %v1747 = vand.u32 %v1069, 4294901760
          %v1748 = vsub.f32 %v1069, %v1747
          %1749 = vmatmul.mubr.f32.gmra.mrb[0].mxu0 %v1748
          %v1750 = vpop.f32.mrb[0].mxu0
          %v1751 = vadd.f32 %v1547, %v1750
          %v1752 = vpop.f32.mrb[0].mxu0
          %1753 = vmatprep.mubr.f32.mxu0 0.0
          %v1754 = vand.u32 %v1070, 4294901760
          %v1755 = vsub.f32 %v1070, %v1754
          %1756 = vmatmul.mubr.f32.gmra.mrb[0].mxu0 %v1755
          %v1757 = vpop.f32.mrb[0].mxu0
          %v1758 = vadd.f32 %v1553, %v1757
          %v1759 = vpop.f32.mrb[0].mxu0
          %1760 = vmatprep.mubr.f32.mxu0 0.0
          %v1761 = vand.u32 %v1071, 4294901760
          %v1762 = vsub.f32 %v1071, %v1761
          %1763 = vmatmul.mubr.f32.gmra.mrb[0].mxu0 %v1762
          %v1764 = vpop.f32.mrb[0].mxu0
          %v1765 = vadd.f32 %v1559, %v1764
          %v1766 = vpop.f32.mrb[0].mxu0
          %1767 = vmatprep.mubr.f32.mxu0 0.0
          %v1768 = vand.u32 %v1072, 4294901760
          %v1769 = vsub.f32 %v1072, %v1768
          %1770 = vmatmul.mubr.f32.gmra.mrb[0].mxu0 %v1769
          %v1771 = vpop.f32.mrb[0].mxu0
          %v1772 = vadd.f32 %v1565, %v1771
          %v1773 = vpop.f32.mrb[0].mxu0
          %1774 = vmatprep.mubr.f32.mxu0 0.0
          %v1775 = vand.u32 %v1073, 4294901760
          %v1776 = vsub.f32 %v1073, %v1775
          %1777 = vmatmul.mubr.f32.gmra.mrb[0].mxu0 %v1776
          %v1778 = vpop.f32.mrb[0].mxu0
          %v1779 = vadd.f32 %v1571, %v1778
          %v1780 = vpop.f32.mrb[0].mxu0
          %1781 = vmatprep.mubr.f32.mxu0 0.0
          %v1782 = vand.u32 %v1074, 4294901760
          %v1783 = vsub.f32 %v1074, %v1782
          %1784 = vmatmul.mubr.f32.gmra.mrb[0].mxu0 %v1783
          %v1785 = vpop.f32.mrb[0].mxu0
          %v1786 = vadd.f32 %v1577, %v1785
          %v1787 = vpop.f32.mrb[0].mxu0
          %1788 = vdwg.mxu0
          %1789 = vmatprep.subr.mxu0 0.0
          %v1790 = vand.u32 %v1075, 4294901760
          %1791 = vmatpush1.msra.mxu0 %v1790
          %1792 = vmatprep.subr.mxu0 0.0
          %v1793 = vand.u32 %v1076, 4294901760
          %1794 = vmatpush1.msra.mxu0 %v1793
          %1795 = vmatprep.subr.mxu0 0.0
          %v1796 = vand.u32 %v1077, 4294901760
          %1797 = vmatpush1.msra.mxu0 %v1796
          %1798 = vmatprep.subr.mxu0 0.0
          %v1799 = vand.u32 %v1078, 4294901760
          %1800 = vmatpush1.msra.mxu0 %v1799
          %1801 = vmatprep.subr.mxu0 0.0
          %v1802 = vand.u32 %v1079, 4294901760
          %1803 = vmatpush1.msra.mxu0 %v1802
          %1804 = vmatprep.subr.mxu0 0.0
          %v1805 = vand.u32 %v1080, 4294901760
          %1806 = vmatpush1.msra.mxu0 %v1805
          %1807 = vmatprep.subr.mxu0 0.0
          %v1808 = vand.u32 %v1081, 4294901760
          %1809 = vmatpush1.msra.mxu0 %v1808
          %1810 = vmatprep.subr.mxu0 0.0
          %v1811 = vand.u32 %v1082, 4294901760
          %1812 = vmatpush1.msra.mxu0 %v1811
          %1813 = vmatprep.subr.mxu0 0.0
          %v1814 = vand.u32 %v1083, 4294901760
          %1815 = vmatpush1.msra.mxu0 %v1814
          %1816 = vmatprep.subr.mxu0 0.0
          %v1817 = vand.u32 %v1084, 4294901760
          %1818 = vmatpush1.msra.mxu0 %v1817
          %1819 = vmatprep.subr.mxu0 0.0
          %v1820 = vand.u32 %v1085, 4294901760
          %1821 = vmatpush1.msra.mxu0 %v1820
          %1822 = vmatprep.subr.mxu0 0.0
          %v1823 = vand.u32 %v1086, 4294901760
          %1824 = vmatpush1.msra.mxu0 %v1823
          %1825 = vmatprep.subr.mxu0 0.0
          %v1826 = vand.u32 %v1087, 4294901760
          %1827 = vmatpush1.msra.mxu0 %v1826
          %1828 = vmatprep.subr.mxu0 0.0
          %v1829 = vand.u32 %v1088, 4294901760
          %1830 = vmatpush1.msra.mxu0 %v1829
          %1831 = vmatprep.subr.mxu0 0.0
          %v1832 = vand.u32 %v1089, 4294901760
          %1833 = vmatpush1.msra.mxu0 %v1832
          %1834 = vmatprep.subr.mxu0 0.0
          %v1835 = vand.u32 %v1090, 4294901760
          %1836 = vmatpush1.msra.mxu0 %v1835
          %1837 = vmatprep.subr.mxu0 0.0
          %1838 = vmatpush1.msra.mxu0 0.0
          %1839 = vmatprep.subr.mxu0 0.0
          %1840 = vmatpush1.msra.mxu0 0.0
          %1841 = vmatprep.subr.mxu0 0.0
          %1842 = vmatpush1.msra.mxu0 0.0
          %1843 = vmatprep.subr.mxu0 0.0
          %1844 = vmatpush1.msra.mxu0 0.0
          %1845 = vmatprep.subr.mxu0 0.0
          %1846 = vmatpush1.msra.mxu0 0.0
          %1847 = vmatprep.subr.mxu0 0.0
          %1848 = vmatpush1.msra.mxu0 0.0
          %1849 = vmatprep.subr.mxu0 0.0
          %1850 = vmatpush1.msra.mxu0 0.0
          %1851 = vmatprep.subr.mxu0 0.0
          %1852 = vmatpush1.msra.mxu0 0.0
          %1853 = vmatprep.subr.mxu0 0.0
          %1854 = vmatpush1.msra.mxu0 0.0
          %1855 = vmatprep.subr.mxu0 0.0
          %1856 = vmatpush1.msra.mxu0 0.0
          %1857 = vmatprep.subr.mxu0 0.0
          %1858 = vmatpush1.msra.mxu0 0.0
          %1859 = vmatprep.subr.mxu0 0.0
          %1860 = vmatpush1.msra.mxu0 0.0
          %1861 = vmatprep.subr.mxu0 0.0
          %1862 = vmatpush1.msra.mxu0 0.0
          %1863 = vmatprep.subr.mxu0 0.0
          %1864 = vmatpush1.msra.mxu0 0.0
          %1865 = vmatprep.subr.mxu0 0.0
          %1866 = vmatpush1.msra.mxu0 0.0
          %1867 = vmatprep.subr.mxu0 0.0
          %1868 = vmatpush1.msra.mxu0 0.0
          %1869 = vmatprep.mubr.f32.mxu0 0.0
          %v1870 = vand.u32 %v1059, 4294901760
          %v1871 = vsub.f32 %v1059, %v1870
          %v1872 = vand.u32 %v1871, 4294901760
          %1873 = vmatmul.mubr.f32.gmra.mrb[0].mxu0 %v1872
          %v1874 = vpop.f32.mrb[0].mxu0
          %v1875 = vadd.f32 %v1681, %v1874
          %v1876 = vpop.f32.mrb[0].mxu0
          %1877 = vmatprep.mubr.f32.mxu0 0.0
          %v1878 = vand.u32 %v1060, 4294901760
          %v1879 = vsub.f32 %v1060, %v1878
          %v1880 = vand.u32 %v1879, 4294901760
          %1881 = vmatmul.mubr.f32.gmra.mrb[0].mxu0 %v1880
          %v1882 = vpop.f32.mrb[0].mxu0
          %v1883 = vadd.f32 %v1688, %v1882
          %v1884 = vpop.f32.mrb[0].mxu0
          %1885 = vmatprep.mubr.f32.mxu0 0.0
          %v1886 = vand.u32 %v1061, 4294901760
          %v1887 = vsub.f32 %v1061, %v1886
          %v1888 = vand.u32 %v1887, 4294901760
          %1889 = vmatmul.mubr.f32.gmra.mrb[0].mxu0 %v1888
          %v1890 = vpop.f32.mrb[0].mxu0
          %v1891 = vadd.f32 %v1695, %v1890
          %v1892 = vpop.f32.mrb[0].mxu0
          %1893 = vmatprep.mubr.f32.mxu0 0.0
          %v1894 = vand.u32 %v1062, 4294901760
          %v1895 = vsub.f32 %v1062, %v1894
          %v1896 = vand.u32 %v1895, 4294901760
          %1897 = vmatmul.mubr.f32.gmra.mrb[0].mxu0 %v1896
          %v1898 = vpop.f32.mrb[0].mxu0
          %v1899 = vadd.f32 %v1702, %v1898
          %v1900 = vpop.f32.mrb[0].mxu0
          %1901 = vmatprep.mubr.f32.mxu0 0.0
          %v1902 = vand.u32 %v1063, 4294901760
          %v1903 = vsub.f32 %v1063, %v1902
          %v1904 = vand.u32 %v1903, 4294901760
          %1905 = vmatmul.mubr.f32.gmra.mrb[0].mxu0 %v1904
          %v1906 = vpop.f32.mrb[0].mxu0
          %v1907 = vadd.f32 %v1709, %v1906
          %v1908 = vpop.f32.mrb[0].mxu0
          %1909 = vmatprep.mubr.f32.mxu0 0.0
          %v1910 = vand.u32 %v1064, 4294901760
          %v1911 = vsub.f32 %v1064, %v1910
          %v1912 = vand.u32 %v1911, 4294901760
          %1913 = vmatmul.mubr.f32.gmra.mrb[0].mxu0 %v1912
          %v1914 = vpop.f32.mrb[0].mxu0
          %v1915 = vadd.f32 %v1716, %v1914
          %v1916 = vpop.f32.mrb[0].mxu0
          %1917 = vmatprep.mubr.f32.mxu0 0.0
          %v1918 = vand.u32 %v1065, 4294901760
          %v1919 = vsub.f32 %v1065, %v1918
          %v1920 = vand.u32 %v1919, 4294901760
          %1921 = vmatmul.mubr.f32.gmra.mrb[0].mxu0 %v1920
          %v1922 = vpop.f32.mrb[0].mxu0
          %v1923 = vadd.f32 %v1723, %v1922
          %v1924 = vpop.f32.mrb[0].mxu0
          %1925 = vmatprep.mubr.f32.mxu0 0.0
          %v1926 = vand.u32 %v1066, 4294901760
          %v1927 = vsub.f32 %v1066, %v1926
          %v1928 = vand.u32 %v1927, 4294901760
          %1929 = vmatmul.mubr.f32.gmra.mrb[0].mxu0 %v1928
          %v1930 = vpop.f32.mrb[0].mxu0
          %v1931 = vadd.f32 %v1730, %v1930
          %v1932 = vpop.f32.mrb[0].mxu0
          %1933 = vmatprep.mubr.f32.mxu0 0.0
          %v1934 = vand.u32 %v1067, 4294901760
          %v1935 = vsub.f32 %v1067, %v1934
          %v1936 = vand.u32 %v1935, 4294901760
          %1937 = vmatmul.mubr.f32.gmra.mrb[0].mxu0 %v1936
          %v1938 = vpop.f32.mrb[0].mxu0
          %v1939 = vadd.f32 %v1737, %v1938
          %v1940 = vpop.f32.mrb[0].mxu0
          %1941 = vmatprep.mubr.f32.mxu0 0.0
          %v1942 = vand.u32 %v1068, 4294901760
          %v1943 = vsub.f32 %v1068, %v1942
          %v1944 = vand.u32 %v1943, 4294901760
          %1945 = vmatmul.mubr.f32.gmra.mrb[0].mxu0 %v1944
          %v1946 = vpop.f32.mrb[0].mxu0
          %v1947 = vadd.f32 %v1744, %v1946
          %v1948 = vpop.f32.mrb[0].mxu0
          %1949 = vmatprep.mubr.f32.mxu0 0.0
          %v1950 = vand.u32 %v1069, 4294901760
          %v1951 = vsub.f32 %v1069, %v1950
          %v1952 = vand.u32 %v1951, 4294901760
          %1953 = vmatmul.mubr.f32.gmra.mrb[0].mxu0 %v1952
          %v1954 = vpop.f32.mrb[0].mxu0
          %v1955 = vadd.f32 %v1751, %v1954
          %v1956 = vpop.f32.mrb[0].mxu0
          %1957 = vmatprep.mubr.f32.mxu0 0.0
          %v1958 = vand.u32 %v1070, 4294901760
          %v1959 = vsub.f32 %v1070, %v1958
          %v1960 = vand.u32 %v1959, 4294901760
          %1961 = vmatmul.mubr.f32.gmra.mrb[0].mxu0 %v1960
          %v1962 = vpop.f32.mrb[0].mxu0
          %v1963 = vadd.f32 %v1758, %v1962
          %v1964 = vpop.f32.mrb[0].mxu0
          %1965 = vmatprep.mubr.f32.mxu0 0.0
          %v1966 = vand.u32 %v1071, 4294901760
          %v1967 = vsub.f32 %v1071, %v1966
          %v1968 = vand.u32 %v1967, 4294901760
          %1969 = vmatmul.mubr.f32.gmra.mrb[0].mxu0 %v1968
          %v1970 = vpop.f32.mrb[0].mxu0
          %v1971 = vadd.f32 %v1765, %v1970
          %v1972 = vpop.f32.mrb[0].mxu0
          %1973 = vmatprep.mubr.f32.mxu0 0.0
          %v1974 = vand.u32 %v1072, 4294901760
          %v1975 = vsub.f32 %v1072, %v1974
          %v1976 = vand.u32 %v1975, 4294901760
          %1977 = vmatmul.mubr.f32.gmra.mrb[0].mxu0 %v1976
          %v1978 = vpop.f32.mrb[0].mxu0
          %v1979 = vadd.f32 %v1772, %v1978
          %v1980 = vpop.f32.mrb[0].mxu0
          %1981 = vmatprep.mubr.f32.mxu0 0.0
          %v1982 = vand.u32 %v1073, 4294901760
          %v1983 = vsub.f32 %v1073, %v1982
          %v1984 = vand.u32 %v1983, 4294901760
          %1985 = vmatmul.mubr.f32.gmra.mrb[0].mxu0 %v1984
          %v1986 = vpop.f32.mrb[0].mxu0
          %v1987 = vadd.f32 %v1779, %v1986
          %v1988 = vpop.f32.mrb[0].mxu0
          %1989 = vmatprep.mubr.f32.mxu0 0.0
          %v1990 = vand.u32 %v1074, 4294901760
          %v1991 = vsub.f32 %v1074, %v1990
          %v1992 = vand.u32 %v1991, 4294901760
          %1993 = vmatmul.mubr.f32.gmra.mrb[0].mxu0 %v1992
          %v1994 = vpop.f32.mrb[0].mxu0
          %v1995 = vadd.f32 %v1786, %v1994
          %v1996 = vpop.f32.mrb[0].mxu0
          %1997 = vdwg.mxu0
          %1998 = vmatprep.subr.mxu0 0.0
          %v1999 = vand.u32 %v1075, 4294901760
          %v2000 = vsub.f32 %v1075, %v1999
          %v2001 = vand.u32 %v2000, 4294901760
          %2002 = vmatpush1.msra.mxu0 %v2001
          %2003 = vmatprep.subr.mxu0 0.0
          %v2004 = vand.u32 %v1076, 4294901760
          %v2005 = vsub.f32 %v1076, %v2004
          %v2006 = vand.u32 %v2005, 4294901760
          %2007 = vmatpush1.msra.mxu0 %v2006
          %2008 = vmatprep.subr.mxu0 0.0
          %v2009 = vand.u32 %v1077, 4294901760
          %v2010 = vsub.f32 %v1077, %v2009
          %v2011 = vand.u32 %v2010, 4294901760
          %2012 = vmatpush1.msra.mxu0 %v2011
          %2013 = vmatprep.subr.mxu0 0.0
          %v2014 = vand.u32 %v1078, 4294901760
          %v2015 = vsub.f32 %v1078, %v2014
          %v2016 = vand.u32 %v2015, 4294901760
          %2017 = vmatpush1.msra.mxu0 %v2016
          %2018 = vmatprep.subr.mxu0 0.0
          %v2019 = vand.u32 %v1079, 4294901760
          %v2020 = vsub.f32 %v1079, %v2019
          %v2021 = vand.u32 %v2020, 4294901760
          %2022 = vmatpush1.msra.mxu0 %v2021
          %2023 = vmatprep.subr.mxu0 0.0
          %v2024 = vand.u32 %v1080, 4294901760
          %v2025 = vsub.f32 %v1080, %v2024
          %v2026 = vand.u32 %v2025, 4294901760
          %2027 = vmatpush1.msra.mxu0 %v2026
          %2028 = vmatprep.subr.mxu0 0.0
          %v2029 = vand.u32 %v1081, 4294901760
          %v2030 = vsub.f32 %v1081, %v2029
          %v2031 = vand.u32 %v2030, 4294901760
          %2032 = vmatpush1.msra.mxu0 %v2031
          %2033 = vmatprep.subr.mxu0 0.0
          %v2034 = vand.u32 %v1082, 4294901760
          %v2035 = vsub.f32 %v1082, %v2034
          %v2036 = vand.u32 %v2035, 4294901760
          %2037 = vmatpush1.msra.mxu0 %v2036
          %2038 = vmatprep.subr.mxu0 0.0
          %v2039 = vand.u32 %v1083, 4294901760
          %v2040 = vsub.f32 %v1083, %v2039
          %v2041 = vand.u32 %v2040, 4294901760
          %2042 = vmatpush1.msra.mxu0 %v2041
          %2043 = vmatprep.subr.mxu0 0.0
          %v2044 = vand.u32 %v1084, 4294901760
          %v2045 = vsub.f32 %v1084, %v2044
          %v2046 = vand.u32 %v2045, 4294901760
          %2047 = vmatpush1.msra.mxu0 %v2046
          %2048 = vmatprep.subr.mxu0 0.0
          %v2049 = vand.u32 %v1085, 4294901760
          %v2050 = vsub.f32 %v1085, %v2049
          %v2051 = vand.u32 %v2050, 4294901760
          %2052 = vmatpush1.msra.mxu0 %v2051
          %2053 = vmatprep.subr.mxu0 0.0
          %v2054 = vand.u32 %v1086, 4294901760
          %v2055 = vsub.f32 %v1086, %v2054
          %v2056 = vand.u32 %v2055, 4294901760
          %2057 = vmatpush1.msra.mxu0 %v2056
          %2058 = vmatprep.subr.mxu0 0.0
          %v2059 = vand.u32 %v1087, 4294901760
          %v2060 = vsub.f32 %v1087, %v2059
          %v2061 = vand.u32 %v2060, 4294901760
          %2062 = vmatpush1.msra.mxu0 %v2061
          %2063 = vmatprep.subr.mxu0 0.0
          %v2064 = vand.u32 %v1088, 4294901760
          %v2065 = vsub.f32 %v1088, %v2064
          %v2066 = vand.u32 %v2065, 4294901760
          %2067 = vmatpush1.msra.mxu0 %v2066
          %2068 = vmatprep.subr.mxu0 0.0
          %v2069 = vand.u32 %v1089, 4294901760
          %v2070 = vsub.f32 %v1089, %v2069
          %v2071 = vand.u32 %v2070, 4294901760
          %2072 = vmatpush1.msra.mxu0 %v2071
          %2073 = vmatprep.subr.mxu0 0.0
          %v2074 = vand.u32 %v1090, 4294901760
          %v2075 = vsub.f32 %v1090, %v2074
          %v2076 = vand.u32 %v2075, 4294901760
          %2077 = vmatpush1.msra.mxu0 %v2076
          %2078 = vmatprep.subr.mxu0 0.0
          %2079 = vmatpush1.msra.mxu0 0.0
          %2080 = vmatprep.subr.mxu0 0.0
          %2081 = vmatpush1.msra.mxu0 0.0
          %2082 = vmatprep.subr.mxu0 0.0
          %2083 = vmatpush1.msra.mxu0 0.0
          %2084 = vmatprep.subr.mxu0 0.0
          %2085 = vmatpush1.msra.mxu0 0.0
          %2086 = vmatprep.subr.mxu0 0.0
          %2087 = vmatpush1.msra.mxu0 0.0
          %2088 = vmatprep.subr.mxu0 0.0
          %2089 = vmatpush1.msra.mxu0 0.0
          %2090 = vmatprep.subr.mxu0 0.0
          %2091 = vmatpush1.msra.mxu0 0.0
          %2092 = vmatprep.subr.mxu0 0.0
          %2093 = vmatpush1.msra.mxu0 0.0
          %2094 = vmatprep.subr.mxu0 0.0
          %2095 = vmatpush1.msra.mxu0 0.0
          %2096 = vmatprep.subr.mxu0 0.0
          %2097 = vmatpush1.msra.mxu0 0.0
          %2098 = vmatprep.subr.mxu0 0.0
          %2099 = vmatpush1.msra.mxu0 0.0
          %2100 = vmatprep.subr.mxu0 0.0
          %2101 = vmatpush1.msra.mxu0 0.0
          %2102 = vmatprep.subr.mxu0 0.0
          %2103 = vmatpush1.msra.mxu0 0.0
          %2104 = vmatprep.subr.mxu0 0.0
          %2105 = vmatpush1.msra.mxu0 0.0
          %2106 = vmatprep.subr.mxu0 0.0
          %2107 = vmatpush1.msra.mxu0 0.0
          %2108 = vmatprep.subr.mxu0 0.0
          %2109 = vmatpush1.msra.mxu0 0.0
          %2110 = vmatprep.mubr.f32.mxu0 0.0
          %v2111 = vand.u32 %v1059, 4294901760
          %2112 = vmatmul.mubr.f32.gmra.mrb[0].mxu0 %v2111
          %v2113 = vpop.f32.mrb[0].mxu0
          %v2114 = vadd.f32 %v1875, %v2113
          %v2115 = vpop.f32.mrb[0].mxu0
          %2116 = vmatprep.mubr.f32.mxu0 0.0
          %v2117 = vand.u32 %v1060, 4294901760
          %2118 = vmatmul.mubr.f32.gmra.mrb[0].mxu0 %v2117
          %v2119 = vpop.f32.mrb[0].mxu0
          %v2120 = vadd.f32 %v1883, %v2119
          %v2121 = vpop.f32.mrb[0].mxu0
          %2122 = vmatprep.mubr.f32.mxu0 0.0
          %v2123 = vand.u32 %v1061, 4294901760
          %2124 = vmatmul.mubr.f32.gmra.mrb[0].mxu0 %v2123
          %v2125 = vpop.f32.mrb[0].mxu0
          %v2126 = vadd.f32 %v1891, %v2125
          %v2127 = vpop.f32.mrb[0].mxu0
          %2128 = vmatprep.mubr.f32.mxu0 0.0
          %v2129 = vand.u32 %v1062, 4294901760
          %2130 = vmatmul.mubr.f32.gmra.mrb[0].mxu0 %v2129
          %v2131 = vpop.f32.mrb[0].mxu0
          %v2132 = vadd.f32 %v1899, %v2131
          %v2133 = vpop.f32.mrb[0].mxu0
          %2134 = vmatprep.mubr.f32.mxu0 0.0
          %v2135 = vand.u32 %v1063, 4294901760
          %2136 = vmatmul.mubr.f32.gmra.mrb[0].mxu0 %v2135
          %v2137 = vpop.f32.mrb[0].mxu0
          %v2138 = vadd.f32 %v1907, %v2137
          %v2139 = vpop.f32.mrb[0].mxu0
          %2140 = vmatprep.mubr.f32.mxu0 0.0
          %v2141 = vand.u32 %v1064, 4294901760
          %2142 = vmatmul.mubr.f32.gmra.mrb[0].mxu0 %v2141
          %v2143 = vpop.f32.mrb[0].mxu0
          %v2144 = vadd.f32 %v1915, %v2143
          %v2145 = vpop.f32.mrb[0].mxu0
          %2146 = vmatprep.mubr.f32.mxu0 0.0
          %v2147 = vand.u32 %v1065, 4294901760
          %2148 = vmatmul.mubr.f32.gmra.mrb[0].mxu0 %v2147
          %v2149 = vpop.f32.mrb[0].mxu0
          %v2150 = vadd.f32 %v1923, %v2149
          %v2151 = vpop.f32.mrb[0].mxu0
          %2152 = vmatprep.mubr.f32.mxu0 0.0
          %v2153 = vand.u32 %v1066, 4294901760
          %2154 = vmatmul.mubr.f32.gmra.mrb[0].mxu0 %v2153
          %v2155 = vpop.f32.mrb[0].mxu0
          %v2156 = vadd.f32 %v1931, %v2155
          %v2157 = vpop.f32.mrb[0].mxu0
          %2158 = vmatprep.mubr.f32.mxu0 0.0
          %v2159 = vand.u32 %v1067, 4294901760
          %2160 = vmatmul.mubr.f32.gmra.mrb[0].mxu0 %v2159
          %v2161 = vpop.f32.mrb[0].mxu0
          %v2162 = vadd.f32 %v1939, %v2161
          %v2163 = vpop.f32.mrb[0].mxu0
          %2164 = vmatprep.mubr.f32.mxu0 0.0
          %v2165 = vand.u32 %v1068, 4294901760
          %2166 = vmatmul.mubr.f32.gmra.mrb[0].mxu0 %v2165
          %v2167 = vpop.f32.mrb[0].mxu0
          %v2168 = vadd.f32 %v1947, %v2167
          %v2169 = vpop.f32.mrb[0].mxu0
          %2170 = vmatprep.mubr.f32.mxu0 0.0
          %v2171 = vand.u32 %v1069, 4294901760
          %2172 = vmatmul.mubr.f32.gmra.mrb[0].mxu0 %v2171
          %v2173 = vpop.f32.mrb[0].mxu0
          %v2174 = vadd.f32 %v1955, %v2173
          %v2175 = vpop.f32.mrb[0].mxu0
          %2176 = vmatprep.mubr.f32.mxu0 0.0
          %v2177 = vand.u32 %v1070, 4294901760
          %2178 = vmatmul.mubr.f32.gmra.mrb[0].mxu0 %v2177
          %v2179 = vpop.f32.mrb[0].mxu0
          %v2180 = vadd.f32 %v1963, %v2179
          %v2181 = vpop.f32.mrb[0].mxu0
          %2182 = vmatprep.mubr.f32.mxu0 0.0
          %v2183 = vand.u32 %v1071, 4294901760
          %2184 = vmatmul.mubr.f32.gmra.mrb[0].mxu0 %v2183
          %v2185 = vpop.f32.mrb[0].mxu0
          %v2186 = vadd.f32 %v1971, %v2185
          %v2187 = vpop.f32.mrb[0].mxu0
          %2188 = vmatprep.mubr.f32.mxu0 0.0
          %v2189 = vand.u32 %v1072, 4294901760
          %2190 = vmatmul.mubr.f32.gmra.mrb[0].mxu0 %v2189
          %v2191 = vpop.f32.mrb[0].mxu0
          %v2192 = vadd.f32 %v1979, %v2191
          %v2193 = vpop.f32.mrb[0].mxu0
          %2194 = vmatprep.mubr.f32.mxu0 0.0
          %v2195 = vand.u32 %v1073, 4294901760
          %2196 = vmatmul.mubr.f32.gmra.mrb[0].mxu0 %v2195
          %v2197 = vpop.f32.mrb[0].mxu0
          %v2198 = vadd.f32 %v1987, %v2197
          %v2199 = vpop.f32.mrb[0].mxu0
          %2200 = vmatprep.mubr.f32.mxu0 0.0
          %v2201 = vand.u32 %v1074, 4294901760
          %2202 = vmatmul.mubr.f32.gmra.mrb[0].mxu0 %v2201
          %v2203 = vpop.f32.mrb[0].mxu0
          %v2204 = vadd.f32 %v1995, %v2203
          %v2205 = vpop.f32.mrb[0].mxu0
          %2206 = vdwg.mxu0
          %2207 = vmatprep.subr.mxu0 0.0
          %v2208 = vand.u32 %v1075, 4294901760
          %2209 = vmatpush1.msra.mxu0 %v2208
          %2210 = vmatprep.subr.mxu0 0.0
          %v2211 = vand.u32 %v1076, 4294901760
          %2212 = vmatpush1.msra.mxu0 %v2211
          %2213 = vmatprep.subr.mxu0 0.0
          %v2214 = vand.u32 %v1077, 4294901760
          %2215 = vmatpush1.msra.mxu0 %v2214
          %2216 = vmatprep.subr.mxu0 0.0
          %v2217 = vand.u32 %v1078, 4294901760
          %2218 = vmatpush1.msra.mxu0 %v2217
          %2219 = vmatprep.subr.mxu0 0.0
          %v2220 = vand.u32 %v1079, 4294901760
          %2221 = vmatpush1.msra.mxu0 %v2220
          %2222 = vmatprep.subr.mxu0 0.0
          %v2223 = vand.u32 %v1080, 4294901760
          %2224 = vmatpush1.msra.mxu0 %v2223
          %2225 = vmatprep.subr.mxu0 0.0
          %v2226 = vand.u32 %v1081, 4294901760
          %2227 = vmatpush1.msra.mxu0 %v2226
          %2228 = vmatprep.subr.mxu0 0.0
          %v2229 = vand.u32 %v1082, 4294901760
          %2230 = vmatpush1.msra.mxu0 %v2229
          %2231 = vmatprep.subr.mxu0 0.0
          %v2232 = vand.u32 %v1083, 4294901760
          %2233 = vmatpush1.msra.mxu0 %v2232
          %2234 = vmatprep.subr.mxu0 0.0
          %v2235 = vand.u32 %v1084, 4294901760
          %2236 = vmatpush1.msra.mxu0 %v2235
          %2237 = vmatprep.subr.mxu0 0.0
          %v2238 = vand.u32 %v1085, 4294901760
          %2239 = vmatpush1.msra.mxu0 %v2238
          %2240 = vmatprep.subr.mxu0 0.0
          %v2241 = vand.u32 %v1086, 4294901760
          %2242 = vmatpush1.msra.mxu0 %v2241
          %2243 = vmatprep.subr.mxu0 0.0
          %v2244 = vand.u32 %v1087, 4294901760
          %2245 = vmatpush1.msra.mxu0 %v2244
          %2246 = vmatprep.subr.mxu0 0.0
          %v2247 = vand.u32 %v1088, 4294901760
          %2248 = vmatpush1.msra.mxu0 %v2247
          %2249 = vmatprep.subr.mxu0 0.0
          %v2250 = vand.u32 %v1089, 4294901760
          %2251 = vmatpush1.msra.mxu0 %v2250
          %2252 = vmatprep.subr.mxu0 0.0
          %v2253 = vand.u32 %v1090, 4294901760
          %2254 = vmatpush1.msra.mxu0 %v2253
          %2255 = vmatprep.subr.mxu0 0.0
          %2256 = vmatpush1.msra.mxu0 0.0
          %2257 = vmatprep.subr.mxu0 0.0
          %2258 = vmatpush1.msra.mxu0 0.0
          %2259 = vmatprep.subr.mxu0 0.0
          %2260 = vmatpush1.msra.mxu0 0.0
          %2261 = vmatprep.subr.mxu0 0.0
          %2262 = vmatpush1.msra.mxu0 0.0
          %2263 = vmatprep.subr.mxu0 0.0
          %2264 = vmatpush1.msra.mxu0 0.0
          %2265 = vmatprep.subr.mxu0 0.0
          %2266 = vmatpush1.msra.mxu0 0.0
          %2267 = vmatprep.subr.mxu0 0.0
          %2268 = vmatpush1.msra.mxu0 0.0
          %2269 = vmatprep.subr.mxu0 0.0
          %2270 = vmatpush1.msra.mxu0 0.0
          %2271 = vmatprep.subr.mxu0 0.0
          %2272 = vmatpush1.msra.mxu0 0.0
          %2273 = vmatprep.subr.mxu0 0.0
          %2274 = vmatpush1.msra.mxu0 0.0
          %2275 = vmatprep.subr.mxu0 0.0
          %2276 = vmatpush1.msra.mxu0 0.0
          %2277 = vmatprep.subr.mxu0 0.0
          %2278 = vmatpush1.msra.mxu0 0.0
          %2279 = vmatprep.subr.mxu0 0.0
          %2280 = vmatpush1.msra.mxu0 0.0
          %2281 = vmatprep.subr.mxu0 0.0
          %2282 = vmatpush1.msra.mxu0 0.0
          %2283 = vmatprep.subr.mxu0 0.0
          %2284 = vmatpush1.msra.mxu0 0.0
          %2285 = vmatprep.subr.mxu0 0.0
          %2286 = vmatpush1.msra.mxu0 0.0
          %2287 = vmatprep.mubr.f32.mxu0 0.0
          %v2288 = vand.u32 %v1059, 4294901760
          %2289 = vmatmul.mubr.f32.gmra.mrb[0].mxu0 %v2288
          %v2290 = vpop.f32.mrb[0].mxu0
          %v2291 = vadd.f32 %v2114, %v2290
          %v2292 = vpop.f32.mrb[0].mxu0
          %2293 = vmatprep.mubr.f32.mxu0 0.0
          %v2294 = vand.u32 %v1060, 4294901760
          %2295 = vmatmul.mubr.f32.gmra.mrb[0].mxu0 %v2294
          %v2296 = vpop.f32.mrb[0].mxu0
          %v2297 = vadd.f32 %v2120, %v2296
          %v2298 = vpop.f32.mrb[0].mxu0
          %2299 = vmatprep.mubr.f32.mxu0 0.0
          %v2300 = vand.u32 %v1061, 4294901760
          %2301 = vmatmul.mubr.f32.gmra.mrb[0].mxu0 %v2300
          %v2302 = vpop.f32.mrb[0].mxu0
          %v2303 = vadd.f32 %v2126, %v2302
          %v2304 = vpop.f32.mrb[0].mxu0
          %2305 = vmatprep.mubr.f32.mxu0 0.0
          %v2306 = vand.u32 %v1062, 4294901760
          %2307 = vmatmul.mubr.f32.gmra.mrb[0].mxu0 %v2306
          %v2308 = vpop.f32.mrb[0].mxu0
          %v2309 = vadd.f32 %v2132, %v2308
          %v2310 = vpop.f32.mrb[0].mxu0
          %2311 = vmatprep.mubr.f32.mxu0 0.0
          %v2312 = vand.u32 %v1063, 4294901760
          %2313 = vmatmul.mubr.f32.gmra.mrb[0].mxu0 %v2312
          %v2314 = vpop.f32.mrb[0].mxu0
          %v2315 = vadd.f32 %v2138, %v2314
          %v2316 = vpop.f32.mrb[0].mxu0
          %2317 = vmatprep.mubr.f32.mxu0 0.0
          %v2318 = vand.u32 %v1064, 4294901760
          %2319 = vmatmul.mubr.f32.gmra.mrb[0].mxu0 %v2318
          %v2320 = vpop.f32.mrb[0].mxu0
          %v2321 = vadd.f32 %v2144, %v2320
          %v2322 = vpop.f32.mrb[0].mxu0
          %2323 = vmatprep.mubr.f32.mxu0 0.0
          %v2324 = vand.u32 %v1065, 4294901760
          %2325 = vmatmul.mubr.f32.gmra.mrb[0].mxu0 %v2324
          %v2326 = vpop.f32.mrb[0].mxu0
          %v2327 = vadd.f32 %v2150, %v2326
          %v2328 = vpop.f32.mrb[0].mxu0
          %2329 = vmatprep.mubr.f32.mxu0 0.0
          %v2330 = vand.u32 %v1066, 4294901760
          %2331 = vmatmul.mubr.f32.gmra.mrb[0].mxu0 %v2330
          %v2332 = vpop.f32.mrb[0].mxu0
          %v2333 = vadd.f32 %v2156, %v2332
          %v2334 = vpop.f32.mrb[0].mxu0
          %2335 = vmatprep.mubr.f32.mxu0 0.0
          %v2336 = vand.u32 %v1067, 4294901760
          %2337 = vmatmul.mubr.f32.gmra.mrb[0].mxu0 %v2336
          %v2338 = vpop.f32.mrb[0].mxu0
          %v2339 = vadd.f32 %v2162, %v2338
          %v2340 = vpop.f32.mrb[0].mxu0
          %2341 = vmatprep.mubr.f32.mxu0 0.0
          %v2342 = vand.u32 %v1068, 4294901760
          %2343 = vmatmul.mubr.f32.gmra.mrb[0].mxu0 %v2342
          %v2344 = vpop.f32.mrb[0].mxu0
          %v2345 = vadd.f32 %v2168, %v2344
          %v2346 = vpop.f32.mrb[0].mxu0
          %2347 = vmatprep.mubr.f32.mxu0 0.0
          %v2348 = vand.u32 %v1069, 4294901760
          %2349 = vmatmul.mubr.f32.gmra.mrb[0].mxu0 %v2348
          %v2350 = vpop.f32.mrb[0].mxu0
          %v2351 = vadd.f32 %v2174, %v2350
          %v2352 = vpop.f32.mrb[0].mxu0
          %2353 = vmatprep.mubr.f32.mxu0 0.0
          %v2354 = vand.u32 %v1070, 4294901760
          %2355 = vmatmul.mubr.f32.gmra.mrb[0].mxu0 %v2354
          %v2356 = vpop.f32.mrb[0].mxu0
          %v2357 = vadd.f32 %v2180, %v2356
          %v2358 = vpop.f32.mrb[0].mxu0
          %2359 = vmatprep.mubr.f32.mxu0 0.0
          %v2360 = vand.u32 %v1071, 4294901760
          %2361 = vmatmul.mubr.f32.gmra.mrb[0].mxu0 %v2360
          %v2362 = vpop.f32.mrb[0].mxu0
          %v2363 = vadd.f32 %v2186, %v2362
          %v2364 = vpop.f32.mrb[0].mxu0
          %2365 = vmatprep.mubr.f32.mxu0 0.0
          %v2366 = vand.u32 %v1072, 4294901760
          %2367 = vmatmul.mubr.f32.gmra.mrb[0].mxu0 %v2366
          %v2368 = vpop.f32.mrb[0].mxu0
          %v2369 = vadd.f32 %v2192, %v2368
          %v2370 = vpop.f32.mrb[0].mxu0
          %2371 = vmatprep.mubr.f32.mxu0 0.0
          %v2372 = vand.u32 %v1073, 4294901760
          %2373 = vmatmul.mubr.f32.gmra.mrb[0].mxu0 %v2372
          %v2374 = vpop.f32.mrb[0].mxu0
          %v2375 = vadd.f32 %v2198, %v2374
          %v2376 = vpop.f32.mrb[0].mxu0
          %2377 = vmatprep.mubr.f32.mxu0 0.0
          %v2378 = vand.u32 %v1074, 4294901760
          %2379 = vmatmul.mubr.f32.gmra.mrb[0].mxu0 %v2378
          %v2380 = vpop.f32.mrb[0].mxu0
          %v2381 = vadd.f32 %v2204, %v2380
          %v2382 = vpop.f32.mrb[0].mxu0
          %2383 = vdwg.mxu0
          %s2384 = sld [smem:[#allocation5 + %s669]]
          %v2385 = vlaneseq
          %v2386 = vshrl.u32 %v2385, 7
          %v2387 = vld [vmem:[%s651] sm:$0x1]
          %s2388 = smul.u32 %s2384, 8
          %v2389 = vstv %s2388
          %v2390 = vsub.s32 %v2387, %v2389
          %v2391 = vlaneseq
          %v2392 = vshrl.u32 %v2391, 7
          %v2393 = vsub.s32 0, %v2392
          %v2394 = vrot.slane %v2390, %v2393
          %vm2395 = vcmp.eq.s32.totalorder %v2386, %v2394
          %v2396 = vld [vmem:[#allocation2] sm:$0xff]
          %v2397 = vsel %vm2395, 1, 0
          %v2398 = vcvt.s32.f32 %v2397
          %2399 = vmatprep.subr.mxu0 0.0
          %v2400 = vand.u32 %v2291, 4294901760
          %2401 = vmatpush1.msra.mxu0 %v2400
          %2402 = vmatprep.subr.mxu0 0.0
          %v2403 = vand.u32 %v2297, 4294901760
          %2404 = vmatpush1.msra.mxu0 %v2403
          %2405 = vmatprep.subr.mxu0 0.0
          %v2406 = vand.u32 %v2303, 4294901760
          %2407 = vmatpush1.msra.mxu0 %v2406
          %2408 = vmatprep.subr.mxu0 0.0
          %v2409 = vand.u32 %v2309, 4294901760
          %2410 = vmatpush1.msra.mxu0 %v2409
          %2411 = vmatprep.subr.mxu0 0.0
          %v2412 = vand.u32 %v2315, 4294901760
          %2413 = vmatpush1.msra.mxu0 %v2412
          %2414 = vmatprep.subr.mxu0 0.0
          %v2415 = vand.u32 %v2321, 4294901760
          %2416 = vmatpush1.msra.mxu0 %v2415
          %2417 = vmatprep.subr.mxu0 0.0
          %v2418 = vand.u32 %v2327, 4294901760
          %2419 = vmatpush1.msra.mxu0 %v2418
          %2420 = vmatprep.subr.mxu0 0.0
          %v2421 = vand.u32 %v2333, 4294901760
          %2422 = vmatpush1.msra.mxu0 %v2421
          %2423 = vmatprep.subr.mxu0 0.0
          %v2424 = vand.u32 %v2339, 4294901760
          %2425 = vmatpush1.msra.mxu0 %v2424
          %2426 = vmatprep.subr.mxu0 0.0
          %v2427 = vand.u32 %v2345, 4294901760
          %2428 = vmatpush1.msra.mxu0 %v2427
          %2429 = vmatprep.subr.mxu0 0.0
          %v2430 = vand.u32 %v2351, 4294901760
          %2431 = vmatpush1.msra.mxu0 %v2430
          %2432 = vmatprep.subr.mxu0 0.0
          %v2433 = vand.u32 %v2357, 4294901760
          %2434 = vmatpush1.msra.mxu0 %v2433
          %2435 = vmatprep.subr.mxu0 0.0
          %v2436 = vand.u32 %v2363, 4294901760
          %2437 = vmatpush1.msra.mxu0 %v2436
          %2438 = vmatprep.subr.mxu0 0.0
          %v2439 = vand.u32 %v2369, 4294901760
          %2440 = vmatpush1.msra.mxu0 %v2439
          %2441 = vmatprep.subr.mxu0 0.0
          %v2442 = vand.u32 %v2375, 4294901760
          %2443 = vmatpush1.msra.mxu0 %v2442
          %2444 = vmatprep.subr.mxu0 0.0
          %v2445 = vand.u32 %v2381, 4294901760
          %2446 = vmatpush1.msra.mxu0 %v2445
          %2447 = vmatprep.subr.mxu0 0.0
          %2448 = vmatpush1.msra.mxu0 0.0
          %2449 = vmatprep.subr.mxu0 0.0
          %2450 = vmatpush1.msra.mxu0 0.0
          %2451 = vmatprep.subr.mxu0 0.0
          %2452 = vmatpush1.msra.mxu0 0.0
          %2453 = vmatprep.subr.mxu0 0.0
          %2454 = vmatpush1.msra.mxu0 0.0
          %2455 = vmatprep.subr.mxu0 0.0
          %2456 = vmatpush1.msra.mxu0 0.0
          %2457 = vmatprep.subr.mxu0 0.0
          %2458 = vmatpush1.msra.mxu0 0.0
          %2459 = vmatprep.subr.mxu0 0.0
          %2460 = vmatpush1.msra.mxu0 0.0
          %2461 = vmatprep.subr.mxu0 0.0
          %2462 = vmatpush1.msra.mxu0 0.0
          %2463 = vmatprep.subr.mxu0 0.0
          %2464 = vmatpush1.msra.mxu0 0.0
          %2465 = vmatprep.subr.mxu0 0.0
          %2466 = vmatpush1.msra.mxu0 0.0
          %2467 = vmatprep.subr.mxu0 0.0
          %2468 = vmatpush1.msra.mxu0 0.0
          %2469 = vmatprep.subr.mxu0 0.0
          %2470 = vmatpush1.msra.mxu0 0.0
          %2471 = vmatprep.subr.mxu0 0.0
          %2472 = vmatpush1.msra.mxu0 0.0
          %2473 = vmatprep.subr.mxu0 0.0
          %2474 = vmatpush1.msra.mxu0 0.0
          %2475 = vmatprep.subr.mxu0 0.0
          %2476 = vmatpush1.msra.mxu0 0.0
          %2477 = vmatprep.subr.mxu0 0.0
          %2478 = vmatpush1.msra.mxu0 0.0
          %2479 = vmatprep.mubr.f32.mxu0 0.0
          %v2480 = vand.u32 %v2398, 4294901760
          %v2481 = vsub.f32 %v2398, %v2480
          %v2482 = vand.u32 %v2481, 4294901760
          %v2483 = vsub.f32 %v2481, %v2482
          %v2484 = vand.u32 %v2483, 4294901760
          %2485 = vmatmul.mubr.f32.gmra.mrb[0].mxu0 %v2484
          %v2486 = vpop.f32.mrb[0].mxu0
          %v2487 = vadd.f32 0.0, %v2486
          %v2488 = vpop.f32.mrb[0].mxu0
          %2489 = vdwg.mxu0
          %2490 = vmatprep.subr.mxu0 0.0
          %v2491 = vand.u32 %v2291, 4294901760
          %v2492 = vsub.f32 %v2291, %v2491
          %v2493 = vand.u32 %v2492, 4294901760
          %v2494 = vsub.f32 %v2492, %v2493
          %v2495 = vand.u32 %v2494, 4294901760
          %2496 = vmatpush1.msra.mxu0 %v2495
          %2497 = vmatprep.subr.mxu0 0.0
          %v2498 = vand.u32 %v2297, 4294901760
          %v2499 = vsub.f32 %v2297, %v2498
          %v2500 = vand.u32 %v2499, 4294901760
          %v2501 = vsub.f32 %v2499, %v2500
          %v2502 = vand.u32 %v2501, 4294901760
          %2503 = vmatpush1.msra.mxu0 %v2502
          %2504 = vmatprep.subr.mxu0 0.0
          %v2505 = vand.u32 %v2303, 4294901760
          %v2506 = vsub.f32 %v2303, %v2505
          %v2507 = vand.u32 %v2506, 4294901760
          %v2508 = vsub.f32 %v2506, %v2507
          %v2509 = vand.u32 %v2508, 4294901760
          %2510 = vmatpush1.msra.mxu0 %v2509
          %2511 = vmatprep.subr.mxu0 0.0
          %v2512 = vand.u32 %v2309, 4294901760
          %v2513 = vsub.f32 %v2309, %v2512
          %v2514 = vand.u32 %v2513, 4294901760
          %v2515 = vsub.f32 %v2513, %v2514
          %v2516 = vand.u32 %v2515, 4294901760
          %2517 = vmatpush1.msra.mxu0 %v2516
          %2518 = vmatprep.subr.mxu0 0.0
          %v2519 = vand.u32 %v2315, 4294901760
          %v2520 = vsub.f32 %v2315, %v2519
          %v2521 = vand.u32 %v2520, 4294901760
          %v2522 = vsub.f32 %v2520, %v2521
          %v2523 = vand.u32 %v2522, 4294901760
          %2524 = vmatpush1.msra.mxu0 %v2523
          %2525 = vmatprep.subr.mxu0 0.0
          %v2526 = vand.u32 %v2321, 4294901760
          %v2527 = vsub.f32 %v2321, %v2526
          %v2528 = vand.u32 %v2527, 4294901760
          %v2529 = vsub.f32 %v2527, %v2528
          %v2530 = vand.u32 %v2529, 4294901760
          %2531 = vmatpush1.msra.mxu0 %v2530
          %2532 = vmatprep.subr.mxu0 0.0
          %v2533 = vand.u32 %v2327, 4294901760
          %v2534 = vsub.f32 %v2327, %v2533
          %v2535 = vand.u32 %v2534, 4294901760
          %v2536 = vsub.f32 %v2534, %v2535
          %v2537 = vand.u32 %v2536, 4294901760
          %2538 = vmatpush1.msra.mxu0 %v2537
          %2539 = vmatprep.subr.mxu0 0.0
          %v2540 = vand.u32 %v2333, 4294901760
          %v2541 = vsub.f32 %v2333, %v2540
          %v2542 = vand.u32 %v2541, 4294901760
          %v2543 = vsub.f32 %v2541, %v2542
          %v2544 = vand.u32 %v2543, 4294901760
          %2545 = vmatpush1.msra.mxu0 %v2544
          %2546 = vmatprep.subr.mxu0 0.0
          %v2547 = vand.u32 %v2339, 4294901760
          %v2548 = vsub.f32 %v2339, %v2547
          %v2549 = vand.u32 %v2548, 4294901760
          %v2550 = vsub.f32 %v2548, %v2549
          %v2551 = vand.u32 %v2550, 4294901760
          %2552 = vmatpush1.msra.mxu0 %v2551
          %2553 = vmatprep.subr.mxu0 0.0
          %v2554 = vand.u32 %v2345, 4294901760
          %v2555 = vsub.f32 %v2345, %v2554
          %v2556 = vand.u32 %v2555, 4294901760
          %v2557 = vsub.f32 %v2555, %v2556
          %v2558 = vand.u32 %v2557, 4294901760
          %2559 = vmatpush1.msra.mxu0 %v2558
          %2560 = vmatprep.subr.mxu0 0.0
          %v2561 = vand.u32 %v2351, 4294901760
          %v2562 = vsub.f32 %v2351, %v2561
          %v2563 = vand.u32 %v2562, 4294901760
          %v2564 = vsub.f32 %v2562, %v2563
          %v2565 = vand.u32 %v2564, 4294901760
          %2566 = vmatpush1.msra.mxu0 %v2565
          %2567 = vmatprep.subr.mxu0 0.0
          %v2568 = vand.u32 %v2357, 4294901760
          %v2569 = vsub.f32 %v2357, %v2568
          %v2570 = vand.u32 %v2569, 4294901760
          %v2571 = vsub.f32 %v2569, %v2570
          %v2572 = vand.u32 %v2571, 4294901760
          %2573 = vmatpush1.msra.mxu0 %v2572
          %2574 = vmatprep.subr.mxu0 0.0
          %v2575 = vand.u32 %v2363, 4294901760
          %v2576 = vsub.f32 %v2363, %v2575
          %v2577 = vand.u32 %v2576, 4294901760
          %v2578 = vsub.f32 %v2576, %v2577
          %v2579 = vand.u32 %v2578, 4294901760
          %2580 = vmatpush1.msra.mxu0 %v2579
          %2581 = vmatprep.subr.mxu0 0.0
          %v2582 = vand.u32 %v2369, 4294901760
          %v2583 = vsub.f32 %v2369, %v2582
          %v2584 = vand.u32 %v2583, 4294901760
          %v2585 = vsub.f32 %v2583, %v2584
          %v2586 = vand.u32 %v2585, 4294901760
          %2587 = vmatpush1.msra.mxu0 %v2586
          %2588 = vmatprep.subr.mxu0 0.0
          %v2589 = vand.u32 %v2375, 4294901760
          %v2590 = vsub.f32 %v2375, %v2589
          %v2591 = vand.u32 %v2590, 4294901760
          %v2592 = vsub.f32 %v2590, %v2591
          %v2593 = vand.u32 %v2592, 4294901760
          %2594 = vmatpush1.msra.mxu0 %v2593
          %2595 = vmatprep.subr.mxu0 0.0
          %v2596 = vand.u32 %v2381, 4294901760
          %v2597 = vsub.f32 %v2381, %v2596
          %v2598 = vand.u32 %v2597, 4294901760
          %v2599 = vsub.f32 %v2597, %v2598
          %v2600 = vand.u32 %v2599, 4294901760
          %2601 = vmatpush1.msra.mxu0 %v2600
          %2602 = vmatprep.subr.mxu0 0.0
          %2603 = vmatpush1.msra.mxu0 0.0
          %2604 = vmatprep.subr.mxu0 0.0
          %2605 = vmatpush1.msra.mxu0 0.0
          %2606 = vmatprep.subr.mxu0 0.0
          %2607 = vmatpush1.msra.mxu0 0.0
          %2608 = vmatprep.subr.mxu0 0.0
          %2609 = vmatpush1.msra.mxu0 0.0
          %2610 = vmatprep.subr.mxu0 0.0
          %2611 = vmatpush1.msra.mxu0 0.0
          %2612 = vmatprep.subr.mxu0 0.0
          %2613 = vmatpush1.msra.mxu0 0.0
          %2614 = vmatprep.subr.mxu0 0.0
          %2615 = vmatpush1.msra.mxu0 0.0
          %2616 = vmatprep.subr.mxu0 0.0
          %2617 = vmatpush1.msra.mxu0 0.0
          %2618 = vmatprep.subr.mxu0 0.0
          %2619 = vmatpush1.msra.mxu0 0.0
          %2620 = vmatprep.subr.mxu0 0.0
          %2621 = vmatpush1.msra.mxu0 0.0
          %2622 = vmatprep.subr.mxu0 0.0
          %2623 = vmatpush1.msra.mxu0 0.0
          %2624 = vmatprep.subr.mxu0 0.0
          %2625 = vmatpush1.msra.mxu0 0.0
          %2626 = vmatprep.subr.mxu0 0.0
          %2627 = vmatpush1.msra.mxu0 0.0
          %2628 = vmatprep.subr.mxu0 0.0
          %2629 = vmatpush1.msra.mxu0 0.0
          %2630 = vmatprep.subr.mxu0 0.0
          %2631 = vmatpush1.msra.mxu0 0.0
          %2632 = vmatprep.subr.mxu0 0.0
          %2633 = vmatpush1.msra.mxu0 0.0
          %2634 = vmatprep.mubr.f32.mxu0 0.0
          %v2635 = vand.u32 %v2398, 4294901760
          %2636 = vmatmul.mubr.f32.gmra.mrb[0].mxu0 %v2635
          %v2637 = vpop.f32.mrb[0].mxu0
          %v2638 = vadd.f32 %v2487, %v2637
          %v2639 = vpop.f32.mrb[0].mxu0
          %2640 = vdwg.mxu0
          %2641 = vmatprep.subr.mxu0 0.0
          %v2642 = vand.u32 %v2291, 4294901760
          %v2643 = vsub.f32 %v2291, %v2642
          %2644 = vmatpush1.msra.mxu0 %v2643
          %2645 = vmatprep.subr.mxu0 0.0
          %v2646 = vand.u32 %v2297, 4294901760
          %v2647 = vsub.f32 %v2297, %v2646
          %2648 = vmatpush1.msra.mxu0 %v2647
          %2649 = vmatprep.subr.mxu0 0.0
          %v2650 = vand.u32 %v2303, 4294901760
          %v2651 = vsub.f32 %v2303, %v2650
          %2652 = vmatpush1.msra.mxu0 %v2651
          %2653 = vmatprep.subr.mxu0 0.0
          %v2654 = vand.u32 %v2309, 4294901760
          %v2655 = vsub.f32 %v2309, %v2654
          %2656 = vmatpush1.msra.mxu0 %v2655
          %2657 = vmatprep.subr.mxu0 0.0
          %v2658 = vand.u32 %v2315, 4294901760
          %v2659 = vsub.f32 %v2315, %v2658
          %2660 = vmatpush1.msra.mxu0 %v2659
          %2661 = vmatprep.subr.mxu0 0.0
          %v2662 = vand.u32 %v2321, 4294901760
          %v2663 = vsub.f32 %v2321, %v2662
          %2664 = vmatpush1.msra.mxu0 %v2663
          %2665 = vmatprep.subr.mxu0 0.0
          %v2666 = vand.u32 %v2327, 4294901760
          %v2667 = vsub.f32 %v2327, %v2666
          %2668 = vmatpush1.msra.mxu0 %v2667
          %2669 = vmatprep.subr.mxu0 0.0
          %v2670 = vand.u32 %v2333, 4294901760
          %v2671 = vsub.f32 %v2333, %v2670
          %2672 = vmatpush1.msra.mxu0 %v2671
          %2673 = vmatprep.subr.mxu0 0.0
          %v2674 = vand.u32 %v2339, 4294901760
          %v2675 = vsub.f32 %v2339, %v2674
          %2676 = vmatpush1.msra.mxu0 %v2675
          %2677 = vmatprep.subr.mxu0 0.0
          %v2678 = vand.u32 %v2345, 4294901760
          %v2679 = vsub.f32 %v2345, %v2678
          %2680 = vmatpush1.msra.mxu0 %v2679
          %2681 = vmatprep.subr.mxu0 0.0
          %v2682 = vand.u32 %v2351, 4294901760
          %v2683 = vsub.f32 %v2351, %v2682
          %2684 = vmatpush1.msra.mxu0 %v2683
          %2685 = vmatprep.subr.mxu0 0.0
          %v2686 = vand.u32 %v2357, 4294901760
          %v2687 = vsub.f32 %v2357, %v2686
          %2688 = vmatpush1.msra.mxu0 %v2687
          %2689 = vmatprep.subr.mxu0 0.0
          %v2690 = vand.u32 %v2363, 4294901760
          %v2691 = vsub.f32 %v2363, %v2690
          %2692 = vmatpush1.msra.mxu0 %v2691
          %2693 = vmatprep.subr.mxu0 0.0
          %v2694 = vand.u32 %v2369, 4294901760
          %v2695 = vsub.f32 %v2369, %v2694
          %2696 = vmatpush1.msra.mxu0 %v2695
          %2697 = vmatprep.subr.mxu0 0.0
          %v2698 = vand.u32 %v2375, 4294901760
          %v2699 = vsub.f32 %v2375, %v2698
          %2700 = vmatpush1.msra.mxu0 %v2699
          %2701 = vmatprep.subr.mxu0 0.0
          %v2702 = vand.u32 %v2381, 4294901760
          %v2703 = vsub.f32 %v2381, %v2702
          %2704 = vmatpush1.msra.mxu0 %v2703
          %2705 = vmatprep.subr.mxu0 0.0
          %2706 = vmatpush1.msra.mxu0 0.0
          %2707 = vmatprep.subr.mxu0 0.0
          %2708 = vmatpush1.msra.mxu0 0.0
          %2709 = vmatprep.subr.mxu0 0.0
          %2710 = vmatpush1.msra.mxu0 0.0
          %2711 = vmatprep.subr.mxu0 0.0
          %2712 = vmatpush1.msra.mxu0 0.0
          %2713 = vmatprep.subr.mxu0 0.0
          %2714 = vmatpush1.msra.mxu0 0.0
          %2715 = vmatprep.subr.mxu0 0.0
          %2716 = vmatpush1.msra.mxu0 0.0
          %2717 = vmatprep.subr.mxu0 0.0
          %2718 = vmatpush1.msra.mxu0 0.0
          %2719 = vmatprep.subr.mxu0 0.0
          %2720 = vmatpush1.msra.mxu0 0.0
          %2721 = vmatprep.subr.mxu0 0.0
          %2722 = vmatpush1.msra.mxu0 0.0
          %2723 = vmatprep.subr.mxu0 0.0
          %2724 = vmatpush1.msra.mxu0 0.0
          %2725 = vmatprep.subr.mxu0 0.0
          %2726 = vmatpush1.msra.mxu0 0.0
          %2727 = vmatprep.subr.mxu0 0.0
          %2728 = vmatpush1.msra.mxu0 0.0
          %2729 = vmatprep.subr.mxu0 0.0
          %2730 = vmatpush1.msra.mxu0 0.0
          %2731 = vmatprep.subr.mxu0 0.0
          %2732 = vmatpush1.msra.mxu0 0.0
          %2733 = vmatprep.subr.mxu0 0.0
          %2734 = vmatpush1.msra.mxu0 0.0
          %2735 = vmatprep.subr.mxu0 0.0
          %2736 = vmatpush1.msra.mxu0 0.0
          %2737 = vmatprep.mubr.f32.mxu0 0.0
          %v2738 = vand.u32 %v2398, 4294901760
          %v2739 = vsub.f32 %v2398, %v2738
          %2740 = vmatmul.mubr.f32.gmra.mrb[0].mxu0 %v2739
          %v2741 = vpop.f32.mrb[0].mxu0
          %v2742 = vadd.f32 %v2638, %v2741
          %v2743 = vpop.f32.mrb[0].mxu0
          %2744 = vdwg.mxu0
          %2745 = vmatprep.subr.mxu0 0.0
          %v2746 = vand.u32 %v2291, 4294901760
          %2747 = vmatpush1.msra.mxu0 %v2746
          %2748 = vmatprep.subr.mxu0 0.0
          %v2749 = vand.u32 %v2297, 4294901760
          %2750 = vmatpush1.msra.mxu0 %v2749
          %2751 = vmatprep.subr.mxu0 0.0
          %v2752 = vand.u32 %v2303, 4294901760
          %2753 = vmatpush1.msra.mxu0 %v2752
          %2754 = vmatprep.subr.mxu0 0.0
          %v2755 = vand.u32 %v2309, 4294901760
          %2756 = vmatpush1.msra.mxu0 %v2755
          %2757 = vmatprep.subr.mxu0 0.0
          %v2758 = vand.u32 %v2315, 4294901760
          %2759 = vmatpush1.msra.mxu0 %v2758
          %2760 = vmatprep.subr.mxu0 0.0
          %v2761 = vand.u32 %v2321, 4294901760
          %2762 = vmatpush1.msra.mxu0 %v2761
          %2763 = vmatprep.subr.mxu0 0.0
          %v2764 = vand.u32 %v2327, 4294901760
          %2765 = vmatpush1.msra.mxu0 %v2764
          %2766 = vmatprep.subr.mxu0 0.0
          %v2767 = vand.u32 %v2333, 4294901760
          %2768 = vmatpush1.msra.mxu0 %v2767
          %2769 = vmatprep.subr.mxu0 0.0
          %v2770 = vand.u32 %v2339, 4294901760
          %2771 = vmatpush1.msra.mxu0 %v2770
          %2772 = vmatprep.subr.mxu0 0.0
          %v2773 = vand.u32 %v2345, 4294901760
          %2774 = vmatpush1.msra.mxu0 %v2773
          %2775 = vmatprep.subr.mxu0 0.0
          %v2776 = vand.u32 %v2351, 4294901760
          %2777 = vmatpush1.msra.mxu0 %v2776
          %2778 = vmatprep.subr.mxu0 0.0
          %v2779 = vand.u32 %v2357, 4294901760
          %2780 = vmatpush1.msra.mxu0 %v2779
          %2781 = vmatprep.subr.mxu0 0.0
          %v2782 = vand.u32 %v2363, 4294901760
          %2783 = vmatpush1.msra.mxu0 %v2782
          %2784 = vmatprep.subr.mxu0 0.0
          %v2785 = vand.u32 %v2369, 4294901760
          %2786 = vmatpush1.msra.mxu0 %v2785
          %2787 = vmatprep.subr.mxu0 0.0
          %v2788 = vand.u32 %v2375, 4294901760
          %2789 = vmatpush1.msra.mxu0 %v2788
          %2790 = vmatprep.subr.mxu0 0.0
          %v2791 = vand.u32 %v2381, 4294901760
          %2792 = vmatpush1.msra.mxu0 %v2791
          %2793 = vmatprep.subr.mxu0 0.0
          %2794 = vmatpush1.msra.mxu0 0.0
          %2795 = vmatprep.subr.mxu0 0.0
          %2796 = vmatpush1.msra.mxu0 0.0
          %2797 = vmatprep.subr.mxu0 0.0
          %2798 = vmatpush1.msra.mxu0 0.0
          %2799 = vmatprep.subr.mxu0 0.0
          %2800 = vmatpush1.msra.mxu0 0.0
          %2801 = vmatprep.subr.mxu0 0.0
          %2802 = vmatpush1.msra.mxu0 0.0
          %2803 = vmatprep.subr.mxu0 0.0
          %2804 = vmatpush1.msra.mxu0 0.0
          %2805 = vmatprep.subr.mxu0 0.0
          %2806 = vmatpush1.msra.mxu0 0.0
          %2807 = vmatprep.subr.mxu0 0.0
          %2808 = vmatpush1.msra.mxu0 0.0
          %2809 = vmatprep.subr.mxu0 0.0
          %2810 = vmatpush1.msra.mxu0 0.0
          %2811 = vmatprep.subr.mxu0 0.0
          %2812 = vmatpush1.msra.mxu0 0.0
          %2813 = vmatprep.subr.mxu0 0.0
          %2814 = vmatpush1.msra.mxu0 0.0
          %2815 = vmatprep.subr.mxu0 0.0
          %2816 = vmatpush1.msra.mxu0 0.0
          %2817 = vmatprep.subr.mxu0 0.0
          %2818 = vmatpush1.msra.mxu0 0.0
          %2819 = vmatprep.subr.mxu0 0.0
          %2820 = vmatpush1.msra.mxu0 0.0
          %2821 = vmatprep.subr.mxu0 0.0
          %2822 = vmatpush1.msra.mxu0 0.0
          %2823 = vmatprep.subr.mxu0 0.0
          %2824 = vmatpush1.msra.mxu0 0.0
          %2825 = vmatprep.mubr.f32.mxu0 0.0
          %v2826 = vand.u32 %v2398, 4294901760
          %v2827 = vsub.f32 %v2398, %v2826
          %v2828 = vand.u32 %v2827, 4294901760
          %2829 = vmatmul.mubr.f32.gmra.mrb[0].mxu0 %v2828
          %v2830 = vpop.f32.mrb[0].mxu0
          %v2831 = vadd.f32 %v2742, %v2830
          %v2832 = vpop.f32.mrb[0].mxu0
          %2833 = vdwg.mxu0
          %2834 = vmatprep.subr.mxu0 0.0
          %v2835 = vand.u32 %v2291, 4294901760
          %v2836 = vsub.f32 %v2291, %v2835
          %v2837 = vand.u32 %v2836, 4294901760
          %2838 = vmatpush1.msra.mxu0 %v2837
          %2839 = vmatprep.subr.mxu0 0.0
          %v2840 = vand.u32 %v2297, 4294901760
          %v2841 = vsub.f32 %v2297, %v2840
          %v2842 = vand.u32 %v2841, 4294901760
          %2843 = vmatpush1.msra.mxu0 %v2842
          %2844 = vmatprep.subr.mxu0 0.0
          %v2845 = vand.u32 %v2303, 4294901760
          %v2846 = vsub.f32 %v2303, %v2845
          %v2847 = vand.u32 %v2846, 4294901760
          %2848 = vmatpush1.msra.mxu0 %v2847
          %2849 = vmatprep.subr.mxu0 0.0
          %v2850 = vand.u32 %v2309, 4294901760
          %v2851 = vsub.f32 %v2309, %v2850
          %v2852 = vand.u32 %v2851, 4294901760
          %2853 = vmatpush1.msra.mxu0 %v2852
          %2854 = vmatprep.subr.mxu0 0.0
          %v2855 = vand.u32 %v2315, 4294901760
          %v2856 = vsub.f32 %v2315, %v2855
          %v2857 = vand.u32 %v2856, 4294901760
          %2858 = vmatpush1.msra.mxu0 %v2857
          %2859 = vmatprep.subr.mxu0 0.0
          %v2860 = vand.u32 %v2321, 4294901760
          %v2861 = vsub.f32 %v2321, %v2860
          %v2862 = vand.u32 %v2861, 4294901760
          %2863 = vmatpush1.msra.mxu0 %v2862
          %2864 = vmatprep.subr.mxu0 0.0
          %v2865 = vand.u32 %v2327, 4294901760
          %v2866 = vsub.f32 %v2327, %v2865
          %v2867 = vand.u32 %v2866, 4294901760
          %2868 = vmatpush1.msra.mxu0 %v2867
          %2869 = vmatprep.subr.mxu0 0.0
          %v2870 = vand.u32 %v2333, 4294901760
          %v2871 = vsub.f32 %v2333, %v2870
          %v2872 = vand.u32 %v2871, 4294901760
          %2873 = vmatpush1.msra.mxu0 %v2872
          %2874 = vmatprep.subr.mxu0 0.0
          %v2875 = vand.u32 %v2339, 4294901760
          %v2876 = vsub.f32 %v2339, %v2875
          %v2877 = vand.u32 %v2876, 4294901760
          %2878 = vmatpush1.msra.mxu0 %v2877
          %2879 = vmatprep.subr.mxu0 0.0
          %v2880 = vand.u32 %v2345, 4294901760
          %v2881 = vsub.f32 %v2345, %v2880
          %v2882 = vand.u32 %v2881, 4294901760
          %2883 = vmatpush1.msra.mxu0 %v2882
          %2884 = vmatprep.subr.mxu0 0.0
          %v2885 = vand.u32 %v2351, 4294901760
          %v2886 = vsub.f32 %v2351, %v2885
          %v2887 = vand.u32 %v2886, 4294901760
          %2888 = vmatpush1.msra.mxu0 %v2887
          %2889 = vmatprep.subr.mxu0 0.0
          %v2890 = vand.u32 %v2357, 4294901760
          %v2891 = vsub.f32 %v2357, %v2890
          %v2892 = vand.u32 %v2891, 4294901760
          %2893 = vmatpush1.msra.mxu0 %v2892
          %2894 = vmatprep.subr.mxu0 0.0
          %v2895 = vand.u32 %v2363, 4294901760
          %v2896 = vsub.f32 %v2363, %v2895
          %v2897 = vand.u32 %v2896, 4294901760
          %2898 = vmatpush1.msra.mxu0 %v2897
          %2899 = vmatprep.subr.mxu0 0.0
          %v2900 = vand.u32 %v2369, 4294901760
          %v2901 = vsub.f32 %v2369, %v2900
          %v2902 = vand.u32 %v2901, 4294901760
          %2903 = vmatpush1.msra.mxu0 %v2902
          %2904 = vmatprep.subr.mxu0 0.0
          %v2905 = vand.u32 %v2375, 4294901760
          %v2906 = vsub.f32 %v2375, %v2905
          %v2907 = vand.u32 %v2906, 4294901760
          %2908 = vmatpush1.msra.mxu0 %v2907
          %2909 = vmatprep.subr.mxu0 0.0
          %v2910 = vand.u32 %v2381, 4294901760
          %v2911 = vsub.f32 %v2381, %v2910
          %v2912 = vand.u32 %v2911, 4294901760
          %2913 = vmatpush1.msra.mxu0 %v2912
          %2914 = vmatprep.subr.mxu0 0.0
          %2915 = vmatpush1.msra.mxu0 0.0
          %2916 = vmatprep.subr.mxu0 0.0
          %2917 = vmatpush1.msra.mxu0 0.0
          %2918 = vmatprep.subr.mxu0 0.0
          %2919 = vmatpush1.msra.mxu0 0.0
          %2920 = vmatprep.subr.mxu0 0.0
          %2921 = vmatpush1.msra.mxu0 0.0
          %2922 = vmatprep.subr.mxu0 0.0
          %2923 = vmatpush1.msra.mxu0 0.0
          %2924 = vmatprep.subr.mxu0 0.0
          %2925 = vmatpush1.msra.mxu0 0.0
          %2926 = vmatprep.subr.mxu0 0.0
          %2927 = vmatpush1.msra.mxu0 0.0
          %2928 = vmatprep.subr.mxu0 0.0
          %2929 = vmatpush1.msra.mxu0 0.0
          %2930 = vmatprep.subr.mxu0 0.0
          %2931 = vmatpush1.msra.mxu0 0.0
          %2932 = vmatprep.subr.mxu0 0.0
          %2933 = vmatpush1.msra.mxu0 0.0
          %2934 = vmatprep.subr.mxu0 0.0
          %2935 = vmatpush1.msra.mxu0 0.0
          %2936 = vmatprep.subr.mxu0 0.0
          %2937 = vmatpush1.msra.mxu0 0.0
          %2938 = vmatprep.subr.mxu0 0.0
          %2939 = vmatpush1.msra.mxu0 0.0
          %2940 = vmatprep.subr.mxu0 0.0
          %2941 = vmatpush1.msra.mxu0 0.0
          %2942 = vmatprep.subr.mxu0 0.0
          %2943 = vmatpush1.msra.mxu0 0.0
          %2944 = vmatprep.subr.mxu0 0.0
          %2945 = vmatpush1.msra.mxu0 0.0
          %2946 = vmatprep.mubr.f32.mxu0 0.0
          %v2947 = vand.u32 %v2398, 4294901760
          %2948 = vmatmul.mubr.f32.gmra.mrb[0].mxu0 %v2947
          %v2949 = vpop.f32.mrb[0].mxu0
          %v2950 = vadd.f32 %v2831, %v2949
          %v2951 = vpop.f32.mrb[0].mxu0
          %2952 = vdwg.mxu0
          %2953 = vmatprep.subr.mxu0 0.0
          %v2954 = vand.u32 %v2291, 4294901760
          %2955 = vmatpush1.msra.mxu0 %v2954
          %2956 = vmatprep.subr.mxu0 0.0
          %v2957 = vand.u32 %v2297, 4294901760
          %2958 = vmatpush1.msra.mxu0 %v2957
          %2959 = vmatprep.subr.mxu0 0.0
          %v2960 = vand.u32 %v2303, 4294901760
          %2961 = vmatpush1.msra.mxu0 %v2960
          %2962 = vmatprep.subr.mxu0 0.0
          %v2963 = vand.u32 %v2309, 4294901760
          %2964 = vmatpush1.msra.mxu0 %v2963
          %2965 = vmatprep.subr.mxu0 0.0
          %v2966 = vand.u32 %v2315, 4294901760
          %2967 = vmatpush1.msra.mxu0 %v2966
          %2968 = vmatprep.subr.mxu0 0.0
          %v2969 = vand.u32 %v2321, 4294901760
          %2970 = vmatpush1.msra.mxu0 %v2969
          %2971 = vmatprep.subr.mxu0 0.0
          %v2972 = vand.u32 %v2327, 4294901760
          %2973 = vmatpush1.msra.mxu0 %v2972
          %2974 = vmatprep.subr.mxu0 0.0
          %v2975 = vand.u32 %v2333, 4294901760
          %2976 = vmatpush1.msra.mxu0 %v2975
          %2977 = vmatprep.subr.mxu0 0.0
          %v2978 = vand.u32 %v2339, 4294901760
          %2979 = vmatpush1.msra.mxu0 %v2978
          %2980 = vmatprep.subr.mxu0 0.0
          %v2981 = vand.u32 %v2345, 4294901760
          %2982 = vmatpush1.msra.mxu0 %v2981
          %2983 = vmatprep.subr.mxu0 0.0
          %v2984 = vand.u32 %v2351, 4294901760
          %2985 = vmatpush1.msra.mxu0 %v2984
          %2986 = vmatprep.subr.mxu0 0.0
          %v2987 = vand.u32 %v2357, 4294901760
          %2988 = vmatpush1.msra.mxu0 %v2987
          %2989 = vmatprep.subr.mxu0 0.0
          %v2990 = vand.u32 %v2363, 4294901760
          %2991 = vmatpush1.msra.mxu0 %v2990
          %2992 = vmatprep.subr.mxu0 0.0
          %v2993 = vand.u32 %v2369, 4294901760
          %2994 = vmatpush1.msra.mxu0 %v2993
          %2995 = vmatprep.subr.mxu0 0.0
          %v2996 = vand.u32 %v2375, 4294901760
          %2997 = vmatpush1.msra.mxu0 %v2996
          %2998 = vmatprep.subr.mxu0 0.0
          %v2999 = vand.u32 %v2381, 4294901760
          %3000 = vmatpush1.msra.mxu0 %v2999
          %3001 = vmatprep.subr.mxu0 0.0
          %3002 = vmatpush1.msra.mxu0 0.0
          %3003 = vmatprep.subr.mxu0 0.0
          %3004 = vmatpush1.msra.mxu0 0.0
          %3005 = vmatprep.subr.mxu0 0.0
          %3006 = vmatpush1.msra.mxu0 0.0
          %3007 = vmatprep.subr.mxu0 0.0
          %3008 = vmatpush1.msra.mxu0 0.0
          %3009 = vmatprep.subr.mxu0 0.0
          %3010 = vmatpush1.msra.mxu0 0.0
          %3011 = vmatprep.subr.mxu0 0.0
          %3012 = vmatpush1.msra.mxu0 0.0
          %3013 = vmatprep.subr.mxu0 0.0
          %3014 = vmatpush1.msra.mxu0 0.0
          %3015 = vmatprep.subr.mxu0 0.0
          %3016 = vmatpush1.msra.mxu0 0.0
          %3017 = vmatprep.subr.mxu0 0.0
          %3018 = vmatpush1.msra.mxu0 0.0
          %3019 = vmatprep.subr.mxu0 0.0
          %3020 = vmatpush1.msra.mxu0 0.0
          %3021 = vmatprep.subr.mxu0 0.0
          %3022 = vmatpush1.msra.mxu0 0.0
          %3023 = vmatprep.subr.mxu0 0.0
          %3024 = vmatpush1.msra.mxu0 0.0
          %3025 = vmatprep.subr.mxu0 0.0
          %3026 = vmatpush1.msra.mxu0 0.0
          %3027 = vmatprep.subr.mxu0 0.0
          %3028 = vmatpush1.msra.mxu0 0.0
          %3029 = vmatprep.subr.mxu0 0.0
          %3030 = vmatpush1.msra.mxu0 0.0
          %3031 = vmatprep.subr.mxu0 0.0
          %3032 = vmatpush1.msra.mxu0 0.0
          %3033 = vmatprep.mubr.f32.mxu0 0.0
          %v3034 = vand.u32 %v2398, 4294901760
          %3035 = vmatmul.mubr.f32.gmra.mrb[0].mxu0 %v3034
          %v3036 = vpop.f32.mrb[0].mxu0
          %v3037 = vadd.f32 %v2950, %v3036
          %v3038 = vpop.f32.mrb[0].mxu0
          %3039 = vdwg.mxu0
          %v3040 = vadd.f32 %v2396, %v3037
          %3041 = vst [vmem:[#allocation2] sm:$0xff] %v3040
          %v3042 = vld [vmem:[#allocation3] sm:$0xff]
          %3043 = vadd.xlane.f32.xlu0 %v2398
          %v3044 = vpop.xlane.xlu0 %3043
          %v3045 = vadd.f32 %v3042, %v3044
          %vm3046 = vcmask 7168
          %3047 = vst.msk [vmem:[#allocation3] sm:$0xff] %vm3046, %v3045
        $region88: #{tpu_custom_call.1} parent=75 // pred_fallthru
          _
        %s3048 = sld [smem:[#allocation8 + %s669]]
        %p3049 = scmp.eq.s32.totalorder %s3048, 1
        // Predicated region
        $region89: #{tpu_custom_call.1} parent=75 // pred_check
          %p3050 = pneg %p3049
        $region90: #{tpu_custom_call.1} parent=75 // pred_check_branch
          %3052 = sbr.rel (%p3050) target = $region92
        $region91: #{tpu_custom_call.1} parent=75 // pred_region
          %v3053 = vld [vmem:[#allocation2] sm:$0xff]
          %v3054 = vld [vmem:[#allocation3] sm:$0xff]
          %v3055 = vmax.f32 %v3054, 1.0
          %3057 = vset.pattern.permute.xlu0 0
          %3058 = vperm.xlu0 %3057, %v3055
          %v3059 = vpop.permute.xlu0 %3058
          %v3061 = vrcp.pop %v3059
          %v3062 = vmul.f32 %v3053, %v3061
          %v3063 = vld [vmem:[%s15] sm:$0xff]
          %v3064 = vld [vmem:[%s15 + $0x8] sm:$0xff]
          %v3065 = vld [vmem:[%s15 + $0x10] sm:$0xff]
          %v3066 = vld [vmem:[%s15 + $0x18] sm:$0xff]
          %v3067 = vld [vmem:[%s15 + $0x20] sm:$0xff]
          %v3068 = vld [vmem:[%s15 + $0x28] sm:$0xff]
          %v3069 = vld [vmem:[%s15 + $0x30] sm:$0xff]
          %v3070 = vld [vmem:[%s15 + $0x38] sm:$0xff]
          %v3071 = vld [vmem:[%s15 + $0x40] sm:$0xff]
          %v3072 = vld [vmem:[%s15 + $0x48] sm:$0xff]
          %v3073 = vld [vmem:[%s15 + $0x50] sm:$0xff]
          %v3074 = vld [vmem:[%s15 + $0x58] sm:$0xff]
          %v3075 = vld [vmem:[%s15 + $0x60] sm:$0xff]
          %v3076 = vld [vmem:[%s15 + $0x68] sm:$0xff]
          %v3077 = vld [vmem:[%s15 + $0x70] sm:$0xff]
          %v3078 = vld [vmem:[%s15 + $0x78] sm:$0xff]
          %v3079 = vld [vmem:[%s16] sm:$0x1]
          %v3081 = vlaneseq
          %v3082 = vshrl.u32 %v3081, 7
          %v3083 = vsub.s32 0, %v3082
          %v3084 = vrot.slane %v3079, %v3083
          %3086 = vmatprep.subr.mxu0 0.0
          %v3087 = vand.u32 %v3063, 4294901760
          %3088 = vmatpush1.msra.mxu0 %v3087
          %3089 = vmatprep.subr.mxu0 0.0
          %v3090 = vand.u32 %v3064, 4294901760
          %3091 = vmatpush1.msra.mxu0 %v3090
          %3092 = vmatprep.subr.mxu0 0.0
          %v3093 = vand.u32 %v3065, 4294901760
          %3094 = vmatpush1.msra.mxu0 %v3093
          %3095 = vmatprep.subr.mxu0 0.0
          %v3096 = vand.u32 %v3066, 4294901760
          %3097 = vmatpush1.msra.mxu0 %v3096
          %3098 = vmatprep.subr.mxu0 0.0
          %v3099 = vand.u32 %v3067, 4294901760
          %3100 = vmatpush1.msra.mxu0 %v3099
          %3101 = vmatprep.subr.mxu0 0.0
          %v3102 = vand.u32 %v3068, 4294901760
          %3103 = vmatpush1.msra.mxu0 %v3102
          %3104 = vmatprep.subr.mxu0 0.0
          %v3105 = vand.u32 %v3069, 4294901760
          %3106 = vmatpush1.msra.mxu0 %v3105
          %3107 = vmatprep.subr.mxu0 0.0
          %v3108 = vand.u32 %v3070, 4294901760
          %3109 = vmatpush1.msra.mxu0 %v3108
          %3110 = vmatprep.subr.mxu0 0.0
          %v3111 = vand.u32 %v3071, 4294901760
          %3112 = vmatpush1.msra.mxu0 %v3111
          %3113 = vmatprep.subr.mxu0 0.0
          %v3114 = vand.u32 %v3072, 4294901760
          %3115 = vmatpush1.msra.mxu0 %v3114
          %3116 = vmatprep.subr.mxu0 0.0
          %v3117 = vand.u32 %v3073, 4294901760
          %3118 = vmatpush1.msra.mxu0 %v3117
          %3119 = vmatprep.subr.mxu0 0.0
          %v3120 = vand.u32 %v3074, 4294901760
          %3121 = vmatpush1.msra.mxu0 %v3120
          %3122 = vmatprep.subr.mxu0 0.0
          %v3123 = vand.u32 %v3075, 4294901760
          %3124 = vmatpush1.msra.mxu0 %v3123
          %3125 = vmatprep.subr.mxu0 0.0
          %v3126 = vand.u32 %v3076, 4294901760
          %3127 = vmatpush1.msra.mxu0 %v3126
          %3128 = vmatprep.subr.mxu0 0.0
          %v3129 = vand.u32 %v3077, 4294901760
          %3130 = vmatpush1.msra.mxu0 %v3129
          %3131 = vmatprep.subr.mxu0 0.0
          %v3132 = vand.u32 %v3078, 4294901760
          %3133 = vmatpush1.msra.mxu0 %v3132
          %3134 = vmatprep.subr.mxu0 0.0
          %3135 = vmatpush1.msra.mxu0 0.0
          %3136 = vmatprep.subr.mxu0 0.0
          %3137 = vmatpush1.msra.mxu0 0.0
          %3138 = vmatprep.subr.mxu0 0.0
          %3139 = vmatpush1.msra.mxu0 0.0
          %3140 = vmatprep.subr.mxu0 0.0
          %3141 = vmatpush1.msra.mxu0 0.0
          %3142 = vmatprep.subr.mxu0 0.0
          %3143 = vmatpush1.msra.mxu0 0.0
          %3144 = vmatprep.subr.mxu0 0.0
          %3145 = vmatpush1.msra.mxu0 0.0
          %3146 = vmatprep.subr.mxu0 0.0
          %3147 = vmatpush1.msra.mxu0 0.0
          %3148 = vmatprep.subr.mxu0 0.0
          %3149 = vmatpush1.msra.mxu0 0.0
          %3150 = vmatprep.subr.mxu0 0.0
          %3151 = vmatpush1.msra.mxu0 0.0
          %3152 = vmatprep.subr.mxu0 0.0
          %3153 = vmatpush1.msra.mxu0 0.0
          %3154 = vmatprep.subr.mxu0 0.0
          %3155 = vmatpush1.msra.mxu0 0.0
          %3156 = vmatprep.subr.mxu0 0.0
          %3157 = vmatpush1.msra.mxu0 0.0
          %3158 = vmatprep.subr.mxu0 0.0
          %3159 = vmatpush1.msra.mxu0 0.0
          %3160 = vmatprep.subr.mxu0 0.0
          %3161 = vmatpush1.msra.mxu0 0.0
          %3162 = vmatprep.subr.mxu0 0.0
          %3163 = vmatpush1.msra.mxu0 0.0
          %3164 = vmatprep.subr.mxu0 0.0
          %3165 = vmatpush1.msra.mxu0 0.0
          %3166 = vmatprep.mubr.f32.mxu0 0.0
          %v3167 = vand.u32 %v3062, 4294901760
          %v3168 = vsub.f32 %v3062, %v3167
          %v3169 = vand.u32 %v3168, 4294901760
          %v3170 = vsub.f32 %v3168, %v3169
          %v3171 = vand.u32 %v3170, 4294901760
          %3172 = vmatmul.mubr.f32.gmra.mrb[0].mxu0 %v3171
          %v3173 = vpop.f32.mrb[0].mxu0
          %v3174 = vadd.f32 %v3084, %v3173
          %v3175 = vpop.f32.mrb[0].mxu0
          %3176 = vdwg.mxu0
          %3177 = vmatprep.subr.mxu0 0.0
          %v3178 = vand.u32 %v3063, 4294901760
          %v3179 = vsub.f32 %v3063, %v3178
          %v3180 = vand.u32 %v3179, 4294901760
          %v3181 = vsub.f32 %v3179, %v3180
          %v3182 = vand.u32 %v3181, 4294901760
          %3183 = vmatpush1.msra.mxu0 %v3182
          %3184 = vmatprep.subr.mxu0 0.0
          %v3185 = vand.u32 %v3064, 4294901760
          %v3186 = vsub.f32 %v3064, %v3185
          %v3187 = vand.u32 %v3186, 4294901760
          %v3188 = vsub.f32 %v3186, %v3187
          %v3189 = vand.u32 %v3188, 4294901760
          %3190 = vmatpush1.msra.mxu0 %v3189
          %3191 = vmatprep.subr.mxu0 0.0
          %v3192 = vand.u32 %v3065, 4294901760
          %v3193 = vsub.f32 %v3065, %v3192
          %v3194 = vand.u32 %v3193, 4294901760
          %v3195 = vsub.f32 %v3193, %v3194
          %v3196 = vand.u32 %v3195, 4294901760
          %3197 = vmatpush1.msra.mxu0 %v3196
          %3198 = vmatprep.subr.mxu0 0.0
          %v3199 = vand.u32 %v3066, 4294901760
          %v3200 = vsub.f32 %v3066, %v3199
          %v3201 = vand.u32 %v3200, 4294901760
          %v3202 = vsub.f32 %v3200, %v3201
          %v3203 = vand.u32 %v3202, 4294901760
          %3204 = vmatpush1.msra.mxu0 %v3203
          %3205 = vmatprep.subr.mxu0 0.0
          %v3206 = vand.u32 %v3067, 4294901760
          %v3207 = vsub.f32 %v3067, %v3206
          %v3208 = vand.u32 %v3207, 4294901760
          %v3209 = vsub.f32 %v3207, %v3208
          %v3210 = vand.u32 %v3209, 4294901760
          %3211 = vmatpush1.msra.mxu0 %v3210
          %3212 = vmatprep.subr.mxu0 0.0
          %v3213 = vand.u32 %v3068, 4294901760
          %v3214 = vsub.f32 %v3068, %v3213
          %v3215 = vand.u32 %v3214, 4294901760
          %v3216 = vsub.f32 %v3214, %v3215
          %v3217 = vand.u32 %v3216, 4294901760
          %3218 = vmatpush1.msra.mxu0 %v3217
          %3219 = vmatprep.subr.mxu0 0.0
          %v3220 = vand.u32 %v3069, 4294901760
          %v3221 = vsub.f32 %v3069, %v3220
          %v3222 = vand.u32 %v3221, 4294901760
          %v3223 = vsub.f32 %v3221, %v3222
          %v3224 = vand.u32 %v3223, 4294901760
          %3225 = vmatpush1.msra.mxu0 %v3224
          %3226 = vmatprep.subr.mxu0 0.0
          %v3227 = vand.u32 %v3070, 4294901760
          %v3228 = vsub.f32 %v3070, %v3227
          %v3229 = vand.u32 %v3228, 4294901760
          %v3230 = vsub.f32 %v3228, %v3229
          %v3231 = vand.u32 %v3230, 4294901760
          %3232 = vmatpush1.msra.mxu0 %v3231
          %3233 = vmatprep.subr.mxu0 0.0
          %v3234 = vand.u32 %v3071, 4294901760
          %v3235 = vsub.f32 %v3071, %v3234
          %v3236 = vand.u32 %v3235, 4294901760
          %v3237 = vsub.f32 %v3235, %v3236
          %v3238 = vand.u32 %v3237, 4294901760
          %3239 = vmatpush1.msra.mxu0 %v3238
          %3240 = vmatprep.subr.mxu0 0.0
          %v3241 = vand.u32 %v3072, 4294901760
          %v3242 = vsub.f32 %v3072, %v3241
          %v3243 = vand.u32 %v3242, 4294901760
          %v3244 = vsub.f32 %v3242, %v3243
          %v3245 = vand.u32 %v3244, 4294901760
          %3246 = vmatpush1.msra.mxu0 %v3245
          %3247 = vmatprep.subr.mxu0 0.0
          %v3248 = vand.u32 %v3073, 4294901760
          %v3249 = vsub.f32 %v3073, %v3248
          %v3250 = vand.u32 %v3249, 4294901760
          %v3251 = vsub.f32 %v3249, %v3250
          %v3252 = vand.u32 %v3251, 4294901760
          %3253 = vmatpush1.msra.mxu0 %v3252
          %3254 = vmatprep.subr.mxu0 0.0
          %v3255 = vand.u32 %v3074, 4294901760
          %v3256 = vsub.f32 %v3074, %v3255
          %v3257 = vand.u32 %v3256, 4294901760
          %v3258 = vsub.f32 %v3256, %v3257
          %v3259 = vand.u32 %v3258, 4294901760
          %3260 = vmatpush1.msra.mxu0 %v3259
          %3261 = vmatprep.subr.mxu0 0.0
          %v3262 = vand.u32 %v3075, 4294901760
          %v3263 = vsub.f32 %v3075, %v3262
          %v3264 = vand.u32 %v3263, 4294901760
          %v3265 = vsub.f32 %v3263, %v3264
          %v3266 = vand.u32 %v3265, 4294901760
          %3267 = vmatpush1.msra.mxu0 %v3266
          %3268 = vmatprep.subr.mxu0 0.0
          %v3269 = vand.u32 %v3076, 4294901760
          %v3270 = vsub.f32 %v3076, %v3269
          %v3271 = vand.u32 %v3270, 4294901760
          %v3272 = vsub.f32 %v3270, %v3271
          %v3273 = vand.u32 %v3272, 4294901760
          %3274 = vmatpush1.msra.mxu0 %v3273
          %3275 = vmatprep.subr.mxu0 0.0
          %v3276 = vand.u32 %v3077, 4294901760
          %v3277 = vsub.f32 %v3077, %v3276
          %v3278 = vand.u32 %v3277, 4294901760
          %v3279 = vsub.f32 %v3277, %v3278
          %v3280 = vand.u32 %v3279, 4294901760
          %3281 = vmatpush1.msra.mxu0 %v3280
          %3282 = vmatprep.subr.mxu0 0.0
          %v3283 = vand.u32 %v3078, 4294901760
          %v3284 = vsub.f32 %v3078, %v3283
          %v3285 = vand.u32 %v3284, 4294901760
          %v3286 = vsub.f32 %v3284, %v3285
          %v3287 = vand.u32 %v3286, 4294901760
          %3288 = vmatpush1.msra.mxu0 %v3287
          %3289 = vmatprep.subr.mxu0 0.0
          %3290 = vmatpush1.msra.mxu0 0.0
          %3291 = vmatprep.subr.mxu0 0.0
          %3292 = vmatpush1.msra.mxu0 0.0
          %3293 = vmatprep.subr.mxu0 0.0
          %3294 = vmatpush1.msra.mxu0 0.0
          %3295 = vmatprep.subr.mxu0 0.0
          %3296 = vmatpush1.msra.mxu0 0.0
          %3297 = vmatprep.subr.mxu0 0.0
          %3298 = vmatpush1.msra.mxu0 0.0
          %3299 = vmatprep.subr.mxu0 0.0
          %3300 = vmatpush1.msra.mxu0 0.0
          %3301 = vmatprep.subr.mxu0 0.0
          %3302 = vmatpush1.msra.mxu0 0.0
          %3303 = vmatprep.subr.mxu0 0.0
          %3304 = vmatpush1.msra.mxu0 0.0
          %3305 = vmatprep.subr.mxu0 0.0
          %3306 = vmatpush1.msra.mxu0 0.0
          %3307 = vmatprep.subr.mxu0 0.0
          %3308 = vmatpush1.msra.mxu0 0.0
          %3309 = vmatprep.subr.mxu0 0.0
          %3310 = vmatpush1.msra.mxu0 0.0
          %3311 = vmatprep.subr.mxu0 0.0
          %3312 = vmatpush1.msra.mxu0 0.0
          %3313 = vmatprep.subr.mxu0 0.0
          %3314 = vmatpush1.msra.mxu0 0.0
          %3315 = vmatprep.subr.mxu0 0.0
          %3316 = vmatpush1.msra.mxu0 0.0
          %3317 = vmatprep.subr.mxu0 0.0
          %3318 = vmatpush1.msra.mxu0 0.0
          %3319 = vmatprep.subr.mxu0 0.0
          %3320 = vmatpush1.msra.mxu0 0.0
          %3321 = vmatprep.mubr.f32.mxu0 0.0
          %v3322 = vand.u32 %v3062, 4294901760
          %3323 = vmatmul.mubr.f32.gmra.mrb[0].mxu0 %v3322
          %v3324 = vpop.f32.mrb[0].mxu0
          %v3325 = vadd.f32 %v3174, %v3324
          %v3326 = vpop.f32.mrb[0].mxu0
          %3327 = vdwg.mxu0
          %3328 = vmatprep.subr.mxu0 0.0
          %v3329 = vand.u32 %v3063, 4294901760
          %v3330 = vsub.f32 %v3063, %v3329
          %3331 = vmatpush1.msra.mxu0 %v3330
          %3332 = vmatprep.subr.mxu0 0.0
          %v3333 = vand.u32 %v3064, 4294901760
          %v3334 = vsub.f32 %v3064, %v3333
          %3335 = vmatpush1.msra.mxu0 %v3334
          %3336 = vmatprep.subr.mxu0 0.0
          %v3337 = vand.u32 %v3065, 4294901760
          %v3338 = vsub.f32 %v3065, %v3337
          %3339 = vmatpush1.msra.mxu0 %v3338
          %3340 = vmatprep.subr.mxu0 0.0
          %v3341 = vand.u32 %v3066, 4294901760
          %v3342 = vsub.f32 %v3066, %v3341
          %3343 = vmatpush1.msra.mxu0 %v3342
          %3344 = vmatprep.subr.mxu0 0.0
          %v3345 = vand.u32 %v3067, 4294901760
          %v3346 = vsub.f32 %v3067, %v3345
          %3347 = vmatpush1.msra.mxu0 %v3346
          %3348 = vmatprep.subr.mxu0 0.0
          %v3349 = vand.u32 %v3068, 4294901760
          %v3350 = vsub.f32 %v3068, %v3349
          %3351 = vmatpush1.msra.mxu0 %v3350
          %3352 = vmatprep.subr.mxu0 0.0
          %v3353 = vand.u32 %v3069, 4294901760
          %v3354 = vsub.f32 %v3069, %v3353
          %3355 = vmatpush1.msra.mxu0 %v3354
          %3356 = vmatprep.subr.mxu0 0.0
          %v3357 = vand.u32 %v3070, 4294901760
          %v3358 = vsub.f32 %v3070, %v3357
          %3359 = vmatpush1.msra.mxu0 %v3358
          %3360 = vmatprep.subr.mxu0 0.0
          %v3361 = vand.u32 %v3071, 4294901760
          %v3362 = vsub.f32 %v3071, %v3361
          %3363 = vmatpush1.msra.mxu0 %v3362
          %3364 = vmatprep.subr.mxu0 0.0
          %v3365 = vand.u32 %v3072, 4294901760
          %v3366 = vsub.f32 %v3072, %v3365
          %3367 = vmatpush1.msra.mxu0 %v3366
          %3368 = vmatprep.subr.mxu0 0.0
          %v3369 = vand.u32 %v3073, 4294901760
          %v3370 = vsub.f32 %v3073, %v3369
          %3371 = vmatpush1.msra.mxu0 %v3370
          %3372 = vmatprep.subr.mxu0 0.0
          %v3373 = vand.u32 %v3074, 4294901760
          %v3374 = vsub.f32 %v3074, %v3373
          %3375 = vmatpush1.msra.mxu0 %v3374
          %3376 = vmatprep.subr.mxu0 0.0
          %v3377 = vand.u32 %v3075, 4294901760
          %v3378 = vsub.f32 %v3075, %v3377
          %3379 = vmatpush1.msra.mxu0 %v3378
          %3380 = vmatprep.subr.mxu0 0.0
          %v3381 = vand.u32 %v3076, 4294901760
          %v3382 = vsub.f32 %v3076, %v3381
          %3383 = vmatpush1.msra.mxu0 %v3382
          %3384 = vmatprep.subr.mxu0 0.0
          %v3385 = vand.u32 %v3077, 4294901760
          %v3386 = vsub.f32 %v3077, %v3385
          %3387 = vmatpush1.msra.mxu0 %v3386
          %3388 = vmatprep.subr.mxu0 0.0
          %v3389 = vand.u32 %v3078, 4294901760
          %v3390 = vsub.f32 %v3078, %v3389
          %3391 = vmatpush1.msra.mxu0 %v3390
          %3392 = vmatprep.subr.mxu0 0.0
          %3393 = vmatpush1.msra.mxu0 0.0
          %3394 = vmatprep.subr.mxu0 0.0
          %3395 = vmatpush1.msra.mxu0 0.0
          %3396 = vmatprep.subr.mxu0 0.0
          %3397 = vmatpush1.msra.mxu0 0.0
          %3398 = vmatprep.subr.mxu0 0.0
          %3399 = vmatpush1.msra.mxu0 0.0
          %3400 = vmatprep.subr.mxu0 0.0
          %3401 = vmatpush1.msra.mxu0 0.0
          %3402 = vmatprep.subr.mxu0 0.0
          %3403 = vmatpush1.msra.mxu0 0.0
          %3404 = vmatprep.subr.mxu0 0.0
          %3405 = vmatpush1.msra.mxu0 0.0
          %3406 = vmatprep.subr.mxu0 0.0
          %3407 = vmatpush1.msra.mxu0 0.0
          %3408 = vmatprep.subr.mxu0 0.0
          %3409 = vmatpush1.msra.mxu0 0.0
          %3410 = vmatprep.subr.mxu0 0.0
          %3411 = vmatpush1.msra.mxu0 0.0
          %3412 = vmatprep.subr.mxu0 0.0
          %3413 = vmatpush1.msra.mxu0 0.0
          %3414 = vmatprep.subr.mxu0 0.0
          %3415 = vmatpush1.msra.mxu0 0.0
          %3416 = vmatprep.subr.mxu0 0.0
          %3417 = vmatpush1.msra.mxu0 0.0
          %3418 = vmatprep.subr.mxu0 0.0
          %3419 = vmatpush1.msra.mxu0 0.0
          %3420 = vmatprep.subr.mxu0 0.0
          %3421 = vmatpush1.msra.mxu0 0.0
          %3422 = vmatprep.subr.mxu0 0.0
          %3423 = vmatpush1.msra.mxu0 0.0
          %3424 = vmatprep.mubr.f32.mxu0 0.0
          %v3425 = vand.u32 %v3062, 4294901760
          %v3426 = vsub.f32 %v3062, %v3425
          %3427 = vmatmul.mubr.f32.gmra.mrb[0].mxu0 %v3426
          %v3428 = vpop.f32.mrb[0].mxu0
          %v3429 = vadd.f32 %v3325, %v3428
          %v3430 = vpop.f32.mrb[0].mxu0
          %3431 = vdwg.mxu0
          %3432 = vmatprep.subr.mxu0 0.0
          %v3433 = vand.u32 %v3063, 4294901760
          %3434 = vmatpush1.msra.mxu0 %v3433
          %3435 = vmatprep.subr.mxu0 0.0
          %v3436 = vand.u32 %v3064, 4294901760
          %3437 = vmatpush1.msra.mxu0 %v3436
          %3438 = vmatprep.subr.mxu0 0.0
          %v3439 = vand.u32 %v3065, 4294901760
          %3440 = vmatpush1.msra.mxu0 %v3439
          %3441 = vmatprep.subr.mxu0 0.0
          %v3442 = vand.u32 %v3066, 4294901760
          %3443 = vmatpush1.msra.mxu0 %v3442
          %3444 = vmatprep.subr.mxu0 0.0
          %v3445 = vand.u32 %v3067, 4294901760
          %3446 = vmatpush1.msra.mxu0 %v3445
          %3447 = vmatprep.subr.mxu0 0.0
          %v3448 = vand.u32 %v3068, 4294901760
          %3449 = vmatpush1.msra.mxu0 %v3448
          %3450 = vmatprep.subr.mxu0 0.0
          %v3451 = vand.u32 %v3069, 4294901760
          %3452 = vmatpush1.msra.mxu0 %v3451
          %3453 = vmatprep.subr.mxu0 0.0
          %v3454 = vand.u32 %v3070, 4294901760
          %3455 = vmatpush1.msra.mxu0 %v3454
          %3456 = vmatprep.subr.mxu0 0.0
          %v3457 = vand.u32 %v3071, 4294901760
          %3458 = vmatpush1.msra.mxu0 %v3457
          %3459 = vmatprep.subr.mxu0 0.0
          %v3460 = vand.u32 %v3072, 4294901760
          %3461 = vmatpush1.msra.mxu0 %v3460
          %3462 = vmatprep.subr.mxu0 0.0
          %v3463 = vand.u32 %v3073, 4294901760
          %3464 = vmatpush1.msra.mxu0 %v3463
          %3465 = vmatprep.subr.mxu0 0.0
          %v3466 = vand.u32 %v3074, 4294901760
          %3467 = vmatpush1.msra.mxu0 %v3466
          %3468 = vmatprep.subr.mxu0 0.0
          %v3469 = vand.u32 %v3075, 4294901760
          %3470 = vmatpush1.msra.mxu0 %v3469
          %3471 = vmatprep.subr.mxu0 0.0
          %v3472 = vand.u32 %v3076, 4294901760
          %3473 = vmatpush1.msra.mxu0 %v3472
          %3474 = vmatprep.subr.mxu0 0.0
          %v3475 = vand.u32 %v3077, 4294901760
          %3476 = vmatpush1.msra.mxu0 %v3475
          %3477 = vmatprep.subr.mxu0 0.0
          %v3478 = vand.u32 %v3078, 4294901760
          %3479 = vmatpush1.msra.mxu0 %v3478
          %3480 = vmatprep.subr.mxu0 0.0
          %3481 = vmatpush1.msra.mxu0 0.0
          %3482 = vmatprep.subr.mxu0 0.0
          %3483 = vmatpush1.msra.mxu0 0.0
          %3484 = vmatprep.subr.mxu0 0.0
          %3485 = vmatpush1.msra.mxu0 0.0
          %3486 = vmatprep.subr.mxu0 0.0
          %3487 = vmatpush1.msra.mxu0 0.0
          %3488 = vmatprep.subr.mxu0 0.0
          %3489 = vmatpush1.msra.mxu0 0.0
          %3490 = vmatprep.subr.mxu0 0.0
          %3491 = vmatpush1.msra.mxu0 0.0
          %3492 = vmatprep.subr.mxu0 0.0
          %3493 = vmatpush1.msra.mxu0 0.0
          %3494 = vmatprep.subr.mxu0 0.0
          %3495 = vmatpush1.msra.mxu0 0.0
          %3496 = vmatprep.subr.mxu0 0.0
          %3497 = vmatpush1.msra.mxu0 0.0
          %3498 = vmatprep.subr.mxu0 0.0
          %3499 = vmatpush1.msra.mxu0 0.0
          %3500 = vmatprep.subr.mxu0 0.0
          %3501 = vmatpush1.msra.mxu0 0.0
          %3502 = vmatprep.subr.mxu0 0.0
          %3503 = vmatpush1.msra.mxu0 0.0
          %3504 = vmatprep.subr.mxu0 0.0
          %3505 = vmatpush1.msra.mxu0 0.0
          %3506 = vmatprep.subr.mxu0 0.0
          %3507 = vmatpush1.msra.mxu0 0.0
          %3508 = vmatprep.subr.mxu0 0.0
          %3509 = vmatpush1.msra.mxu0 0.0
          %3510 = vmatprep.subr.mxu0 0.0
          %3511 = vmatpush1.msra.mxu0 0.0
          %3512 = vmatprep.mubr.f32.mxu0 0.0
          %v3513 = vand.u32 %v3062, 4294901760
          %v3514 = vsub.f32 %v3062, %v3513
          %v3515 = vand.u32 %v3514, 4294901760
          %3516 = vmatmul.mubr.f32.gmra.mrb[0].mxu0 %v3515
          %v3517 = vpop.f32.mrb[0].mxu0
          %v3518 = vadd.f32 %v3429, %v3517
          %v3519 = vpop.f32.mrb[0].mxu0
          %3520 = vdwg.mxu0
          %3521 = vmatprep.subr.mxu0 0.0
          %v3522 = vand.u32 %v3063, 4294901760
          %v3523 = vsub.f32 %v3063, %v3522
          %v3524 = vand.u32 %v3523, 4294901760
          %3525 = vmatpush1.msra.mxu0 %v3524
          %3526 = vmatprep.subr.mxu0 0.0
          %v3527 = vand.u32 %v3064, 4294901760
          %v3528 = vsub.f32 %v3064, %v3527
          %v3529 = vand.u32 %v3528, 4294901760
          %3530 = vmatpush1.msra.mxu0 %v3529
          %3531 = vmatprep.subr.mxu0 0.0
          %v3532 = vand.u32 %v3065, 4294901760
          %v3533 = vsub.f32 %v3065, %v3532
          %v3534 = vand.u32 %v3533, 4294901760
          %3535 = vmatpush1.msra.mxu0 %v3534
          %3536 = vmatprep.subr.mxu0 0.0
          %v3537 = vand.u32 %v3066, 4294901760
          %v3538 = vsub.f32 %v3066, %v3537
          %v3539 = vand.u32 %v3538, 4294901760
          %3540 = vmatpush1.msra.mxu0 %v3539
          %3541 = vmatprep.subr.mxu0 0.0
          %v3542 = vand.u32 %v3067, 4294901760
          %v3543 = vsub.f32 %v3067, %v3542
          %v3544 = vand.u32 %v3543, 4294901760
          %3545 = vmatpush1.msra.mxu0 %v3544
          %3546 = vmatprep.subr.mxu0 0.0
          %v3547 = vand.u32 %v3068, 4294901760
          %v3548 = vsub.f32 %v3068, %v3547
          %v3549 = vand.u32 %v3548, 4294901760
          %3550 = vmatpush1.msra.mxu0 %v3549
          %3551 = vmatprep.subr.mxu0 0.0
          %v3552 = vand.u32 %v3069, 4294901760
          %v3553 = vsub.f32 %v3069, %v3552
          %v3554 = vand.u32 %v3553, 4294901760
          %3555 = vmatpush1.msra.mxu0 %v3554
          %3556 = vmatprep.subr.mxu0 0.0
          %v3557 = vand.u32 %v3070, 4294901760
          %v3558 = vsub.f32 %v3070, %v3557
          %v3559 = vand.u32 %v3558, 4294901760
          %3560 = vmatpush1.msra.mxu0 %v3559
          %3561 = vmatprep.subr.mxu0 0.0
          %v3562 = vand.u32 %v3071, 4294901760
          %v3563 = vsub.f32 %v3071, %v3562
          %v3564 = vand.u32 %v3563, 4294901760
          %3565 = vmatpush1.msra.mxu0 %v3564
          %3566 = vmatprep.subr.mxu0 0.0
          %v3567 = vand.u32 %v3072, 4294901760
          %v3568 = vsub.f32 %v3072, %v3567
          %v3569 = vand.u32 %v3568, 4294901760
          %3570 = vmatpush1.msra.mxu0 %v3569
          %3571 = vmatprep.subr.mxu0 0.0
          %v3572 = vand.u32 %v3073, 4294901760
          %v3573 = vsub.f32 %v3073, %v3572
          %v3574 = vand.u32 %v3573, 4294901760
          %3575 = vmatpush1.msra.mxu0 %v3574
          %3576 = vmatprep.subr.mxu0 0.0
          %v3577 = vand.u32 %v3074, 4294901760
          %v3578 = vsub.f32 %v3074, %v3577
          %v3579 = vand.u32 %v3578, 4294901760
          %3580 = vmatpush1.msra.mxu0 %v3579
          %3581 = vmatprep.subr.mxu0 0.0
          %v3582 = vand.u32 %v3075, 4294901760
          %v3583 = vsub.f32 %v3075, %v3582
          %v3584 = vand.u32 %v3583, 4294901760
          %3585 = vmatpush1.msra.mxu0 %v3584
          %3586 = vmatprep.subr.mxu0 0.0
          %v3587 = vand.u32 %v3076, 4294901760
          %v3588 = vsub.f32 %v3076, %v3587
          %v3589 = vand.u32 %v3588, 4294901760
          %3590 = vmatpush1.msra.mxu0 %v3589
          %3591 = vmatprep.subr.mxu0 0.0
          %v3592 = vand.u32 %v3077, 4294901760
          %v3593 = vsub.f32 %v3077, %v3592
          %v3594 = vand.u32 %v3593, 4294901760
          %3595 = vmatpush1.msra.mxu0 %v3594
          %3596 = vmatprep.subr.mxu0 0.0
          %v3597 = vand.u32 %v3078, 4294901760
          %v3598 = vsub.f32 %v3078, %v3597
          %v3599 = vand.u32 %v3598, 4294901760
          %3600 = vmatpush1.msra.mxu0 %v3599
          %3601 = vmatprep.subr.mxu0 0.0
          %3602 = vmatpush1.msra.mxu0 0.0
          %3603 = vmatprep.subr.mxu0 0.0
          %3604 = vmatpush1.msra.mxu0 0.0
          %3605 = vmatprep.subr.mxu0 0.0
          %3606 = vmatpush1.msra.mxu0 0.0
          %3607 = vmatprep.subr.mxu0 0.0
          %3608 = vmatpush1.msra.mxu0 0.0
          %3609 = vmatprep.subr.mxu0 0.0
          %3610 = vmatpush1.msra.mxu0 0.0
          %3611 = vmatprep.subr.mxu0 0.0
          %3612 = vmatpush1.msra.mxu0 0.0
          %3613 = vmatprep.subr.mxu0 0.0
          %3614 = vmatpush1.msra.mxu0 0.0
          %3615 = vmatprep.subr.mxu0 0.0
          %3616 = vmatpush1.msra.mxu0 0.0
          %3617 = vmatprep.subr.mxu0 0.0
          %3618 = vmatpush1.msra.mxu0 0.0
          %3619 = vmatprep.subr.mxu0 0.0
          %3620 = vmatpush1.msra.mxu0 0.0
          %3621 = vmatprep.subr.mxu0 0.0
          %3622 = vmatpush1.msra.mxu0 0.0
          %3623 = vmatprep.subr.mxu0 0.0
          %3624 = vmatpush1.msra.mxu0 0.0
          %3625 = vmatprep.subr.mxu0 0.0
          %3626 = vmatpush1.msra.mxu0 0.0
          %3627 = vmatprep.subr.mxu0 0.0
          %3628 = vmatpush1.msra.mxu0 0.0
          %3629 = vmatprep.subr.mxu0 0.0
          %3630 = vmatpush1.msra.mxu0 0.0
          %3631 = vmatprep.subr.mxu0 0.0
          %3632 = vmatpush1.msra.mxu0 0.0
          %3633 = vmatprep.mubr.f32.mxu0 0.0
          %v3634 = vand.u32 %v3062, 4294901760
          %3635 = vmatmul.mubr.f32.gmra.mrb[0].mxu0 %v3634
          %v3636 = vpop.f32.mrb[0].mxu0
          %v3637 = vadd.f32 %v3518, %v3636
          %v3638 = vpop.f32.mrb[0].mxu0
          %3639 = vdwg.mxu0
          %3640 = vmatprep.subr.mxu0 0.0
          %v3641 = vand.u32 %v3063, 4294901760
          %3642 = vmatpush1.msra.mxu0 %v3641
          %3643 = vmatprep.subr.mxu0 0.0
          %v3644 = vand.u32 %v3064, 4294901760
          %3645 = vmatpush1.msra.mxu0 %v3644
          %3646 = vmatprep.subr.mxu0 0.0
          %v3647 = vand.u32 %v3065, 4294901760
          %3648 = vmatpush1.msra.mxu0 %v3647
          %3649 = vmatprep.subr.mxu0 0.0
          %v3650 = vand.u32 %v3066, 4294901760
          %3651 = vmatpush1.msra.mxu0 %v3650
          %3652 = vmatprep.subr.mxu0 0.0
          %v3653 = vand.u32 %v3067, 4294901760
          %3654 = vmatpush1.msra.mxu0 %v3653
          %3655 = vmatprep.subr.mxu0 0.0
          %v3656 = vand.u32 %v3068, 4294901760
          %3657 = vmatpush1.msra.mxu0 %v3656
          %3658 = vmatprep.subr.mxu0 0.0
          %v3659 = vand.u32 %v3069, 4294901760
          %3660 = vmatpush1.msra.mxu0 %v3659
          %3661 = vmatprep.subr.mxu0 0.0
          %v3662 = vand.u32 %v3070, 4294901760
          %3663 = vmatpush1.msra.mxu0 %v3662
          %3664 = vmatprep.subr.mxu0 0.0
          %v3665 = vand.u32 %v3071, 4294901760
          %3666 = vmatpush1.msra.mxu0 %v3665
          %3667 = vmatprep.subr.mxu0 0.0
          %v3668 = vand.u32 %v3072, 4294901760
          %3669 = vmatpush1.msra.mxu0 %v3668
          %3670 = vmatprep.subr.mxu0 0.0
          %v3671 = vand.u32 %v3073, 4294901760
          %3672 = vmatpush1.msra.mxu0 %v3671
          %3673 = vmatprep.subr.mxu0 0.0
          %v3674 = vand.u32 %v3074, 4294901760
          %3675 = vmatpush1.msra.mxu0 %v3674
          %3676 = vmatprep.subr.mxu0 0.0
          %v3677 = vand.u32 %v3075, 4294901760
          %3678 = vmatpush1.msra.mxu0 %v3677
          %3679 = vmatprep.subr.mxu0 0.0
          %v3680 = vand.u32 %v3076, 4294901760
          %3681 = vmatpush1.msra.mxu0 %v3680
          %3682 = vmatprep.subr.mxu0 0.0
          %v3683 = vand.u32 %v3077, 4294901760
          %3684 = vmatpush1.msra.mxu0 %v3683
          %3685 = vmatprep.subr.mxu0 0.0
          %v3686 = vand.u32 %v3078, 4294901760
          %3687 = vmatpush1.msra.mxu0 %v3686
          %3688 = vmatprep.subr.mxu0 0.0
          %3689 = vmatpush1.msra.mxu0 0.0
          %3690 = vmatprep.subr.mxu0 0.0
          %3691 = vmatpush1.msra.mxu0 0.0
          %3692 = vmatprep.subr.mxu0 0.0
          %3693 = vmatpush1.msra.mxu0 0.0
          %3694 = vmatprep.subr.mxu0 0.0
          %3695 = vmatpush1.msra.mxu0 0.0
          %3696 = vmatprep.subr.mxu0 0.0
          %3697 = vmatpush1.msra.mxu0 0.0
          %3698 = vmatprep.subr.mxu0 0.0
          %3699 = vmatpush1.msra.mxu0 0.0
          %3700 = vmatprep.subr.mxu0 0.0
          %3701 = vmatpush1.msra.mxu0 0.0
          %3702 = vmatprep.subr.mxu0 0.0
          %3703 = vmatpush1.msra.mxu0 0.0
          %3704 = vmatprep.subr.mxu0 0.0
          %3705 = vmatpush1.msra.mxu0 0.0
          %3706 = vmatprep.subr.mxu0 0.0
          %3707 = vmatpush1.msra.mxu0 0.0
          %3708 = vmatprep.subr.mxu0 0.0
          %3709 = vmatpush1.msra.mxu0 0.0
          %3710 = vmatprep.subr.mxu0 0.0
          %3711 = vmatpush1.msra.mxu0 0.0
          %3712 = vmatprep.subr.mxu0 0.0
          %3713 = vmatpush1.msra.mxu0 0.0
          %3714 = vmatprep.subr.mxu0 0.0
          %3715 = vmatpush1.msra.mxu0 0.0
          %3716 = vmatprep.subr.mxu0 0.0
          %3717 = vmatpush1.msra.mxu0 0.0
          %3718 = vmatprep.subr.mxu0 0.0
          %3719 = vmatpush1.msra.mxu0 0.0
          %3720 = vmatprep.mubr.f32.mxu0 0.0
          %v3721 = vand.u32 %v3062, 4294901760
          %3722 = vmatmul.mubr.f32.gmra.mrb[0].mxu0 %v3721
          %v3723 = vpop.f32.mrb[0].mxu0
          %v3724 = vadd.f32 %v3637, %v3723
          %v3725 = vpop.f32.mrb[0].mxu0
          %3726 = vdwg.mxu0
          %v3727 = vld [vmem:[%s661] sm:$0xff]
          %v3728 = vld [vmem:[%s14] sm:$0x1]
          %3730 = vset.pattern.permute.xlu0 0
          %3731 = vperm.xlu0 %3730, %v3727
          %v3732 = vpop.permute.xlu0 %3731
          %v3734 = vlaneseq
          %v3735 = vshrl.u32 %v3734, 7
          %v3736 = vsub.s32 0, %v3735
          %v3737 = vrot.slane %v3728, %v3736
          %v3738 = vmul.f32 %v3732, %v3737
          %v3739 = vadd.f32 %v3724, %v3738
          %v3740 = vld [vmem:[%s14 + $0x1] sm:$0x1]
          %3741 = vset.pattern.permute.xlu0 1
          %3742 = vperm.xlu0 %3741, %v3727
          %v3743 = vpop.permute.xlu0 %3742
          %v3745 = vlaneseq
          %v3746 = vshrl.u32 %v3745, 7
          %v3747 = vsub.s32 0, %v3746
          %v3748 = vrot.slane %v3740, %v3747
          %v3749 = vmul.f32 %v3743, %v3748
          %v3750 = vadd.f32 %v3739, %v3749
          %v3751 = vmax.f32 %v3750, 0.0
          %v3752 = vld [vmem:[#allocation10] sm:$0xff]
          %v3753 = vld [vmem:[#allocation10 + $0x8] sm:$0xff]
          %v3754 = vld [vmem:[#allocation10 + $0x10] sm:$0xff]
          %v3755 = vld [vmem:[#allocation10 + $0x18] sm:$0xff]
          %v3756 = vld [vmem:[#allocation10 + $0x20] sm:$0xff]
          %v3757 = vld [vmem:[#allocation10 + $0x28] sm:$0xff]
          %v3758 = vld [vmem:[#allocation10 + $0x30] sm:$0xff]
          %v3759 = vld [vmem:[#allocation10 + $0x38] sm:$0xff]
          %v3760 = vld [vmem:[#allocation10 + $0x40] sm:$0xff]
          %v3761 = vld [vmem:[#allocation10 + $0x48] sm:$0xff]
          %v3762 = vld [vmem:[#allocation10 + $0x50] sm:$0xff]
          %v3763 = vld [vmem:[#allocation10 + $0x58] sm:$0xff]
          %v3764 = vld [vmem:[#allocation10 + $0x60] sm:$0xff]
          %v3765 = vld [vmem:[#allocation10 + $0x68] sm:$0xff]
          %v3766 = vld [vmem:[#allocation10 + $0x70] sm:$0xff]
          %v3767 = vld [vmem:[#allocation10 + $0x78] sm:$0xff]
          %v3768 = vld [vmem:[%s18] sm:$0x1]
          %v3770 = vlaneseq
          %v3771 = vshrl.u32 %v3770, 7
          %v3772 = vsub.s32 0, %v3771
          %v3773 = vrot.slane %v3768, %v3772
          %3775 = vmatprep.subr.mxu0 0.0
          %v3776 = vand.u32 %v3752, 4294901760
          %3777 = vmatpush1.msra.mxu0 %v3776
          %3778 = vmatprep.subr.mxu0 0.0
          %v3779 = vand.u32 %v3753, 4294901760
          %3780 = vmatpush1.msra.mxu0 %v3779
          %3781 = vmatprep.subr.mxu0 0.0
          %v3782 = vand.u32 %v3754, 4294901760
          %3783 = vmatpush1.msra.mxu0 %v3782
          %3784 = vmatprep.subr.mxu0 0.0
          %v3785 = vand.u32 %v3755, 4294901760
          %3786 = vmatpush1.msra.mxu0 %v3785
          %3787 = vmatprep.subr.mxu0 0.0
          %v3788 = vand.u32 %v3756, 4294901760
          %3789 = vmatpush1.msra.mxu0 %v3788
          %3790 = vmatprep.subr.mxu0 0.0
          %v3791 = vand.u32 %v3757, 4294901760
          %3792 = vmatpush1.msra.mxu0 %v3791
          %3793 = vmatprep.subr.mxu0 0.0
          %v3794 = vand.u32 %v3758, 4294901760
          %3795 = vmatpush1.msra.mxu0 %v3794
          %3796 = vmatprep.subr.mxu0 0.0
          %v3797 = vand.u32 %v3759, 4294901760
          %3798 = vmatpush1.msra.mxu0 %v3797
          %3799 = vmatprep.subr.mxu0 0.0
          %v3800 = vand.u32 %v3760, 4294901760
          %3801 = vmatpush1.msra.mxu0 %v3800
          %3802 = vmatprep.subr.mxu0 0.0
          %v3803 = vand.u32 %v3761, 4294901760
          %3804 = vmatpush1.msra.mxu0 %v3803
          %3805 = vmatprep.subr.mxu0 0.0
          %v3806 = vand.u32 %v3762, 4294901760
          %3807 = vmatpush1.msra.mxu0 %v3806
          %3808 = vmatprep.subr.mxu0 0.0
          %v3809 = vand.u32 %v3763, 4294901760
          %3810 = vmatpush1.msra.mxu0 %v3809
          %3811 = vmatprep.subr.mxu0 0.0
          %v3812 = vand.u32 %v3764, 4294901760
          %3813 = vmatpush1.msra.mxu0 %v3812
          %3814 = vmatprep.subr.mxu0 0.0
          %v3815 = vand.u32 %v3765, 4294901760
          %3816 = vmatpush1.msra.mxu0 %v3815
          %3817 = vmatprep.subr.mxu0 0.0
          %v3818 = vand.u32 %v3766, 4294901760
          %3819 = vmatpush1.msra.mxu0 %v3818
          %3820 = vmatprep.subr.mxu0 0.0
          %v3821 = vand.u32 %v3767, 4294901760
          %3822 = vmatpush1.msra.mxu0 %v3821
          %3823 = vmatprep.subr.mxu0 0.0
          %3824 = vmatpush1.msra.mxu0 0.0
          %3825 = vmatprep.subr.mxu0 0.0
          %3826 = vmatpush1.msra.mxu0 0.0
          %3827 = vmatprep.subr.mxu0 0.0
          %3828 = vmatpush1.msra.mxu0 0.0
          %3829 = vmatprep.subr.mxu0 0.0
          %3830 = vmatpush1.msra.mxu0 0.0
          %3831 = vmatprep.subr.mxu0 0.0
          %3832 = vmatpush1.msra.mxu0 0.0
          %3833 = vmatprep.subr.mxu0 0.0
          %3834 = vmatpush1.msra.mxu0 0.0
          %3835 = vmatprep.subr.mxu0 0.0
          %3836 = vmatpush1.msra.mxu0 0.0
          %3837 = vmatprep.subr.mxu0 0.0
          %3838 = vmatpush1.msra.mxu0 0.0
          %3839 = vmatprep.subr.mxu0 0.0
          %3840 = vmatpush1.msra.mxu0 0.0
          %3841 = vmatprep.subr.mxu0 0.0
          %3842 = vmatpush1.msra.mxu0 0.0
          %3843 = vmatprep.subr.mxu0 0.0
          %3844 = vmatpush1.msra.mxu0 0.0
          %3845 = vmatprep.subr.mxu0 0.0
          %3846 = vmatpush1.msra.mxu0 0.0
          %3847 = vmatprep.subr.mxu0 0.0
          %3848 = vmatpush1.msra.mxu0 0.0
          %3849 = vmatprep.subr.mxu0 0.0
          %3850 = vmatpush1.msra.mxu0 0.0
          %3851 = vmatprep.subr.mxu0 0.0
          %3852 = vmatpush1.msra.mxu0 0.0
          %3853 = vmatprep.subr.mxu0 0.0
          %3854 = vmatpush1.msra.mxu0 0.0
          %3855 = vmatprep.mubr.f32.mxu0 0.0
          %v3856 = vand.u32 %v3751, 4294901760
          %v3857 = vsub.f32 %v3751, %v3856
          %v3858 = vand.u32 %v3857, 4294901760
          %v3859 = vsub.f32 %v3857, %v3858
          %v3860 = vand.u32 %v3859, 4294901760
          %3861 = vmatmul.mubr.f32.gmra.mrb[0].mxu0 %v3860
          %v3862 = vpop.f32.mrb[0].mxu0
          %v3863 = vadd.f32 %v3773, %v3862
          %v3864 = vpop.f32.mrb[0].mxu0
          %3865 = vdwg.mxu0
          %3866 = vmatprep.subr.mxu0 0.0
          %v3867 = vand.u32 %v3752, 4294901760
          %v3868 = vsub.f32 %v3752, %v3867
          %v3869 = vand.u32 %v3868, 4294901760
          %v3870 = vsub.f32 %v3868, %v3869
          %v3871 = vand.u32 %v3870, 4294901760
          %3872 = vmatpush1.msra.mxu0 %v3871
          %3873 = vmatprep.subr.mxu0 0.0
          %v3874 = vand.u32 %v3753, 4294901760
          %v3875 = vsub.f32 %v3753, %v3874
          %v3876 = vand.u32 %v3875, 4294901760
          %v3877 = vsub.f32 %v3875, %v3876
          %v3878 = vand.u32 %v3877, 4294901760
          %3879 = vmatpush1.msra.mxu0 %v3878
          %3880 = vmatprep.subr.mxu0 0.0
          %v3881 = vand.u32 %v3754, 4294901760
          %v3882 = vsub.f32 %v3754, %v3881
          %v3883 = vand.u32 %v3882, 4294901760
          %v3884 = vsub.f32 %v3882, %v3883
          %v3885 = vand.u32 %v3884, 4294901760
          %3886 = vmatpush1.msra.mxu0 %v3885
          %3887 = vmatprep.subr.mxu0 0.0
          %v3888 = vand.u32 %v3755, 4294901760
          %v3889 = vsub.f32 %v3755, %v3888
          %v3890 = vand.u32 %v3889, 4294901760
          %v3891 = vsub.f32 %v3889, %v3890
          %v3892 = vand.u32 %v3891, 4294901760
          %3893 = vmatpush1.msra.mxu0 %v3892
          %3894 = vmatprep.subr.mxu0 0.0
          %v3895 = vand.u32 %v3756, 4294901760
          %v3896 = vsub.f32 %v3756, %v3895
          %v3897 = vand.u32 %v3896, 4294901760
          %v3898 = vsub.f32 %v3896, %v3897
          %v3899 = vand.u32 %v3898, 4294901760
          %3900 = vmatpush1.msra.mxu0 %v3899
          %3901 = vmatprep.subr.mxu0 0.0
          %v3902 = vand.u32 %v3757, 4294901760
          %v3903 = vsub.f32 %v3757, %v3902
          %v3904 = vand.u32 %v3903, 4294901760
          %v3905 = vsub.f32 %v3903, %v3904
          %v3906 = vand.u32 %v3905, 4294901760
          %3907 = vmatpush1.msra.mxu0 %v3906
          %3908 = vmatprep.subr.mxu0 0.0
          %v3909 = vand.u32 %v3758, 4294901760
          %v3910 = vsub.f32 %v3758, %v3909
          %v3911 = vand.u32 %v3910, 4294901760
          %v3912 = vsub.f32 %v3910, %v3911
          %v3913 = vand.u32 %v3912, 4294901760
          %3914 = vmatpush1.msra.mxu0 %v3913
          %3915 = vmatprep.subr.mxu0 0.0
          %v3916 = vand.u32 %v3759, 4294901760
          %v3917 = vsub.f32 %v3759, %v3916
          %v3918 = vand.u32 %v3917, 4294901760
          %v3919 = vsub.f32 %v3917, %v3918
          %v3920 = vand.u32 %v3919, 4294901760
          %3921 = vmatpush1.msra.mxu0 %v3920
          %3922 = vmatprep.subr.mxu0 0.0
          %v3923 = vand.u32 %v3760, 4294901760
          %v3924 = vsub.f32 %v3760, %v3923
          %v3925 = vand.u32 %v3924, 4294901760
          %v3926 = vsub.f32 %v3924, %v3925
          %v3927 = vand.u32 %v3926, 4294901760
          %3928 = vmatpush1.msra.mxu0 %v3927
          %3929 = vmatprep.subr.mxu0 0.0
          %v3930 = vand.u32 %v3761, 4294901760
          %v3931 = vsub.f32 %v3761, %v3930
          %v3932 = vand.u32 %v3931, 4294901760
          %v3933 = vsub.f32 %v3931, %v3932
          %v3934 = vand.u32 %v3933, 4294901760
          %3935 = vmatpush1.msra.mxu0 %v3934
          %3936 = vmatprep.subr.mxu0 0.0
          %v3937 = vand.u32 %v3762, 4294901760
          %v3938 = vsub.f32 %v3762, %v3937
          %v3939 = vand.u32 %v3938, 4294901760
          %v3940 = vsub.f32 %v3938, %v3939
          %v3941 = vand.u32 %v3940, 4294901760
          %3942 = vmatpush1.msra.mxu0 %v3941
          %3943 = vmatprep.subr.mxu0 0.0
          %v3944 = vand.u32 %v3763, 4294901760
          %v3945 = vsub.f32 %v3763, %v3944
          %v3946 = vand.u32 %v3945, 4294901760
          %v3947 = vsub.f32 %v3945, %v3946
          %v3948 = vand.u32 %v3947, 4294901760
          %3949 = vmatpush1.msra.mxu0 %v3948
          %3950 = vmatprep.subr.mxu0 0.0
          %v3951 = vand.u32 %v3764, 4294901760
          %v3952 = vsub.f32 %v3764, %v3951
          %v3953 = vand.u32 %v3952, 4294901760
          %v3954 = vsub.f32 %v3952, %v3953
          %v3955 = vand.u32 %v3954, 4294901760
          %3956 = vmatpush1.msra.mxu0 %v3955
          %3957 = vmatprep.subr.mxu0 0.0
          %v3958 = vand.u32 %v3765, 4294901760
          %v3959 = vsub.f32 %v3765, %v3958
          %v3960 = vand.u32 %v3959, 4294901760
          %v3961 = vsub.f32 %v3959, %v3960
          %v3962 = vand.u32 %v3961, 4294901760
          %3963 = vmatpush1.msra.mxu0 %v3962
          %3964 = vmatprep.subr.mxu0 0.0
          %v3965 = vand.u32 %v3766, 4294901760
          %v3966 = vsub.f32 %v3766, %v3965
          %v3967 = vand.u32 %v3966, 4294901760
          %v3968 = vsub.f32 %v3966, %v3967
          %v3969 = vand.u32 %v3968, 4294901760
          %3970 = vmatpush1.msra.mxu0 %v3969
          %3971 = vmatprep.subr.mxu0 0.0
          %v3972 = vand.u32 %v3767, 4294901760
          %v3973 = vsub.f32 %v3767, %v3972
          %v3974 = vand.u32 %v3973, 4294901760
          %v3975 = vsub.f32 %v3973, %v3974
          %v3976 = vand.u32 %v3975, 4294901760
          %3977 = vmatpush1.msra.mxu0 %v3976
          %3978 = vmatprep.subr.mxu0 0.0
          %3979 = vmatpush1.msra.mxu0 0.0
          %3980 = vmatprep.subr.mxu0 0.0
          %3981 = vmatpush1.msra.mxu0 0.0
          %3982 = vmatprep.subr.mxu0 0.0
          %3983 = vmatpush1.msra.mxu0 0.0
          %3984 = vmatprep.subr.mxu0 0.0
          %3985 = vmatpush1.msra.mxu0 0.0
          %3986 = vmatprep.subr.mxu0 0.0
          %3987 = vmatpush1.msra.mxu0 0.0
          %3988 = vmatprep.subr.mxu0 0.0
          %3989 = vmatpush1.msra.mxu0 0.0
          %3990 = vmatprep.subr.mxu0 0.0
          %3991 = vmatpush1.msra.mxu0 0.0
          %3992 = vmatprep.subr.mxu0 0.0
          %3993 = vmatpush1.msra.mxu0 0.0
          %3994 = vmatprep.subr.mxu0 0.0
          %3995 = vmatpush1.msra.mxu0 0.0
          %3996 = vmatprep.subr.mxu0 0.0
          %3997 = vmatpush1.msra.mxu0 0.0
          %3998 = vmatprep.subr.mxu0 0.0
          %3999 = vmatpush1.msra.mxu0 0.0
          %4000 = vmatprep.subr.mxu0 0.0
          %4001 = vmatpush1.msra.mxu0 0.0
          %4002 = vmatprep.subr.mxu0 0.0
          %4003 = vmatpush1.msra.mxu0 0.0
          %4004 = vmatprep.subr.mxu0 0.0
          %4005 = vmatpush1.msra.mxu0 0.0
          %4006 = vmatprep.subr.mxu0 0.0
          %4007 = vmatpush1.msra.mxu0 0.0
          %4008 = vmatprep.subr.mxu0 0.0
          %4009 = vmatpush1.msra.mxu0 0.0
          %4010 = vmatprep.mubr.f32.mxu0 0.0
          %v4011 = vand.u32 %v3751, 4294901760
          %4012 = vmatmul.mubr.f32.gmra.mrb[0].mxu0 %v4011
          %v4013 = vpop.f32.mrb[0].mxu0
          %v4014 = vadd.f32 %v3863, %v4013
          %v4015 = vpop.f32.mrb[0].mxu0
          %4016 = vdwg.mxu0
          %4017 = vmatprep.subr.mxu0 0.0
          %v4018 = vand.u32 %v3752, 4294901760
          %v4019 = vsub.f32 %v3752, %v4018
          %4020 = vmatpush1.msra.mxu0 %v4019
          %4021 = vmatprep.subr.mxu0 0.0
          %v4022 = vand.u32 %v3753, 4294901760
          %v4023 = vsub.f32 %v3753, %v4022
          %4024 = vmatpush1.msra.mxu0 %v4023
          %4025 = vmatprep.subr.mxu0 0.0
          %v4026 = vand.u32 %v3754, 4294901760
          %v4027 = vsub.f32 %v3754, %v4026
          %4028 = vmatpush1.msra.mxu0 %v4027
          %4029 = vmatprep.subr.mxu0 0.0
          %v4030 = vand.u32 %v3755, 4294901760
          %v4031 = vsub.f32 %v3755, %v4030
          %4032 = vmatpush1.msra.mxu0 %v4031
          %4033 = vmatprep.subr.mxu0 0.0
          %v4034 = vand.u32 %v3756, 4294901760
          %v4035 = vsub.f32 %v3756, %v4034
          %4036 = vmatpush1.msra.mxu0 %v4035
          %4037 = vmatprep.subr.mxu0 0.0
          %v4038 = vand.u32 %v3757, 4294901760
          %v4039 = vsub.f32 %v3757, %v4038
          %4040 = vmatpush1.msra.mxu0 %v4039
          %4041 = vmatprep.subr.mxu0 0.0
          %v4042 = vand.u32 %v3758, 4294901760
          %v4043 = vsub.f32 %v3758, %v4042
          %4044 = vmatpush1.msra.mxu0 %v4043
          %4045 = vmatprep.subr.mxu0 0.0
          %v4046 = vand.u32 %v3759, 4294901760
          %v4047 = vsub.f32 %v3759, %v4046
          %4048 = vmatpush1.msra.mxu0 %v4047
          %4049 = vmatprep.subr.mxu0 0.0
          %v4050 = vand.u32 %v3760, 4294901760
          %v4051 = vsub.f32 %v3760, %v4050
          %4052 = vmatpush1.msra.mxu0 %v4051
          %4053 = vmatprep.subr.mxu0 0.0
          %v4054 = vand.u32 %v3761, 4294901760
          %v4055 = vsub.f32 %v3761, %v4054
          %4056 = vmatpush1.msra.mxu0 %v4055
          %4057 = vmatprep.subr.mxu0 0.0
          %v4058 = vand.u32 %v3762, 4294901760
          %v4059 = vsub.f32 %v3762, %v4058
          %4060 = vmatpush1.msra.mxu0 %v4059
          %4061 = vmatprep.subr.mxu0 0.0
          %v4062 = vand.u32 %v3763, 4294901760
          %v4063 = vsub.f32 %v3763, %v4062
          %4064 = vmatpush1.msra.mxu0 %v4063
          %4065 = vmatprep.subr.mxu0 0.0
          %v4066 = vand.u32 %v3764, 4294901760
          %v4067 = vsub.f32 %v3764, %v4066
          %4068 = vmatpush1.msra.mxu0 %v4067
          %4069 = vmatprep.subr.mxu0 0.0
          %v4070 = vand.u32 %v3765, 4294901760
          %v4071 = vsub.f32 %v3765, %v4070
          %4072 = vmatpush1.msra.mxu0 %v4071
          %4073 = vmatprep.subr.mxu0 0.0
          %v4074 = vand.u32 %v3766, 4294901760
          %v4075 = vsub.f32 %v3766, %v4074
          %4076 = vmatpush1.msra.mxu0 %v4075
          %4077 = vmatprep.subr.mxu0 0.0
          %v4078 = vand.u32 %v3767, 4294901760
          %v4079 = vsub.f32 %v3767, %v4078
          %4080 = vmatpush1.msra.mxu0 %v4079
          %4081 = vmatprep.subr.mxu0 0.0
          %4082 = vmatpush1.msra.mxu0 0.0
          %4083 = vmatprep.subr.mxu0 0.0
          %4084 = vmatpush1.msra.mxu0 0.0
          %4085 = vmatprep.subr.mxu0 0.0
          %4086 = vmatpush1.msra.mxu0 0.0
          %4087 = vmatprep.subr.mxu0 0.0
          %4088 = vmatpush1.msra.mxu0 0.0
          %4089 = vmatprep.subr.mxu0 0.0
          %4090 = vmatpush1.msra.mxu0 0.0
          %4091 = vmatprep.subr.mxu0 0.0
          %4092 = vmatpush1.msra.mxu0 0.0
          %4093 = vmatprep.subr.mxu0 0.0
          %4094 = vmatpush1.msra.mxu0 0.0
          %4095 = vmatprep.subr.mxu0 0.0
          %4096 = vmatpush1.msra.mxu0 0.0
          %4097 = vmatprep.subr.mxu0 0.0
          %4098 = vmatpush1.msra.mxu0 0.0
          %4099 = vmatprep.subr.mxu0 0.0
          %4100 = vmatpush1.msra.mxu0 0.0
          %4101 = vmatprep.subr.mxu0 0.0
          %4102 = vmatpush1.msra.mxu0 0.0
          %4103 = vmatprep.subr.mxu0 0.0
          %4104 = vmatpush1.msra.mxu0 0.0
          %4105 = vmatprep.subr.mxu0 0.0
          %4106 = vmatpush1.msra.mxu0 0.0
          %4107 = vmatprep.subr.mxu0 0.0
          %4108 = vmatpush1.msra.mxu0 0.0
          %4109 = vmatprep.subr.mxu0 0.0
          %4110 = vmatpush1.msra.mxu0 0.0
          %4111 = vmatprep.subr.mxu0 0.0
          %4112 = vmatpush1.msra.mxu0 0.0
          %4113 = vmatprep.mubr.f32.mxu0 0.0
          %v4114 = vand.u32 %v3751, 4294901760
          %v4115 = vsub.f32 %v3751, %v4114
          %4116 = vmatmul.mubr.f32.gmra.mrb[0].mxu0 %v4115
          %v4117 = vpop.f32.mrb[0].mxu0
          %v4118 = vadd.f32 %v4014, %v4117
          %v4119 = vpop.f32.mrb[0].mxu0
          %4120 = vdwg.mxu0
          %4121 = vmatprep.subr.mxu0 0.0
          %v4122 = vand.u32 %v3752, 4294901760
          %4123 = vmatpush1.msra.mxu0 %v4122
          %4124 = vmatprep.subr.mxu0 0.0
          %v4125 = vand.u32 %v3753, 4294901760
          %4126 = vmatpush1.msra.mxu0 %v4125
          %4127 = vmatprep.subr.mxu0 0.0
          %v4128 = vand.u32 %v3754, 4294901760
          %4129 = vmatpush1.msra.mxu0 %v4128
          %4130 = vmatprep.subr.mxu0 0.0
          %v4131 = vand.u32 %v3755, 4294901760
          %4132 = vmatpush1.msra.mxu0 %v4131
          %4133 = vmatprep.subr.mxu0 0.0
          %v4134 = vand.u32 %v3756, 4294901760
          %4135 = vmatpush1.msra.mxu0 %v4134
          %4136 = vmatprep.subr.mxu0 0.0
          %v4137 = vand.u32 %v3757, 4294901760
          %4138 = vmatpush1.msra.mxu0 %v4137
          %4139 = vmatprep.subr.mxu0 0.0
          %v4140 = vand.u32 %v3758, 4294901760
          %4141 = vmatpush1.msra.mxu0 %v4140
          %4142 = vmatprep.subr.mxu0 0.0
          %v4143 = vand.u32 %v3759, 4294901760
          %4144 = vmatpush1.msra.mxu0 %v4143
          %4145 = vmatprep.subr.mxu0 0.0
          %v4146 = vand.u32 %v3760, 4294901760
          %4147 = vmatpush1.msra.mxu0 %v4146
          %4148 = vmatprep.subr.mxu0 0.0
          %v4149 = vand.u32 %v3761, 4294901760
          %4150 = vmatpush1.msra.mxu0 %v4149
          %4151 = vmatprep.subr.mxu0 0.0
          %v4152 = vand.u32 %v3762, 4294901760
          %4153 = vmatpush1.msra.mxu0 %v4152
          %4154 = vmatprep.subr.mxu0 0.0
          %v4155 = vand.u32 %v3763, 4294901760
          %4156 = vmatpush1.msra.mxu0 %v4155
          %4157 = vmatprep.subr.mxu0 0.0
          %v4158 = vand.u32 %v3764, 4294901760
          %4159 = vmatpush1.msra.mxu0 %v4158
          %4160 = vmatprep.subr.mxu0 0.0
          %v4161 = vand.u32 %v3765, 4294901760
          %4162 = vmatpush1.msra.mxu0 %v4161
          %4163 = vmatprep.subr.mxu0 0.0
          %v4164 = vand.u32 %v3766, 4294901760
          %4165 = vmatpush1.msra.mxu0 %v4164
          %4166 = vmatprep.subr.mxu0 0.0
          %v4167 = vand.u32 %v3767, 4294901760
          %4168 = vmatpush1.msra.mxu0 %v4167
          %4169 = vmatprep.subr.mxu0 0.0
          %4170 = vmatpush1.msra.mxu0 0.0
          %4171 = vmatprep.subr.mxu0 0.0
          %4172 = vmatpush1.msra.mxu0 0.0
          %4173 = vmatprep.subr.mxu0 0.0
          %4174 = vmatpush1.msra.mxu0 0.0
          %4175 = vmatprep.subr.mxu0 0.0
          %4176 = vmatpush1.msra.mxu0 0.0
          %4177 = vmatprep.subr.mxu0 0.0
          %4178 = vmatpush1.msra.mxu0 0.0
          %4179 = vmatprep.subr.mxu0 0.0
          %4180 = vmatpush1.msra.mxu0 0.0
          %4181 = vmatprep.subr.mxu0 0.0
          %4182 = vmatpush1.msra.mxu0 0.0
          %4183 = vmatprep.subr.mxu0 0.0
          %4184 = vmatpush1.msra.mxu0 0.0
          %4185 = vmatprep.subr.mxu0 0.0
          %4186 = vmatpush1.msra.mxu0 0.0
          %4187 = vmatprep.subr.mxu0 0.0
          %4188 = vmatpush1.msra.mxu0 0.0
          %4189 = vmatprep.subr.mxu0 0.0
          %4190 = vmatpush1.msra.mxu0 0.0
          %4191 = vmatprep.subr.mxu0 0.0
          %4192 = vmatpush1.msra.mxu0 0.0
          %4193 = vmatprep.subr.mxu0 0.0
          %4194 = vmatpush1.msra.mxu0 0.0
          %4195 = vmatprep.subr.mxu0 0.0
          %4196 = vmatpush1.msra.mxu0 0.0
          %4197 = vmatprep.subr.mxu0 0.0
          %4198 = vmatpush1.msra.mxu0 0.0
          %4199 = vmatprep.subr.mxu0 0.0
          %4200 = vmatpush1.msra.mxu0 0.0
          %4201 = vmatprep.mubr.f32.mxu0 0.0
          %v4202 = vand.u32 %v3751, 4294901760
          %v4203 = vsub.f32 %v3751, %v4202
          %v4204 = vand.u32 %v4203, 4294901760
          %4205 = vmatmul.mubr.f32.gmra.mrb[0].mxu0 %v4204
          %v4206 = vpop.f32.mrb[0].mxu0
          %v4207 = vadd.f32 %v4118, %v4206
          %v4208 = vpop.f32.mrb[0].mxu0
          %4209 = vdwg.mxu0
          %4210 = vmatprep.subr.mxu0 0.0
          %v4211 = vand.u32 %v3752, 4294901760
          %v4212 = vsub.f32 %v3752, %v4211
          %v4213 = vand.u32 %v4212, 4294901760
          %4214 = vmatpush1.msra.mxu0 %v4213
          %4215 = vmatprep.subr.mxu0 0.0
          %v4216 = vand.u32 %v3753, 4294901760
          %v4217 = vsub.f32 %v3753, %v4216
          %v4218 = vand.u32 %v4217, 4294901760
          %4219 = vmatpush1.msra.mxu0 %v4218
          %4220 = vmatprep.subr.mxu0 0.0
          %v4221 = vand.u32 %v3754, 4294901760
          %v4222 = vsub.f32 %v3754, %v4221
          %v4223 = vand.u32 %v4222, 4294901760
          %4224 = vmatpush1.msra.mxu0 %v4223
          %4225 = vmatprep.subr.mxu0 0.0
          %v4226 = vand.u32 %v3755, 4294901760
          %v4227 = vsub.f32 %v3755, %v4226
          %v4228 = vand.u32 %v4227, 4294901760
          %4229 = vmatpush1.msra.mxu0 %v4228
          %4230 = vmatprep.subr.mxu0 0.0
          %v4231 = vand.u32 %v3756, 4294901760
          %v4232 = vsub.f32 %v3756, %v4231
          %v4233 = vand.u32 %v4232, 4294901760
          %4234 = vmatpush1.msra.mxu0 %v4233
          %4235 = vmatprep.subr.mxu0 0.0
          %v4236 = vand.u32 %v3757, 4294901760
          %v4237 = vsub.f32 %v3757, %v4236
          %v4238 = vand.u32 %v4237, 4294901760
          %4239 = vmatpush1.msra.mxu0 %v4238
          %4240 = vmatprep.subr.mxu0 0.0
          %v4241 = vand.u32 %v3758, 4294901760
          %v4242 = vsub.f32 %v3758, %v4241
          %v4243 = vand.u32 %v4242, 4294901760
          %4244 = vmatpush1.msra.mxu0 %v4243
          %4245 = vmatprep.subr.mxu0 0.0
          %v4246 = vand.u32 %v3759, 4294901760
          %v4247 = vsub.f32 %v3759, %v4246
          %v4248 = vand.u32 %v4247, 4294901760
          %4249 = vmatpush1.msra.mxu0 %v4248
          %4250 = vmatprep.subr.mxu0 0.0
          %v4251 = vand.u32 %v3760, 4294901760
          %v4252 = vsub.f32 %v3760, %v4251
          %v4253 = vand.u32 %v4252, 4294901760
          %4254 = vmatpush1.msra.mxu0 %v4253
          %4255 = vmatprep.subr.mxu0 0.0
          %v4256 = vand.u32 %v3761, 4294901760
          %v4257 = vsub.f32 %v3761, %v4256
          %v4258 = vand.u32 %v4257, 4294901760
          %4259 = vmatpush1.msra.mxu0 %v4258
          %4260 = vmatprep.subr.mxu0 0.0
          %v4261 = vand.u32 %v3762, 4294901760
          %v4262 = vsub.f32 %v3762, %v4261
          %v4263 = vand.u32 %v4262, 4294901760
          %4264 = vmatpush1.msra.mxu0 %v4263
          %4265 = vmatprep.subr.mxu0 0.0
          %v4266 = vand.u32 %v3763, 4294901760
          %v4267 = vsub.f32 %v3763, %v4266
          %v4268 = vand.u32 %v4267, 4294901760
          %4269 = vmatpush1.msra.mxu0 %v4268
          %4270 = vmatprep.subr.mxu0 0.0
          %v4271 = vand.u32 %v3764, 4294901760
          %v4272 = vsub.f32 %v3764, %v4271
          %v4273 = vand.u32 %v4272, 4294901760
          %4274 = vmatpush1.msra.mxu0 %v4273
          %4275 = vmatprep.subr.mxu0 0.0
          %v4276 = vand.u32 %v3765, 4294901760
          %v4277 = vsub.f32 %v3765, %v4276
          %v4278 = vand.u32 %v4277, 4294901760
          %4279 = vmatpush1.msra.mxu0 %v4278
          %4280 = vmatprep.subr.mxu0 0.0
          %v4281 = vand.u32 %v3766, 4294901760
          %v4282 = vsub.f32 %v3766, %v4281
          %v4283 = vand.u32 %v4282, 4294901760
          %4284 = vmatpush1.msra.mxu0 %v4283
          %4285 = vmatprep.subr.mxu0 0.0
          %v4286 = vand.u32 %v3767, 4294901760
          %v4287 = vsub.f32 %v3767, %v4286
          %v4288 = vand.u32 %v4287, 4294901760
          %4289 = vmatpush1.msra.mxu0 %v4288
          %4290 = vmatprep.subr.mxu0 0.0
          %4291 = vmatpush1.msra.mxu0 0.0
          %4292 = vmatprep.subr.mxu0 0.0
          %4293 = vmatpush1.msra.mxu0 0.0
          %4294 = vmatprep.subr.mxu0 0.0
          %4295 = vmatpush1.msra.mxu0 0.0
          %4296 = vmatprep.subr.mxu0 0.0
          %4297 = vmatpush1.msra.mxu0 0.0
          %4298 = vmatprep.subr.mxu0 0.0
          %4299 = vmatpush1.msra.mxu0 0.0
          %4300 = vmatprep.subr.mxu0 0.0
          %4301 = vmatpush1.msra.mxu0 0.0
          %4302 = vmatprep.subr.mxu0 0.0
          %4303 = vmatpush1.msra.mxu0 0.0
          %4304 = vmatprep.subr.mxu0 0.0
          %4305 = vmatpush1.msra.mxu0 0.0
          %4306 = vmatprep.subr.mxu0 0.0
          %4307 = vmatpush1.msra.mxu0 0.0
          %4308 = vmatprep.subr.mxu0 0.0
          %4309 = vmatpush1.msra.mxu0 0.0
          %4310 = vmatprep.subr.mxu0 0.0
          %4311 = vmatpush1.msra.mxu0 0.0
          %4312 = vmatprep.subr.mxu0 0.0
          %4313 = vmatpush1.msra.mxu0 0.0
          %4314 = vmatprep.subr.mxu0 0.0
          %4315 = vmatpush1.msra.mxu0 0.0
          %4316 = vmatprep.subr.mxu0 0.0
          %4317 = vmatpush1.msra.mxu0 0.0
          %4318 = vmatprep.subr.mxu0 0.0
          %4319 = vmatpush1.msra.mxu0 0.0
          %4320 = vmatprep.subr.mxu0 0.0
          %4321 = vmatpush1.msra.mxu0 0.0
          %4322 = vmatprep.mubr.f32.mxu0 0.0
          %v4323 = vand.u32 %v3751, 4294901760
          %4324 = vmatmul.mubr.f32.gmra.mrb[0].mxu0 %v4323
          %v4325 = vpop.f32.mrb[0].mxu0
          %v4326 = vadd.f32 %v4207, %v4325
          %v4327 = vpop.f32.mrb[0].mxu0
          %4328 = vdwg.mxu0
          %4329 = vmatprep.subr.mxu0 0.0
          %v4330 = vand.u32 %v3752, 4294901760
          %4331 = vmatpush1.msra.mxu0 %v4330
          %4332 = vmatprep.subr.mxu0 0.0
          %v4333 = vand.u32 %v3753, 4294901760
          %4334 = vmatpush1.msra.mxu0 %v4333
          %4335 = vmatprep.subr.mxu0 0.0
          %v4336 = vand.u32 %v3754, 4294901760
          %4337 = vmatpush1.msra.mxu0 %v4336
          %4338 = vmatprep.subr.mxu0 0.0
          %v4339 = vand.u32 %v3755, 4294901760
          %4340 = vmatpush1.msra.mxu0 %v4339
          %4341 = vmatprep.subr.mxu0 0.0
          %v4342 = vand.u32 %v3756, 4294901760
          %4343 = vmatpush1.msra.mxu0 %v4342
          %4344 = vmatprep.subr.mxu0 0.0
          %v4345 = vand.u32 %v3757, 4294901760
          %4346 = vmatpush1.msra.mxu0 %v4345
          %4347 = vmatprep.subr.mxu0 0.0
          %v4348 = vand.u32 %v3758, 4294901760
          %4349 = vmatpush1.msra.mxu0 %v4348
          %4350 = vmatprep.subr.mxu0 0.0
          %v4351 = vand.u32 %v3759, 4294901760
          %4352 = vmatpush1.msra.mxu0 %v4351
          %4353 = vmatprep.subr.mxu0 0.0
          %v4354 = vand.u32 %v3760, 4294901760
          %4355 = vmatpush1.msra.mxu0 %v4354
          %4356 = vmatprep.subr.mxu0 0.0
          %v4357 = vand.u32 %v3761, 4294901760
          %4358 = vmatpush1.msra.mxu0 %v4357
          %4359 = vmatprep.subr.mxu0 0.0
          %v4360 = vand.u32 %v3762, 4294901760
          %4361 = vmatpush1.msra.mxu0 %v4360
          %4362 = vmatprep.subr.mxu0 0.0
          %v4363 = vand.u32 %v3763, 4294901760
          %4364 = vmatpush1.msra.mxu0 %v4363
          %4365 = vmatprep.subr.mxu0 0.0
          %v4366 = vand.u32 %v3764, 4294901760
          %4367 = vmatpush1.msra.mxu0 %v4366
          %4368 = vmatprep.subr.mxu0 0.0
          %v4369 = vand.u32 %v3765, 4294901760
          %4370 = vmatpush1.msra.mxu0 %v4369
          %4371 = vmatprep.subr.mxu0 0.0
          %v4372 = vand.u32 %v3766, 4294901760
          %4373 = vmatpush1.msra.mxu0 %v4372
          %4374 = vmatprep.subr.mxu0 0.0
          %v4375 = vand.u32 %v3767, 4294901760
          %4376 = vmatpush1.msra.mxu0 %v4375
          %4377 = vmatprep.subr.mxu0 0.0
          %4378 = vmatpush1.msra.mxu0 0.0
          %4379 = vmatprep.subr.mxu0 0.0
          %4380 = vmatpush1.msra.mxu0 0.0
          %4381 = vmatprep.subr.mxu0 0.0
          %4382 = vmatpush1.msra.mxu0 0.0
          %4383 = vmatprep.subr.mxu0 0.0
          %4384 = vmatpush1.msra.mxu0 0.0
          %4385 = vmatprep.subr.mxu0 0.0
          %4386 = vmatpush1.msra.mxu0 0.0
          %4387 = vmatprep.subr.mxu0 0.0
          %4388 = vmatpush1.msra.mxu0 0.0
          %4389 = vmatprep.subr.mxu0 0.0
          %4390 = vmatpush1.msra.mxu0 0.0
          %4391 = vmatprep.subr.mxu0 0.0
          %4392 = vmatpush1.msra.mxu0 0.0
          %4393 = vmatprep.subr.mxu0 0.0
          %4394 = vmatpush1.msra.mxu0 0.0
          %4395 = vmatprep.subr.mxu0 0.0
          %4396 = vmatpush1.msra.mxu0 0.0
          %4397 = vmatprep.subr.mxu0 0.0
          %4398 = vmatpush1.msra.mxu0 0.0
          %4399 = vmatprep.subr.mxu0 0.0
          %4400 = vmatpush1.msra.mxu0 0.0
          %4401 = vmatprep.subr.mxu0 0.0
          %4402 = vmatpush1.msra.mxu0 0.0
          %4403 = vmatprep.subr.mxu0 0.0
          %4404 = vmatpush1.msra.mxu0 0.0
          %4405 = vmatprep.subr.mxu0 0.0
          %4406 = vmatpush1.msra.mxu0 0.0
          %4407 = vmatprep.subr.mxu0 0.0
          %4408 = vmatpush1.msra.mxu0 0.0
          %4409 = vmatprep.mubr.f32.mxu0 0.0
          %v4410 = vand.u32 %v3751, 4294901760
          %4411 = vmatmul.mubr.f32.gmra.mrb[0].mxu0 %v4410
          %v4412 = vpop.f32.mrb[0].mxu0
          %v4413 = vadd.f32 %v4326, %v4412
          %v4414 = vpop.f32.mrb[0].mxu0
          %4415 = vdwg.mxu0
          %4416 = vst [vmem:[%s621] sm:$0xff] %v4413
        $region92: #{tpu_custom_call.1} parent=75 // pred_fallthru
          _
        %s4417 = sand.u32 %s420, 1
        %s4418 = scalar_lea.sflag [#allocation12], %s4417
        %s4419 = sand.u32 %s420, 1
        %s4420 = smul.addr %s4419, 8
        %s4421 = scalar_lea.vmem [#allocation13], %s4420
        // Predicated region
        $region93: #{tpu_custom_call.1} parent=75 // pred_check
          %p4422 = pneg %p430
        $region94: #{tpu_custom_call.1} parent=75 // pred_check_branch
          %4424 = sbr.rel (%p4422) target = $region96
        $region95: #{tpu_custom_call.1} parent=75 // pred_region
          %s4425 = smul.u32 %s60, 2
          %s4426 = sadd.s32 %s4425, %s61
          %s4427 = sld [smem:[#allocation5 + %s4426]]
          %s4429 = ssub.s32 128, 128
          %4430 = vsyncadd %s4418, %s4429
          %s4431 = smul.addr %s4427, 128
          %s4432 = scalar_lea.hbm %s19, %s4431
          %s4434 = sshll.u32 %s4421, 4
          %s4435 = int_to_ptr.vmem [resolvable:$true] %s4434
          %4437 = dma.vmem_to_hbm [thread:$0]  %s4435, 128, %s4432, %s4418
        $region96: #{tpu_custom_call.1} parent=75 // pred_fallthru
          _
      $region76: #{tpu_custom_call.1} parent=5 // pred_fallthru
        _
      %p4438 = scmp.le.s32.totalorder 2, %s51
      // Predicated region
      $region97: #{tpu_custom_call.1} parent=5 // pred_check
        %p4439 = pneg %p4438
      $region98: #{tpu_custom_call.1} parent=5 // pred_check_branch
        %4441 = sbr.rel (%p4439) target = $region100
      $region99: #{tpu_custom_call.1} parent=5 // pred_region
        %s4442 = ssub.s32 %s51, 2
        // Predicated region
        $region101: #{tpu_custom_call.1} parent=99 // pred_check
          %p4443 = pneg %p436
        $region102: #{tpu_custom_call.1} parent=99 // pred_check_branch
          %4445 = sbr.rel (%p4443) target = $region104
        $region103: #{tpu_custom_call.1} parent=99 // pred_region
          %s4446 = sand.u32 %s421, 1
          %s4447 = scalar_lea.sflag [#allocation12], %s4446
          %s4448 = sand.u32 %s421, 1
          %s4449 = smul.addr %s4448, 8
          %s4450 = scalar_lea.vmem [#allocation13], %s4449
          %4451 = dma.done %s4447, 128
        $region104: #{tpu_custom_call.1} parent=99 // pred_fallthru
          _
      $region100: #{tpu_custom_call.1} parent=5 // pred_fallthru
        _
    $region6: #{tpu_custom_call.1} parent=1 // loop_footer
      %s55 = sadd.s32 1, %s51
    $region7: #{tpu_custom_call.1} parent=1 // loop_footer_branch
      %50 = sbr.rel target = $region3
    $region8: #{tpu_custom_call.1} parent=1 // loop_exit
      _
    %4452 = vsyncpa [#allocation11], 1
    %s4453 = scalar_lea.sflag [#allocation11], 1
    %4454 = vsyncpa %s4453, 1
    %4455 = vsyncpa [#allocation12], 1
    %s4456 = scalar_lea.sflag [#allocation12], 1
    %4457 = vsyncpa %s4456, 1

</llo_original>
